<compile_context>
chip_gen: v7x
topology: tpu7x:2x2x1
jax: 0.10.0
libtpu: 0.0.40
codegen_flags: <defaults>
</compile_context>

<pallas_src>
import functools

import jax
import jax.numpy as jnp
from jax.experimental import pallas as pl
from jax.experimental.pallas import tpu as pltpu


def _round_up(n, m):
    return (n + m - 1) // m * m


def _cdiv(a, b):
    return (a + b - 1) // b


def _batch_tile_cap():
    """Largest batch tile we are willing to use on this chip."""
    try:
        kind = jax.devices()[0].device_kind.lower()
    except Exception:
        kind = ""
    if "v5 lite" in kind or "v5e" in kind or "v5litepod" in kind:
        return 512    # 16 MiB default scoped VMEM; MXU M=128
    return 1024       # v6e / v7x: amortizes the ~0.35 us per-grid-step overhead


def _choose_batch_tile(batch, cap):
    """Even split of the batch into ceil(batch/cap) tiles, rounded to the
    8-row sublane, so padded rows are at most 7 (not up to a full tile)."""
    n_tiles = max(1, _cdiv(batch, cap))
    return _round_up(_cdiv(batch, n_tiles), 8)


def pack_params(params, weight_dtype=jnp.bfloat16):
    """Pack per-layer (W [in, out], b [out]) f32 params into:
         * one bf16 weight buffer (row offsets 16-aligned, column offsets
           128-aligned; narrow layers co-located in the unused lane columns of
           wider layers),
         * one f32 bias buffer (one row per layer, features starting at col 0),
         * static layer metadata (row_off, col_off, in_features, out_cols).
       out_cols = round_up(out_features, 128) so the final store is lane-dense;
       all padded weight/bias entries are zero."""
    sizes = []
    for w, _ in params:
        in_f, out_f = w.shape
        sizes.append((_round_up(in_f, 16), _round_up(out_f, 128), in_f, out_f))
    width = max(cp for _, cp, _, _ in sizes)

    # Greedy guillotine packing: widest (then tallest) layers first; each layer
    # placed at the bottom leaves its unused right-hand columns as a free
    # rectangle that later, narrower layers can occupy.
    order = sorted(range(len(sizes)), key=lambda i: (-sizes[i][1], -sizes[i][0]))
    free = []                      # (row0, rows, col0, cols) free rectangles
    place = [None] * len(sizes)
    next_row = 0
    for i in order:
        rp, cp, _, _ = sizes[i]
        hit = None
        for j, (fr, frh, fc, fcw) in enumerate(free):
            if rp <= frh and cp <= fcw:
                hit = j
                break
        if hit is not None:
            fr, frh, fc, fcw = free.pop(hit)
            place[i] = (fr, fc)
            if frh > rp:
                free.append((fr + rp, frh - rp, fc, cp))
            if fcw > cp:
                free.append((fr, frh, fc + cp, fcw - cp))
        else:
            place[i] = (next_row, 0)
            if width > cp:
                free.append((next_row, rp, cp, width - cp))
            next_row += rp
    rows_total = _round_up(max(next_row, 16), 16)

    w_pack = jnp.zeros((rows_total, width), weight_dtype)
    b_pack = jnp.zeros((len(params), width), jnp.float32)
    metas = []
    for li, ((w, b), (rp, cp, in_f, out_f), (r0, c0)) in enumerate(
            zip(params, sizes, place)):
        w_pack = w_pack.at[r0:r0 + in_f, c0:c0 + out_f].set(w.astype(weight_dtype))
        b_pack = b_pack.at[li, :out_f].set(
            jnp.reshape(b, (-1,)).astype(jnp.float32))
        metas.append((r0, c0, in_f, cp))
    return w_pack, b_pack, tuple(metas)


def _mlp_kernel(x_ref, w_ref, b_ref, o_ref, *, layer_meta):
    """Fused 5-layer MLP on one batch tile.

    x_ref : (TB, state_dim)        f32
    w_ref : (rows_total, width)    bf16  packed weights (VMEM-resident)
    b_ref : (num_layers, width)    f32   packed biases  (VMEM-resident)
    o_ref : (TB, out_cols_last)    f32   out_cols_last = round_up(action_dim,128)
    layer_meta: static tuple of (row_off, col_off, in_features, out_cols).
    """
    num_layers = len(layer_meta)
    h = x_ref[...].astype(jnp.bfloat16)              # activations kept in bf16
    for li, (r0, c0, in_f, cols) in enumerate(layer_meta):
        w = w_ref[r0:r0 + in_f, c0:c0 + cols]        # bf16 (in_f, cols)
        acc = jnp.dot(h[:, :in_f], w, preferred_element_type=jnp.float32)
        acc = acc + b_ref[li:li + 1, :cols]          # bias add / ReLU in f32
        if li < num_layers - 1:
            h = jnp.maximum(acc, 0.0).astype(jnp.bfloat16)
        else:
            h = acc                                  # last layer stays f32
    o_ref[...] = h.astype(o_ref.dtype)


def mlp_forward(x, w_pack, b_pack, layer_meta, action_dim, *, batch_tile=None):
    """x: [B, state_dim] f32  ->  [B, action_dim] f32."""
    batch, state_dim = x.shape
    out_cols = layer_meta[-1][3]

    cap = batch_tile if batch_tile is not None else _batch_tile_cap()
    tb = _choose_batch_tile(batch, cap)
    b_pad = _round_up(batch, tb)
    if b_pad != batch:
        x = jnp.pad(x, ((0, b_pad - batch), (0, 0)))

    kernel = functools.partial(_mlp_kernel, layer_meta=layer_meta)

    flops = 2 * b_pad * sum(in_f * cols for _, _, in_f, cols in layer_meta)
    bytes_accessed = (x.size * x.dtype.itemsize
                      + w_pack.size * w_pack.dtype.itemsize
                      + b_pack.size * b_pack.dtype.itemsize
                      + b_pad * out_cols * 4)

    def call(single_buffered):
        if single_buffered:
            resident = lambda shape: pl.BlockSpec(
                shape, lambda i: (0, 0), pipeline_mode=pl.Buffered(1))
        else:
            resident = lambda shape: pl.BlockSpec(shape, lambda i: (0, 0))
        return pl.pallas_call(
            kernel,
            out_shape=jax.ShapeDtypeStruct((b_pad, out_cols), jnp.float32),
            grid=(b_pad // tb,),
            in_specs=[
                pl.BlockSpec((tb, state_dim), lambda i: (i, 0)),  # batch-tiled x
                resident(w_pack.shape),                           # weights
                resident(b_pack.shape),                           # biases
            ],
            out_specs=pl.BlockSpec((tb, out_cols), lambda i: (i, 0)),
            compiler_params=pltpu.CompilerParams(
                dimension_semantics=("parallel",)),               # megacore on v7x
            cost_estimate=pl.CostEstimate(
                flops=flops, transcendentals=0, bytes_accessed=bytes_accessed),
        )(x, w_pack, b_pack)

    try:
        out = call(True)
    except Exception:
        # Older Pallas versions may not support per-spec pipeline_mode /
        # single-buffering; fall back to default double-buffered resident specs.
        out = call(False)

    return out[:batch, :action_dim]


def init_params(key, state_dim, action_dim):
    """Deterministic init matching nn.Linear's default U(-1/sqrt(fan_in), ..).
    Weights are pre-transposed to [in_features, out_features] (nn.Linear keeps
    [out, in] and computes x @ W.T — identical semantics)."""
    dims = [state_dim, 256, 512, 512, 256, action_dim]
    params = []
    for i in range(len(dims) - 1):
        key, kw, kb = jax.random.split(key, 3)
        fan_in, fan_out = dims[i], dims[i + 1]
        bound = 1.0 / (fan_in ** 0.5)
        w_t = jax.random.uniform(kw, (fan_in, fan_out), jnp.float32, -bound, bound)
        b = jax.random.uniform(kb, (fan_out,), jnp.float32, -bound, bound)
        params.append((w_t, b))
    return params


def reference_forward(x, params):
    """Pure-JAX reference using the same bf16-weight / bf16-activation /
    f32-accumulate math as the kernel.  (bf16 weight quantization is an
    intentional, documented deviation from the f32 PyTorch model.)"""
    h = x.astype(jnp.bfloat16)
    n = len(params)
    for i, (w, b) in enumerate(params):
        acc = jnp.dot(h, w.astype(jnp.bfloat16),
                      preferred_element_type=jnp.float32) + b.reshape(1, -1)
        if i < n - 1:
            h = jnp.maximum(acc, 0.0).astype(jnp.bfloat16)
        else:
            h = acc
    return h


if __name__ == "__main__":
    state_dim, action_dim, batch = 32, 8, 8

    key = jax.random.PRNGKey(0)
    key, kx = jax.random.split(key)
    x = jax.random.normal(kx, (batch, state_dim), jnp.float32)
    params = init_params(key, state_dim, action_dim)

    w_pack, b_pack, layer_meta = pack_params(params)

    out = mlp_forward(x, w_pack, b_pack, layer_meta, action_dim)
    out = jax.block_until_ready(out)
    assert out.shape == (batch, action_dim)

    ref = reference_forward(x, params)
    err = float(jnp.max(jnp.abs(out - ref)))
    assert jnp.allclose(out, ref, atol=2e-3, rtol=2e-3), f"max abs err {err}"

    print("KERNEL_OK")
</pallas_src>

<mosaic_0001>
module attributes {stable_mosaic.version = 11 : i64} {
  func.func @_mlp_kernel(%arg0: i32, %arg1: memref<8x32xf32, #tpu.memory_space<vmem>>, %arg2: memref<1280x512xbf16, #tpu.memory_space<vmem>>, %arg3: memref<5x512xf32, #tpu.memory_space<vmem>>, %arg4: memref<8x128xf32, #tpu.memory_space<vmem>>) attributes {dimension_semantics = [#tpu.dimension_semantics<parallel>], iteration_bounds = array<i64: 1>, scalar_prefetch = 0 : i64, scratch_operands = 0 : i64, tpu.core_type = #tpu.core_type<tc>, window_params = [{transform_indices = @transform_0, window_bounds = array<i64: 8, 32>}, {pipeline_mode = #tpu.pipeline_mode<synchronous>, transform_indices = @transform_1, window_bounds = array<i64: 1280, 512>}, {pipeline_mode = #tpu.pipeline_mode<synchronous>, transform_indices = @transform_2, window_bounds = array<i64: 5, 512>}, {transform_indices = @transform_3, window_bounds = array<i64: 8, 128>}]} {
    %c0 = arith.constant 0 : index
    %c0_0 = arith.constant 0 : index
    %0 = vector.load %arg1[%c0, %c0_0] : memref<8x32xf32, #tpu.memory_space<vmem>>, vector<8x32xf32>
    %1 = arith.truncf %0 : vector<8x32xf32> to vector<8x32xbf16>
    %c768 = arith.constant 768 : index
    %c256 = arith.constant 256 : index
    %2 = vector.load %arg2[%c768, %c256] : memref<1280x512xbf16, #tpu.memory_space<vmem>>, vector<32x256xbf16>
    %cst = arith.constant dense<0.000000e+00> : vector<8x256xf32>
    %3 = tpu.matmul %1, %2, %cst {dimension_numbers = #tpu.dot_dimension_numbers<[1], [0], [0], [1], [0, 0, 1, 1], [], []>} : vector<8x32xbf16>, vector<32x256xbf16>, vector<8x256xf32> -> vector<8x256xf32>
    %c0_1 = arith.constant 0 : index
    %c0_2 = arith.constant 0 : index
    %4 = vector.load %arg3[%c0_1, %c0_2] : memref<5x512xf32, #tpu.memory_space<vmem>>, vector<1x256xf32>
    %5 = vector.broadcast %4 : vector<1x256xf32> to vector<8x256xf32>
    %6 = arith.addf %3, %5 : vector<8x256xf32>
    %cst_3 = arith.constant 0.000000e+00 : f32
    %7 = vector.broadcast %cst_3 : f32 to vector<8x256xf32>
    %8 = arith.maximumf %6, %7 : vector<8x256xf32>
    %9 = arith.truncf %8 : vector<8x256xf32> to vector<8x256xbf16>
    %c512 = arith.constant 512 : index
    %c0_4 = arith.constant 0 : index
    %10 = vector.load %arg2[%c512, %c0_4] : memref<1280x512xbf16, #tpu.memory_space<vmem>>, vector<256x512xbf16>
    %cst_5 = arith.constant dense<0.000000e+00> : vector<8x512xf32>
    %11 = tpu.matmul %9, %10, %cst_5 {dimension_numbers = #tpu.dot_dimension_numbers<[1], [0], [0], [1], [0, 0, 1, 1], [], []>} : vector<8x256xbf16>, vector<256x512xbf16>, vector<8x512xf32> -> vector<8x512xf32>
    %c1 = arith.constant 1 : index
    %c0_6 = arith.constant 0 : index
    %12 = vector.load %arg3[%c1, %c0_6] : memref<5x512xf32, #tpu.memory_space<vmem>>, vector<1x512xf32>
    %13 = vector.broadcast %12 : vector<1x512xf32> to vector<8x512xf32>
    %14 = arith.addf %11, %13 : vector<8x512xf32>
    %cst_7 = arith.constant 0.000000e+00 : f32
    %15 = vector.broadcast %cst_7 : f32 to vector<8x512xf32>
    %16 = arith.maximumf %14, %15 : vector<8x512xf32>
    %17 = arith.truncf %16 : vector<8x512xf32> to vector<8x512xbf16>
    %c0_8 = arith.constant 0 : index
    %c0_9 = arith.constant 0 : index
    %18 = vector.load %arg2[%c0_8, %c0_9] : memref<1280x512xbf16, #tpu.memory_space<vmem>>, vector<512x512xbf16>
    %cst_10 = arith.constant dense<0.000000e+00> : vector<8x512xf32>
    %19 = tpu.matmul %17, %18, %cst_10 {dimension_numbers = #tpu.dot_dimension_numbers<[1], [0], [0], [1], [0, 0, 1, 1], [], []>} : vector<8x512xbf16>, vector<512x512xbf16>, vector<8x512xf32> -> vector<8x512xf32>
    %c2 = arith.constant 2 : index
    %c0_11 = arith.constant 0 : index
    %20 = vector.load %arg3[%c2, %c0_11] : memref<5x512xf32, #tpu.memory_space<vmem>>, vector<1x512xf32>
    %21 = vector.broadcast %20 : vector<1x512xf32> to vector<8x512xf32>
    %22 = arith.addf %19, %21 : vector<8x512xf32>
    %cst_12 = arith.constant 0.000000e+00 : f32
    %23 = vector.broadcast %cst_12 : f32 to vector<8x512xf32>
    %24 = arith.maximumf %22, %23 : vector<8x512xf32>
    %25 = arith.truncf %24 : vector<8x512xf32> to vector<8x512xbf16>
    %c768_13 = arith.constant 768 : index
    %c0_14 = arith.constant 0 : index
    %26 = vector.load %arg2[%c768_13, %c0_14] : memref<1280x512xbf16, #tpu.memory_space<vmem>>, vector<512x256xbf16>
    %cst_15 = arith.constant dense<0.000000e+00> : vector<8x256xf32>
    %27 = tpu.matmul %25, %26, %cst_15 {dimension_numbers = #tpu.dot_dimension_numbers<[1], [0], [0], [1], [0, 0, 1, 1], [], []>} : vector<8x512xbf16>, vector<512x256xbf16>, vector<8x256xf32> -> vector<8x256xf32>
    %c3 = arith.constant 3 : index
    %c0_16 = arith.constant 0 : index
    %28 = vector.load %arg3[%c3, %c0_16] : memref<5x512xf32, #tpu.memory_space<vmem>>, vector<1x256xf32>
    %29 = vector.broadcast %28 : vector<1x256xf32> to vector<8x256xf32>
    %30 = arith.addf %27, %29 : vector<8x256xf32>
    %cst_17 = arith.constant 0.000000e+00 : f32
    %31 = vector.broadcast %cst_17 : f32 to vector<8x256xf32>
    %32 = arith.maximumf %30, %31 : vector<8x256xf32>
    %33 = arith.truncf %32 : vector<8x256xf32> to vector<8x256xbf16>
    %c800 = arith.constant 800 : index
    %c256_18 = arith.constant 256 : index
    %34 = vector.load %arg2[%c800, %c256_18] : memref<1280x512xbf16, #tpu.memory_space<vmem>>, vector<256x128xbf16>
    %cst_19 = arith.constant dense<0.000000e+00> : vector<8x128xf32>
    %35 = tpu.matmul %33, %34, %cst_19 {dimension_numbers = #tpu.dot_dimension_numbers<[1], [0], [0], [1], [0, 0, 1, 1], [], []>} : vector<8x256xbf16>, vector<256x128xbf16>, vector<8x128xf32> -> vector<8x128xf32>
    %c4 = arith.constant 4 : index
    %c0_20 = arith.constant 0 : index
    %36 = vector.load %arg3[%c4, %c0_20] : memref<5x512xf32, #tpu.memory_space<vmem>>, vector<1x128xf32>
    %37 = vector.broadcast %36 : vector<1x128xf32> to vector<8x128xf32>
    %38 = arith.addf %35, %37 : vector<8x128xf32>
    %c0_21 = arith.constant 0 : index
    %c0_22 = arith.constant 0 : index
    %39 = vector.load %arg4[%c0_21, %c0_22] : memref<8x128xf32, #tpu.memory_space<vmem>>, vector<8x128xf32>
    tpu.vector_store %arg4[%c0_21, %c0_22], %38 {strides = array<i32>} : memref<8x128xf32, #tpu.memory_space<vmem>>, vector<8x128xf32>,
    return
  }
  func.func @transform_0(%arg0: i32) -> (i32, i32) {
    %c0_i32 = arith.constant 0 : i32
    %c0_i32_0 = arith.constant 0 : i32
    return %arg0, %c0_i32 : i32, i32
  }
  func.func @transform_1(%arg0: i32) -> (i32, i32) {
    %c0_i32 = arith.constant 0 : i32
    %c0_i32_0 = arith.constant 0 : i32
    %c0_i32_1 = arith.constant 0 : i32
    return %c0_i32, %c0_i32_0 : i32, i32
  }
  func.func @transform_2(%arg0: i32) -> (i32, i32) {
    %c0_i32 = arith.constant 0 : i32
    %c0_i32_0 = arith.constant 0 : i32
    %c0_i32_1 = arith.constant 0 : i32
    return %c0_i32, %c0_i32_0 : i32, i32
  }
  func.func @transform_3(%arg0: i32) -> (i32, i32) {
    %c0_i32 = arith.constant 0 : i32
    %c0_i32_0 = arith.constant 0 : i32
    return %arg0, %c0_i32 : i32, i32
  }
}

module attributes {stable_mosaic.version = 11 : i64} {
  func.func @_mlp_kernel(%arg0: i32, %arg1: memref<8x32xf32, #tpu.memory_space<vmem>>, %arg2: memref<1280x512xbf16, #tpu.memory_space<vmem>>, %arg3: memref<5x512xf32, #tpu.memory_space<vmem>>, %arg4: memref<8x128xf32, #tpu.memory_space<vmem>>) attributes {dimension_semantics = [#tpu.dimension_semantics<parallel>], iteration_bounds = array<i64: 1>, scalar_prefetch = 0 : i64, scratch_operands = 0 : i64, tpu.core_type = #tpu.core_type<tc>, window_params = [{transform_indices = @transform_0, window_bounds = array<i64: 8, 32>}, {pipeline_mode = #tpu.pipeline_mode<synchronous>, transform_indices = @transform_1, window_bounds = array<i64: 1280, 512>}, {pipeline_mode = #tpu.pipeline_mode<synchronous>, transform_indices = @transform_2, window_bounds = array<i64: 5, 512>}, {transform_indices = @transform_3, window_bounds = array<i64: 8, 128>}]} {
    %c0 = arith.constant 0 : index
    %c0_0 = arith.constant 0 : index
    %0 = vector.load %arg1[%c0, %c0_0] : memref<8x32xf32, #tpu.memory_space<vmem>>, vector<8x32xf32>
    %1 = arith.truncf %0 : vector<8x32xf32> to vector<8x32xbf16>
    %c768 = arith.constant 768 : index
    %c256 = arith.constant 256 : index
    %2 = vector.load %arg2[%c768, %c256] : memref<1280x512xbf16, #tpu.memory_space<vmem>>, vector<32x256xbf16>
    %cst = arith.constant dense<0.000000e+00> : vector<8x256xf32>
    %3 = tpu.matmul %1, %2, %cst {dimension_numbers = #tpu.dot_dimension_numbers<[1], [0], [0], [1], [0, 0, 1, 1], [], []>} : vector<8x32xbf16>, vector<32x256xbf16>, vector<8x256xf32> -> vector<8x256xf32>
    %c0_1 = arith.constant 0 : index
    %c0_2 = arith.constant 0 : index
    %4 = vector.load %arg3[%c0_1, %c0_2] : memref<5x512xf32, #tpu.memory_space<vmem>>, vector<1x256xf32>
    %5 = vector.broadcast %4 : vector<1x256xf32> to vector<8x256xf32>
    %6 = arith.addf %3, %5 : vector<8x256xf32>
    %cst_3 = arith.constant 0.000000e+00 : f32
    %7 = vector.broadcast %cst_3 : f32 to vector<8x256xf32>
    %8 = arith.maximumf %6, %7 : vector<8x256xf32>
    %9 = arith.truncf %8 : vector<8x256xf32> to vector<8x256xbf16>
    %c512 = arith.constant 512 : index
    %c0_4 = arith.constant 0 : index
    %10 = vector.load %arg2[%c512, %c0_4] : memref<1280x512xbf16, #tpu.memory_space<vmem>>, vector<256x512xbf16>
    %cst_5 = arith.constant dense<0.000000e+00> : vector<8x512xf32>
    %11 = tpu.matmul %9, %10, %cst_5 {dimension_numbers = #tpu.dot_dimension_numbers<[1], [0], [0], [1], [0, 0, 1, 1], [], []>} : vector<8x256xbf16>, vector<256x512xbf16>, vector<8x512xf32> -> vector<8x512xf32>
    %c1 = arith.constant 1 : index
    %c0_6 = arith.constant 0 : index
    %12 = vector.load %arg3[%c1, %c0_6] : memref<5x512xf32, #tpu.memory_space<vmem>>, vector<1x512xf32>
    %13 = vector.broadcast %12 : vector<1x512xf32> to vector<8x512xf32>
    %14 = arith.addf %11, %13 : vector<8x512xf32>
    %cst_7 = arith.constant 0.000000e+00 : f32
    %15 = vector.broadcast %cst_7 : f32 to vector<8x512xf32>
    %16 = arith.maximumf %14, %15 : vector<8x512xf32>
    %17 = arith.truncf %16 : vector<8x512xf32> to vector<8x512xbf16>
    %c0_8 = arith.constant 0 : index
    %c0_9 = arith.constant 0 : index
    %18 = vector.load %arg2[%c0_8, %c0_9] : memref<1280x512xbf16, #tpu.memory_space<vmem>>, vector<512x512xbf16>
    %cst_10 = arith.constant dense<0.000000e+00> : vector<8x512xf32>
    %19 = tpu.matmul %17, %18, %cst_10 {dimension_numbers = #tpu.dot_dimension_numbers<[1], [0], [0], [1], [0, 0, 1, 1], [], []>} : vector<8x512xbf16>, vector<512x512xbf16>, vector<8x512xf32> -> vector<8x512xf32>
    %c2 = arith.constant 2 : index
    %c0_11 = arith.constant 0 : index
    %20 = vector.load %arg3[%c2, %c0_11] : memref<5x512xf32, #tpu.memory_space<vmem>>, vector<1x512xf32>
    %21 = vector.broadcast %20 : vector<1x512xf32> to vector<8x512xf32>
    %22 = arith.addf %19, %21 : vector<8x512xf32>
    %cst_12 = arith.constant 0.000000e+00 : f32
    %23 = vector.broadcast %cst_12 : f32 to vector<8x512xf32>
    %24 = arith.maximumf %22, %23 : vector<8x512xf32>
    %25 = arith.truncf %24 : vector<8x512xf32> to vector<8x512xbf16>
    %c768_13 = arith.constant 768 : index
    %c0_14 = arith.constant 0 : index
    %26 = vector.load %arg2[%c768_13, %c0_14] : memref<1280x512xbf16, #tpu.memory_space<vmem>>, vector<512x256xbf16>
    %cst_15 = arith.constant dense<0.000000e+00> : vector<8x256xf32>
    %27 = tpu.matmul %25, %26, %cst_15 {dimension_numbers = #tpu.dot_dimension_numbers<[1], [0], [0], [1], [0, 0, 1, 1], [], []>} : vector<8x512xbf16>, vector<512x256xbf16>, vector<8x256xf32> -> vector<8x256xf32>
    %c3 = arith.constant 3 : index
    %c0_16 = arith.constant 0 : index
    %28 = vector.load %arg3[%c3, %c0_16] : memref<5x512xf32, #tpu.memory_space<vmem>>, vector<1x256xf32>
    %29 = vector.broadcast %28 : vector<1x256xf32> to vector<8x256xf32>
    %30 = arith.addf %27, %29 : vector<8x256xf32>
    %cst_17 = arith.constant 0.000000e+00 : f32
    %31 = vector.broadcast %cst_17 : f32 to vector<8x256xf32>
    %32 = arith.maximumf %30, %31 : vector<8x256xf32>
    %33 = arith.truncf %32 : vector<8x256xf32> to vector<8x256xbf16>
    %c800 = arith.constant 800 : index
    %c256_18 = arith.constant 256 : index
    %34 = vector.load %arg2[%c800, %c256_18] : memref<1280x512xbf16, #tpu.memory_space<vmem>>, vector<256x128xbf16>
    %cst_19 = arith.constant dense<0.000000e+00> : vector<8x128xf32>
    %35 = tpu.matmul %33, %34, %cst_19 {dimension_numbers = #tpu.dot_dimension_numbers<[1], [0], [0], [1], [0, 0, 1, 1], [], []>} : vector<8x256xbf16>, vector<256x128xbf16>, vector<8x128xf32> -> vector<8x128xf32>
    %c4 = arith.constant 4 : index
    %c0_20 = arith.constant 0 : index
    %36 = vector.load %arg3[%c4, %c0_20] : memref<5x512xf32, #tpu.memory_space<vmem>>, vector<1x128xf32>
    %37 = vector.broadcast %36 : vector<1x128xf32> to vector<8x128xf32>
    %38 = arith.addf %35, %37 : vector<8x128xf32>
    %c0_21 = arith.constant 0 : index
    %c0_22 = arith.constant 0 : index
    %39 = vector.load %arg4[%c0_21, %c0_22] : memref<8x128xf32, #tpu.memory_space<vmem>>, vector<8x128xf32>
    tpu.vector_store %arg4[%c0_21, %c0_22], %38 {strides = array<i32>} : memref<8x128xf32, #tpu.memory_space<vmem>>, vector<8x128xf32>,
    return
  }
  func.func @transform_0(%arg0: i32) -> (i32, i32) {
    %c0_i32 = arith.constant 0 : i32
    %c0_i32_0 = arith.constant 0 : i32
    return %arg0, %c0_i32 : i32, i32
  }
  func.func @transform_1(%arg0: i32) -> (i32, i32) {
    %c0_i32 = arith.constant 0 : i32
    %c0_i32_0 = arith.constant 0 : i32
    %c0_i32_1 = arith.constant 0 : i32
    return %c0_i32, %c0_i32_0 : i32, i32
  }
  func.func @transform_2(%arg0: i32) -> (i32, i32) {
    %c0_i32 = arith.constant 0 : i32
    %c0_i32_0 = arith.constant 0 : i32
    %c0_i32_1 = arith.constant 0 : i32
    return %c0_i32, %c0_i32_0 : i32, i32
  }
  func.func @transform_3(%arg0: i32) -> (i32, i32) {
    %c0_i32 = arith.constant 0 : i32
    %c0_i32_0 = arith.constant 0 : i32
    return %arg0, %c0_i32 : i32, i32
  }
}

</mosaic_0001>

<llo_original>
// kernel: tpu_custom_call.1
$region0: #{tpu_custom_call.1}
  #allocation0 [shape = 'u32[]', space=smem, size = 0x4, offset = 0x4, fixed_abs, tag = 'smem constant byte address 0x4 - core index']
  #allocation1 [shape = 'u32[144,128]{1,0:T(1,128)}', space=vmem, size = 0x12000, scoped, tag = 'internal scratch']
  %s0 = inlined_call_operand.hbm [shape: f32[8,32], index: 0, kind: input, shape index: {}]
  %s1 = inlined_call_operand.hbm [shape: bf16[1280,512], index: 1, kind: input, shape index: {}]
  %s2 = inlined_call_operand.hbm [shape: f32[5,512], index: 2, kind: input, shape index: {}]
  %s3 = inlined_call_operand.hbm [shape: f32[8,128], index: 3, kind: output, shape index: {}]
  %s4 = sld [smem:[#allocation0]]
  $region34: #{tpu_custom_call.1} parent=0
    _
  %s6 = ssub.s32 1, %s4
  %s7 = scalar_select 0, %s6, %s4
  $region1: #{tpu_custom_call.1} parent=0
    #allocation2 [shape = 'u8[4096]{0}', space=vmem, size = 0x1000, scoped, tag = 'input window, operand 0, single buffered']
    #allocation3 [shape = 's32[1]{0}', space=sflag, size = 0x4, scoped, tag = 'scoped memory for tpu_custom_call.1']
    #allocation4 [shape = 's32[1]{0}', space=sflag, size = 0x4, scoped, tag = 'scoped memory for tpu_custom_call.1']
    #allocation5 [shape = 'u8[1310720]{0}', space=vmem, size = 0x140000, scoped, tag = 'input window, operand 1, single buffered']
    #allocation6 [shape = 's32[1]{0}', space=sflag, size = 0x4, scoped, tag = 'scoped memory for tpu_custom_call.1']
    #allocation7 [shape = 'u8[16384]{0}', space=vmem, size = 0x4000, scoped, tag = 'input window, operand 2, single buffered']
    #allocation8 [shape = 'u8[4096]{0}', space=vmem, size = 0x1000, scoped, tag = 'output window, operand 0, single buffered']
    %8 = vsyncpa [#allocation3], 0
    %9 = vsyncpa [#allocation6], 0
    %10 = vsyncpa [#allocation4], 0
    // Predicated region
    $region2: #{tpu_custom_call.1} parent=1 // pred_check
      _
    $region3: #{tpu_custom_call.1} parent=1 // pred_check_branch
      %12 = sbr.rel (0) target = $region5
    $region4: #{tpu_custom_call.1} parent=1 // pred_region
      %s14 = ssub.s32 128, 128
      %15 = vsyncadd [#allocation3], %s14
      %s17 = sshll.u32 [#allocation2], 4
      %s18 = int_to_ptr.vmem [resolvable:$true] %s17
      %20 = dma.hbm_to_vmem [thread:$0]  %s0, 128, %s18, [#allocation3]
    $region5: #{tpu_custom_call.1} parent=1 // pred_fallthru
      _
    // Predicated region
    $region6: #{tpu_custom_call.1} parent=1 // pred_check
      _
    $region7: #{tpu_custom_call.1} parent=1 // pred_check_branch
      %22 = sbr.rel (0) target = $region9
    $region8: #{tpu_custom_call.1} parent=1 // pred_region
      %s24 = ssub.s32 40960, 40960
      %25 = vsyncadd [#allocation6], %s24
      %s26 = sshll.u32 [#allocation5], 4
      %s27 = int_to_ptr.vmem [resolvable:$true] %s26
      %32 = dma.hbm_to_vmem [thread:$0]  %s1, 40960, %s27, [#allocation6], 256, 256, 16
    $region9: #{tpu_custom_call.1} parent=1 // pred_fallthru
      _
    // Predicated region
    $region10: #{tpu_custom_call.1} parent=1 // pred_check
      _
    $region11: #{tpu_custom_call.1} parent=1 // pred_check_branch
      %34 = sbr.rel (0) target = $region13
    $region12: #{tpu_custom_call.1} parent=1 // pred_region
      %s36 = ssub.s32 512, 512
      %37 = vsyncadd [#allocation6], %s36
      %s39 = sshll.u32 [#allocation7], 4
      %s40 = int_to_ptr.vmem [resolvable:$true] %s39
      %42 = dma.hbm_to_vmem [thread:$0]  %s2, 512, %s40, [#allocation6]
    $region13: #{tpu_custom_call.1} parent=1 // pred_fallthru
      _
    // Predicated region
    $region14: #{tpu_custom_call.1} parent=1 // pred_check
      _
    $region15: #{tpu_custom_call.1} parent=1 // pred_check_branch
      %44 = sbr.rel (0) target = $region17
    $region16: #{tpu_custom_call.1} parent=1 // pred_region
      %45 = dma.done [#allocation3], 128
    $region17: #{tpu_custom_call.1} parent=1 // pred_fallthru
      _
    // Predicated region
    $region18: #{tpu_custom_call.1} parent=1 // pred_check
      _
    $region19: #{tpu_custom_call.1} parent=1 // pred_check_branch
      %47 = sbr.rel (0) target = $region21
    $region20: #{tpu_custom_call.1} parent=1 // pred_region
      %48 = dma.done [#allocation6], 40960
    $region21: #{tpu_custom_call.1} parent=1 // pred_fallthru
      _
    // Predicated region
    $region22: #{tpu_custom_call.1} parent=1 // pred_check
      _
    $region23: #{tpu_custom_call.1} parent=1 // pred_check_branch
      %50 = sbr.rel (0) target = $region25
    $region24: #{tpu_custom_call.1} parent=1 // pred_region
      %51 = dma.done [#allocation6], 512
    $region25: #{tpu_custom_call.1} parent=1 // pred_fallthru
      _
    %v53 = vld [vmem:[#allocation2] sm:$0xff]
    %v54 = vpack.c.bf16 %v53, %v53
    %v55 = vld [vmem:[#allocation5 + $0x608] sm:$0xff]
    %v56 = vld [vmem:[#allocation5 + $0x618] sm:$0xff]
    %v57 = vld [vmem:[#allocation5 + $0x628] sm:$0xff]
    %v58 = vld [vmem:[#allocation5 + $0x638] sm:$0xff]
    %v59 = vld [vmem:[#allocation7] ss:$8 sm:$0x3]
    %v61 = vlaneseq
    %v62 = vshrl.u32 %v61, 7
    %v63 = vsub.s32 0, %v62
    %v64 = vrot.slane %v59, %v63
    %v65 = vlaneseq
    %v66 = vshrl.u32 %v65, 7
    %v67 = vsub.s32 1, %v66
    %v68 = vrot.slane %v59, %v67
    %v75 = vunpack.c.l.b16 %v55
    %v76 = vunpack.c.h.b16 %v55
    %v77 = vunpack.c.l.b16 %v56
    %v78 = vunpack.c.h.b16 %v56
    %v79 = vunpack.c.l.b16 %v57
    %v80 = vunpack.c.h.b16 %v57
    %v81 = vunpack.c.l.b16 %v58
    %v82 = vunpack.c.h.b16 %v58
    %v83 = vpack.c.b16 %v77, %v75
    %v84 = vpack.c.b16 %v78, %v76
    %v85 = vpack.c.b16 %v81, %v79
    %v86 = vpack.c.b16 %v82, %v80
    %vm91 = vcmask 261120
    %v93 = vsel %vm91, %v54, 0
    %95 = vmatprep.subr.bf16.mxu0 %v84
    %96 = vmatpush1.bf16.msra.mxu0 %v83
    %97 = vmatprep.subr.bf16.mxu0 %v86
    %98 = vmatpush1.bf16.msra.mxu0 %v85
    %99 = vmatprep.subr.bf16.mxu0 0
    %100 = vmatpush1.bf16.msra.mxu0 0
    %101 = vmatprep.subr.bf16.mxu0 0
    %102 = vmatpush1.bf16.msra.mxu0 0
    %103 = vmatprep.subr.bf16.mxu0 0
    %104 = vmatpush1.bf16.msra.mxu0 0
    %105 = vmatprep.subr.bf16.mxu0 0
    %106 = vmatpush1.bf16.msra.mxu0 0
    %107 = vmatprep.subr.bf16.mxu0 0
    %108 = vmatpush1.bf16.msra.mxu0 0
    %109 = vmatprep.subr.bf16.mxu0 0
    %110 = vmatpush1.bf16.msra.mxu0 0
    %111 = vmatprep.subr.bf16.mxu0 0
    %112 = vmatpush1.bf16.msra.mxu0 0
    %113 = vmatprep.subr.bf16.mxu0 0
    %114 = vmatpush1.bf16.msra.mxu0 0
    %115 = vmatprep.subr.bf16.mxu0 0
    %116 = vmatpush1.bf16.msra.mxu0 0
    %117 = vmatprep.subr.bf16.mxu0 0
    %118 = vmatpush1.bf16.msra.mxu0 0
    %119 = vmatprep.subr.bf16.mxu0 0
    %120 = vmatpush1.bf16.msra.mxu0 0
    %121 = vmatprep.subr.bf16.mxu0 0
    %122 = vmatpush1.bf16.msra.mxu0 0
    %123 = vmatprep.subr.bf16.mxu0 0
    %124 = vmatpush1.bf16.msra.mxu0 0
    %125 = vmatprep.subr.bf16.mxu0 0
    %126 = vmatpush1.bf16.msra.mxu0 0
    %127 = vmatprep.mubr.bf16.mxu0 0
    %128 = vmatmul.mubr.bf16.gmra.mrb[0].mxu0 %v93
    %v129 = vpop.f32.mrb[0].mxu0
    %v130 = vadd.f32 %v64, %v129
    %v131 = vpop.f32.mrb[0].mxu0
    %v132 = vadd.f32 %v68, %v131
    %v133 = vpop.f32.mrb[0].mxu0
    %v134 = vpop.f32.mrb[0].mxu0
    %135 = vdwg.mxu0
    %v136 = vmax.f32 %v130, 0.0
    %v137 = vmax.f32 %v132, 0.0
    %v138 = vpack.c.bf16 %v136, %v136
    %v139 = vpack.c.bf16 %v137, %v137
    %v140 = vld [vmem:[#allocation5 + $0x400] sm:$0xff]
    %v141 = vld [vmem:[#allocation5 + $0x408] sm:$0xff]
    %v142 = vld [vmem:[#allocation5 + $0x410] sm:$0xff]
    %v143 = vld [vmem:[#allocation5 + $0x418] sm:$0xff]
    %v144 = vld [vmem:[#allocation5 + $0x420] sm:$0xff]
    %v145 = vld [vmem:[#allocation5 + $0x428] sm:$0xff]
    %v146 = vld [vmem:[#allocation5 + $0x430] sm:$0xff]
    %v147 = vld [vmem:[#allocation5 + $0x438] sm:$0xff]
    %v148 = vld [vmem:[#allocation5 + $0x440] sm:$0xff]
    %v149 = vld [vmem:[#allocation5 + $0x448] sm:$0xff]
    %v150 = vld [vmem:[#allocation5 + $0x450] sm:$0xff]
    %v151 = vld [vmem:[#allocation5 + $0x458] sm:$0xff]
    %v152 = vld [vmem:[#allocation5 + $0x460] sm:$0xff]
    %v153 = vld [vmem:[#allocation5 + $0x468] sm:$0xff]
    %v154 = vld [vmem:[#allocation5 + $0x470] sm:$0xff]
    %v155 = vld [vmem:[#allocation5 + $0x478] sm:$0xff]
    %v156 = vld [vmem:[#allocation5 + $0x480] sm:$0xff]
    %v157 = vld [vmem:[#allocation5 + $0x488] sm:$0xff]
    %v158 = vld [vmem:[#allocation5 + $0x490] sm:$0xff]
    %v159 = vld [vmem:[#allocation5 + $0x498] sm:$0xff]
    %v160 = vld [vmem:[#allocation5 + $0x4a0] sm:$0xff]
    %v161 = vld [vmem:[#allocation5 + $0x4a8] sm:$0xff]
    %v162 = vld [vmem:[#allocation5 + $0x4b0] sm:$0xff]
    %v163 = vld [vmem:[#allocation5 + $0x4b8] sm:$0xff]
    %v164 = vld [vmem:[#allocation5 + $0x4c0] sm:$0xff]
    %v165 = vld [vmem:[#allocation5 + $0x4c8] sm:$0xff]
    %v166 = vld [vmem:[#allocation5 + $0x4d0] sm:$0xff]
    %v167 = vld [vmem:[#allocation5 + $0x4d8] sm:$0xff]
    %v168 = vld [vmem:[#allocation5 + $0x4e0] sm:$0xff]
    %v169 = vld [vmem:[#allocation5 + $0x4e8] sm:$0xff]
    %v170 = vld [vmem:[#allocation5 + $0x4f0] sm:$0xff]
    %v171 = vld [vmem:[#allocation5 + $0x4f8] sm:$0xff]
    %v172 = vld [vmem:[#allocation5 + $0x500] sm:$0xff]
    %v173 = vld [vmem:[#allocation5 + $0x508] sm:$0xff]
    %v174 = vld [vmem:[#allocation5 + $0x510] sm:$0xff]
    %v175 = vld [vmem:[#allocation5 + $0x518] sm:$0xff]
    %v176 = vld [vmem:[#allocation5 + $0x520] sm:$0xff]
    %v177 = vld [vmem:[#allocation5 + $0x528] sm:$0xff]
    %v178 = vld [vmem:[#allocation5 + $0x530] sm:$0xff]
    %v179 = vld [vmem:[#allocation5 + $0x538] sm:$0xff]
    %v180 = vld [vmem:[#allocation5 + $0x540] sm:$0xff]
    %v181 = vld [vmem:[#allocation5 + $0x548] sm:$0xff]
    %v182 = vld [vmem:[#allocation5 + $0x550] sm:$0xff]
    %v183 = vld [vmem:[#allocation5 + $0x558] sm:$0xff]
    %v184 = vld [vmem:[#allocation5 + $0x560] sm:$0xff]
    %v185 = vld [vmem:[#allocation5 + $0x568] sm:$0xff]
    %v186 = vld [vmem:[#allocation5 + $0x570] sm:$0xff]
    %v187 = vld [vmem:[#allocation5 + $0x578] sm:$0xff]
    %v188 = vld [vmem:[#allocation5 + $0x580] sm:$0xff]
    %v189 = vld [vmem:[#allocation5 + $0x588] sm:$0xff]
    %v190 = vld [vmem:[#allocation5 + $0x590] sm:$0xff]
    %v191 = vld [vmem:[#allocation5 + $0x598] sm:$0xff]
    %v192 = vld [vmem:[#allocation5 + $0x5a0] sm:$0xff]
    %v193 = vld [vmem:[#allocation5 + $0x5a8] sm:$0xff]
    %v194 = vld [vmem:[#allocation5 + $0x5b0] sm:$0xff]
    %v195 = vld [vmem:[#allocation5 + $0x5b8] sm:$0xff]
    %v196 = vld [vmem:[#allocation5 + $0x5c0] sm:$0xff]
    %v197 = vld [vmem:[#allocation5 + $0x5c8] sm:$0xff]
    %v198 = vld [vmem:[#allocation5 + $0x5d0] sm:$0xff]
    %v199 = vld [vmem:[#allocation5 + $0x5d8] sm:$0xff]
    %v200 = vld [vmem:[#allocation5 + $0x5e0] sm:$0xff]
    %v201 = vld [vmem:[#allocation5 + $0x5e8] sm:$0xff]
    %v202 = vld [vmem:[#allocation5 + $0x5f0] sm:$0xff]
    %v203 = vld [vmem:[#allocation5 + $0x5f8] sm:$0xff]
    %s204 = scalar_lea.vmem [#allocation7], 1
    %v205 = vld [vmem:[%s204] ss:$8 sm:$0xf]
    %v207 = vlaneseq
    %v208 = vshrl.u32 %v207, 7
    %v209 = vsub.s32 0, %v208
    %v210 = vrot.slane %v205, %v209
    %v211 = vlaneseq
    %v212 = vshrl.u32 %v211, 7
    %v213 = vsub.s32 1, %v212
    %v214 = vrot.slane %v205, %v213
    %v215 = vlaneseq
    %v216 = vshrl.u32 %v215, 7
    %v217 = vsub.s32 2, %v216
    %v218 = vrot.slane %v205, %v217
    %v219 = vlaneseq
    %v220 = vshrl.u32 %v219, 7
    %v221 = vsub.s32 3, %v220
    %v222 = vrot.slane %v205, %v221
    %v291 = vunpack.c.l.b16 %v140
    %v292 = vunpack.c.h.b16 %v140
    %v293 = vunpack.c.l.b16 %v141
    %v294 = vunpack.c.h.b16 %v141
    %v295 = vunpack.c.l.b16 %v142
    %v296 = vunpack.c.h.b16 %v142
    %v297 = vunpack.c.l.b16 %v143
    %v298 = vunpack.c.h.b16 %v143
    %v299 = vunpack.c.l.b16 %v144
    %v300 = vunpack.c.h.b16 %v144
    %v301 = vunpack.c.l.b16 %v145
    %v302 = vunpack.c.h.b16 %v145
    %v303 = vunpack.c.l.b16 %v146
    %v304 = vunpack.c.h.b16 %v146
    %v305 = vunpack.c.l.b16 %v147
    %v306 = vunpack.c.h.b16 %v147
    %v307 = vunpack.c.l.b16 %v148
    %v308 = vunpack.c.h.b16 %v148
    %v309 = vunpack.c.l.b16 %v149
    %v310 = vunpack.c.h.b16 %v149
    %v311 = vunpack.c.l.b16 %v150
    %v312 = vunpack.c.h.b16 %v150
    %v313 = vunpack.c.l.b16 %v151
    %v314 = vunpack.c.h.b16 %v151
    %v315 = vunpack.c.l.b16 %v152
    %v316 = vunpack.c.h.b16 %v152
    %v317 = vunpack.c.l.b16 %v153
    %v318 = vunpack.c.h.b16 %v153
    %v319 = vunpack.c.l.b16 %v154
    %v320 = vunpack.c.h.b16 %v154
    %v321 = vunpack.c.l.b16 %v155
    %v322 = vunpack.c.h.b16 %v155
    %v323 = vunpack.c.l.b16 %v156
    %v324 = vunpack.c.h.b16 %v156
    %v325 = vunpack.c.l.b16 %v157
    %v326 = vunpack.c.h.b16 %v157
    %v327 = vunpack.c.l.b16 %v158
    %v328 = vunpack.c.h.b16 %v158
    %v329 = vunpack.c.l.b16 %v159
    %v330 = vunpack.c.h.b16 %v159
    %v331 = vunpack.c.l.b16 %v160
    %v332 = vunpack.c.h.b16 %v160
    %v333 = vunpack.c.l.b16 %v161
    %v334 = vunpack.c.h.b16 %v161
    %v335 = vunpack.c.l.b16 %v162
    %v336 = vunpack.c.h.b16 %v162
    %v337 = vunpack.c.l.b16 %v163
    %v338 = vunpack.c.h.b16 %v163
    %v339 = vunpack.c.l.b16 %v164
    %v340 = vunpack.c.h.b16 %v164
    %v341 = vunpack.c.l.b16 %v165
    %v342 = vunpack.c.h.b16 %v165
    %v343 = vunpack.c.l.b16 %v166
    %v344 = vunpack.c.h.b16 %v166
    %v345 = vunpack.c.l.b16 %v167
    %v346 = vunpack.c.h.b16 %v167
    %v347 = vunpack.c.l.b16 %v168
    %v348 = vunpack.c.h.b16 %v168
    %v349 = vunpack.c.l.b16 %v169
    %v350 = vunpack.c.h.b16 %v169
    %v351 = vunpack.c.l.b16 %v170
    %v352 = vunpack.c.h.b16 %v170
    %v353 = vunpack.c.l.b16 %v171
    %v354 = vunpack.c.h.b16 %v171
    %v355 = vunpack.c.l.b16 %v172
    %v356 = vunpack.c.h.b16 %v172
    %v357 = vunpack.c.l.b16 %v173
    %v358 = vunpack.c.h.b16 %v173
    %v359 = vunpack.c.l.b16 %v174
    %v360 = vunpack.c.h.b16 %v174
    %v361 = vunpack.c.l.b16 %v175
    %v362 = vunpack.c.h.b16 %v175
    %v363 = vunpack.c.l.b16 %v176
    %v364 = vunpack.c.h.b16 %v176
    %v365 = vunpack.c.l.b16 %v177
    %v366 = vunpack.c.h.b16 %v177
    %v367 = vunpack.c.l.b16 %v178
    %v368 = vunpack.c.h.b16 %v178
    %v369 = vunpack.c.l.b16 %v179
    %v370 = vunpack.c.h.b16 %v179
    %v371 = vunpack.c.l.b16 %v180
    %v372 = vunpack.c.h.b16 %v180
    %v373 = vunpack.c.l.b16 %v181
    %v374 = vunpack.c.h.b16 %v181
    %v375 = vunpack.c.l.b16 %v182
    %v376 = vunpack.c.h.b16 %v182
    %v377 = vunpack.c.l.b16 %v183
    %v378 = vunpack.c.h.b16 %v183
    %v379 = vunpack.c.l.b16 %v184
    %v380 = vunpack.c.h.b16 %v184
    %v381 = vunpack.c.l.b16 %v185
    %v382 = vunpack.c.h.b16 %v185
    %v383 = vunpack.c.l.b16 %v186
    %v384 = vunpack.c.h.b16 %v186
    %v385 = vunpack.c.l.b16 %v187
    %v386 = vunpack.c.h.b16 %v187
    %v387 = vunpack.c.l.b16 %v188
    %v388 = vunpack.c.h.b16 %v188
    %v389 = vunpack.c.l.b16 %v189
    %v390 = vunpack.c.h.b16 %v189
    %v391 = vunpack.c.l.b16 %v190
    %v392 = vunpack.c.h.b16 %v190
    %v393 = vunpack.c.l.b16 %v191
    %v394 = vunpack.c.h.b16 %v191
    %v395 = vunpack.c.l.b16 %v192
    %v396 = vunpack.c.h.b16 %v192
    %v397 = vunpack.c.l.b16 %v193
    %v398 = vunpack.c.h.b16 %v193
    %v399 = vunpack.c.l.b16 %v194
    %v400 = vunpack.c.h.b16 %v194
    %v401 = vunpack.c.l.b16 %v195
    %v402 = vunpack.c.h.b16 %v195
    %v403 = vunpack.c.l.b16 %v196
    %v404 = vunpack.c.h.b16 %v196
    %v405 = vunpack.c.l.b16 %v197
    %v406 = vunpack.c.h.b16 %v197
    %v407 = vunpack.c.l.b16 %v198
    %v408 = vunpack.c.h.b16 %v198
    %v409 = vunpack.c.l.b16 %v199
    %v410 = vunpack.c.h.b16 %v199
    %v411 = vunpack.c.l.b16 %v200
    %v412 = vunpack.c.h.b16 %v200
    %v413 = vunpack.c.l.b16 %v201
    %v414 = vunpack.c.h.b16 %v201
    %v415 = vunpack.c.l.b16 %v202
    %v416 = vunpack.c.h.b16 %v202
    %v417 = vunpack.c.l.b16 %v203
    %v418 = vunpack.c.h.b16 %v203
    %v419 = vpack.c.b16 %v295, %v291
    %v420 = vpack.c.b16 %v296, %v292
    %v421 = vpack.c.b16 %v297, %v293
    %v422 = vpack.c.b16 %v298, %v294
    %v423 = vpack.c.b16 %v303, %v299
    %v424 = vpack.c.b16 %v304, %v300
    %v425 = vpack.c.b16 %v305, %v301
    %v426 = vpack.c.b16 %v306, %v302
    %v427 = vpack.c.b16 %v311, %v307
    %v428 = vpack.c.b16 %v312, %v308
    %v429 = vpack.c.b16 %v313, %v309
    %v430 = vpack.c.b16 %v314, %v310
    %v431 = vpack.c.b16 %v319, %v315
    %v432 = vpack.c.b16 %v320, %v316
    %v433 = vpack.c.b16 %v321, %v317
    %v434 = vpack.c.b16 %v322, %v318
    %v435 = vpack.c.b16 %v327, %v323
    %v436 = vpack.c.b16 %v328, %v324
    %v437 = vpack.c.b16 %v329, %v325
    %v438 = vpack.c.b16 %v330, %v326
    %v439 = vpack.c.b16 %v335, %v331
    %v440 = vpack.c.b16 %v336, %v332
    %v441 = vpack.c.b16 %v337, %v333
    %v442 = vpack.c.b16 %v338, %v334
    %v443 = vpack.c.b16 %v343, %v339
    %v444 = vpack.c.b16 %v344, %v340
    %v445 = vpack.c.b16 %v345, %v341
    %v446 = vpack.c.b16 %v346, %v342
    %v447 = vpack.c.b16 %v351, %v347
    %v448 = vpack.c.b16 %v352, %v348
    %v449 = vpack.c.b16 %v353, %v349
    %v450 = vpack.c.b16 %v354, %v350
    %v451 = vpack.c.b16 %v359, %v355
    %v452 = vpack.c.b16 %v360, %v356
    %v453 = vpack.c.b16 %v361, %v357
    %v454 = vpack.c.b16 %v362, %v358
    %v455 = vpack.c.b16 %v367, %v363
    %v456 = vpack.c.b16 %v368, %v364
    %v457 = vpack.c.b16 %v369, %v365
    %v458 = vpack.c.b16 %v370, %v366
    %v459 = vpack.c.b16 %v375, %v371
    %v460 = vpack.c.b16 %v376, %v372
    %v461 = vpack.c.b16 %v377, %v373
    %v462 = vpack.c.b16 %v378, %v374
    %v463 = vpack.c.b16 %v383, %v379
    %v464 = vpack.c.b16 %v384, %v380
    %v465 = vpack.c.b16 %v385, %v381
    %v466 = vpack.c.b16 %v386, %v382
    %v467 = vpack.c.b16 %v391, %v387
    %v468 = vpack.c.b16 %v392, %v388
    %v469 = vpack.c.b16 %v393, %v389
    %v470 = vpack.c.b16 %v394, %v390
    %v471 = vpack.c.b16 %v399, %v395
    %v472 = vpack.c.b16 %v400, %v396
    %v473 = vpack.c.b16 %v401, %v397
    %v474 = vpack.c.b16 %v402, %v398
    %v475 = vpack.c.b16 %v407, %v403
    %v476 = vpack.c.b16 %v408, %v404
    %v477 = vpack.c.b16 %v409, %v405
    %v478 = vpack.c.b16 %v410, %v406
    %v479 = vpack.c.b16 %v415, %v411
    %v480 = vpack.c.b16 %v416, %v412
    %v481 = vpack.c.b16 %v417, %v413
    %v482 = vpack.c.b16 %v418, %v414
    %547 = vmatprep.subr.bf16.mxu0 %v420
    %548 = vmatpush1.bf16.msra.mxu0 %v419
    %549 = vmatprep.subr.bf16.mxu0 %v424
    %550 = vmatpush1.bf16.msra.mxu0 %v423
    %551 = vmatprep.subr.bf16.mxu0 %v428
    %552 = vmatpush1.bf16.msra.mxu0 %v427
    %553 = vmatprep.subr.bf16.mxu0 %v432
    %554 = vmatpush1.bf16.msra.mxu0 %v431
    %555 = vmatprep.subr.bf16.mxu0 %v436
    %556 = vmatpush1.bf16.msra.mxu0 %v435
    %557 = vmatprep.subr.bf16.mxu0 %v440
    %558 = vmatpush1.bf16.msra.mxu0 %v439
    %559 = vmatprep.subr.bf16.mxu0 %v444
    %560 = vmatpush1.bf16.msra.mxu0 %v443
    %561 = vmatprep.subr.bf16.mxu0 %v448
    %562 = vmatpush1.bf16.msra.mxu0 %v447
    %563 = vmatprep.subr.bf16.mxu0 %v452
    %564 = vmatpush1.bf16.msra.mxu0 %v451
    %565 = vmatprep.subr.bf16.mxu0 %v456
    %566 = vmatpush1.bf16.msra.mxu0 %v455
    %567 = vmatprep.subr.bf16.mxu0 %v460
    %568 = vmatpush1.bf16.msra.mxu0 %v459
    %569 = vmatprep.subr.bf16.mxu0 %v464
    %570 = vmatpush1.bf16.msra.mxu0 %v463
    %571 = vmatprep.subr.bf16.mxu0 %v468
    %572 = vmatpush1.bf16.msra.mxu0 %v467
    %573 = vmatprep.subr.bf16.mxu0 %v472
    %574 = vmatpush1.bf16.msra.mxu0 %v471
    %575 = vmatprep.subr.bf16.mxu0 %v476
    %576 = vmatpush1.bf16.msra.mxu0 %v475
    %577 = vmatprep.subr.bf16.mxu0 %v480
    %578 = vmatpush1.bf16.msra.mxu0 %v479
    %579 = vmatprep.mubr.bf16.mxu0 %v139
    %580 = vmatmul.mubr.bf16.gmra.mrb[0].mxu0 %v138
    %v581 = vpop.f32.mrb[0].mxu0
    %v582 = vadd.f32 %v210, %v581
    %v583 = vpop.f32.mrb[0].mxu0
    %v584 = vadd.f32 %v214, %v583
    %v585 = vpop.f32.mrb[0].mxu0
    %v586 = vpop.f32.mrb[0].mxu0
    %587 = vdwg.mxu0
    %588 = vmatprep.subr.bf16.mxu0 %v422
    %589 = vmatpush1.bf16.msra.mxu0 %v421
    %590 = vmatprep.subr.bf16.mxu0 %v426
    %591 = vmatpush1.bf16.msra.mxu0 %v425
    %592 = vmatprep.subr.bf16.mxu0 %v430
    %593 = vmatpush1.bf16.msra.mxu0 %v429
    %594 = vmatprep.subr.bf16.mxu0 %v434
    %595 = vmatpush1.bf16.msra.mxu0 %v433
    %596 = vmatprep.subr.bf16.mxu0 %v438
    %597 = vmatpush1.bf16.msra.mxu0 %v437
    %598 = vmatprep.subr.bf16.mxu0 %v442
    %599 = vmatpush1.bf16.msra.mxu0 %v441
    %600 = vmatprep.subr.bf16.mxu0 %v446
    %601 = vmatpush1.bf16.msra.mxu0 %v445
    %602 = vmatprep.subr.bf16.mxu0 %v450
    %603 = vmatpush1.bf16.msra.mxu0 %v449
    %604 = vmatprep.subr.bf16.mxu0 %v454
    %605 = vmatpush1.bf16.msra.mxu0 %v453
    %606 = vmatprep.subr.bf16.mxu0 %v458
    %607 = vmatpush1.bf16.msra.mxu0 %v457
    %608 = vmatprep.subr.bf16.mxu0 %v462
    %609 = vmatpush1.bf16.msra.mxu0 %v461
    %610 = vmatprep.subr.bf16.mxu0 %v466
    %611 = vmatpush1.bf16.msra.mxu0 %v465
    %612 = vmatprep.subr.bf16.mxu0 %v470
    %613 = vmatpush1.bf16.msra.mxu0 %v469
    %614 = vmatprep.subr.bf16.mxu0 %v474
    %615 = vmatpush1.bf16.msra.mxu0 %v473
    %616 = vmatprep.subr.bf16.mxu0 %v478
    %617 = vmatpush1.bf16.msra.mxu0 %v477
    %618 = vmatprep.subr.bf16.mxu0 %v482
    %619 = vmatpush1.bf16.msra.mxu0 %v481
    %620 = vmatprep.mubr.bf16.mxu0 %v139
    %621 = vmatmul.mubr.bf16.gmra.mrb[0].mxu0 %v138
    %v622 = vpop.f32.mrb[0].mxu0
    %v623 = vadd.f32 %v218, %v622
    %v624 = vpop.f32.mrb[0].mxu0
    %v625 = vadd.f32 %v222, %v624
    %v626 = vpop.f32.mrb[0].mxu0
    %v627 = vpop.f32.mrb[0].mxu0
    %628 = vdwg.mxu0
    %v629 = vmax.f32 %v582, 0.0
    %v630 = vmax.f32 %v584, 0.0
    %v631 = vmax.f32 %v623, 0.0
    %v632 = vmax.f32 %v625, 0.0
    %v633 = vpack.c.bf16 %v629, %v629
    %v634 = vpack.c.bf16 %v630, %v630
    %v635 = vpack.c.bf16 %v631, %v631
    %v636 = vpack.c.bf16 %v632, %v632
    %v637 = vld [vmem:[#allocation5] sm:$0xff]
    %v638 = vld [vmem:[#allocation5 + $0x8] sm:$0xff]
    %v639 = vld [vmem:[#allocation5 + $0x10] sm:$0xff]
    %v640 = vld [vmem:[#allocation5 + $0x18] sm:$0xff]
    %v641 = vld [vmem:[#allocation5 + $0x20] sm:$0xff]
    %v642 = vld [vmem:[#allocation5 + $0x28] sm:$0xff]
    %v643 = vld [vmem:[#allocation5 + $0x30] sm:$0xff]
    %v644 = vld [vmem:[#allocation5 + $0x38] sm:$0xff]
    %v645 = vld [vmem:[#allocation5 + $0x40] sm:$0xff]
    %v646 = vld [vmem:[#allocation5 + $0x48] sm:$0xff]
    %v647 = vld [vmem:[#allocation5 + $0x50] sm:$0xff]
    %v648 = vld [vmem:[#allocation5 + $0x58] sm:$0xff]
    %v649 = vld [vmem:[#allocation5 + $0x60] sm:$0xff]
    %v650 = vld [vmem:[#allocation5 + $0x68] sm:$0xff]
    %v651 = vld [vmem:[#allocation5 + $0x70] sm:$0xff]
    %v652 = vld [vmem:[#allocation5 + $0x78] sm:$0xff]
    %v653 = vld [vmem:[#allocation5 + $0x80] sm:$0xff]
    %v654 = vld [vmem:[#allocation5 + $0x88] sm:$0xff]
    %v655 = vld [vmem:[#allocation5 + $0x90] sm:$0xff]
    %v656 = vld [vmem:[#allocation5 + $0x98] sm:$0xff]
    %v657 = vld [vmem:[#allocation5 + $0xa0] sm:$0xff]
    %v658 = vld [vmem:[#allocation5 + $0xa8] sm:$0xff]
    %v659 = vld [vmem:[#allocation5 + $0xb0] sm:$0xff]
    %v660 = vld [vmem:[#allocation5 + $0xb8] sm:$0xff]
    %v661 = vld [vmem:[#allocation5 + $0xc0] sm:$0xff]
    %v662 = vld [vmem:[#allocation5 + $0xc8] sm:$0xff]
    %v663 = vld [vmem:[#allocation5 + $0xd0] sm:$0xff]
    %v664 = vld [vmem:[#allocation5 + $0xd8] sm:$0xff]
    %v665 = vld [vmem:[#allocation5 + $0xe0] sm:$0xff]
    %v666 = vld [vmem:[#allocation5 + $0xe8] sm:$0xff]
    %v667 = vld [vmem:[#allocation5 + $0xf0] sm:$0xff]
    %v668 = vld [vmem:[#allocation5 + $0xf8] sm:$0xff]
    %v669 = vld [vmem:[#allocation5 + $0x100] sm:$0xff]
    %v670 = vld [vmem:[#allocation5 + $0x108] sm:$0xff]
    %v671 = vld [vmem:[#allocation5 + $0x110] sm:$0xff]
    %v672 = vld [vmem:[#allocation5 + $0x118] sm:$0xff]
    %v673 = vld [vmem:[#allocation5 + $0x120] sm:$0xff]
    %v674 = vld [vmem:[#allocation5 + $0x128] sm:$0xff]
    %v675 = vld [vmem:[#allocation5 + $0x130] sm:$0xff]
    %v676 = vld [vmem:[#allocation5 + $0x138] sm:$0xff]
    %v677 = vld [vmem:[#allocation5 + $0x140] sm:$0xff]
    %v678 = vld [vmem:[#allocation5 + $0x148] sm:$0xff]
    %v679 = vld [vmem:[#allocation5 + $0x150] sm:$0xff]
    %v680 = vld [vmem:[#allocation5 + $0x158] sm:$0xff]
    %v681 = vld [vmem:[#allocation5 + $0x160] sm:$0xff]
    %v682 = vld [vmem:[#allocation5 + $0x168] sm:$0xff]
    %v683 = vld [vmem:[#allocation5 + $0x170] sm:$0xff]
    %v684 = vld [vmem:[#allocation5 + $0x178] sm:$0xff]
    %v685 = vld [vmem:[#allocation5 + $0x180] sm:$0xff]
    %v686 = vld [vmem:[#allocation5 + $0x188] sm:$0xff]
    %v687 = vld [vmem:[#allocation5 + $0x190] sm:$0xff]
    %v688 = vld [vmem:[#allocation5 + $0x198] sm:$0xff]
    %v689 = vld [vmem:[#allocation5 + $0x1a0] sm:$0xff]
    %v690 = vld [vmem:[#allocation5 + $0x1a8] sm:$0xff]
    %v691 = vld [vmem:[#allocation5 + $0x1b0] sm:$0xff]
    %v692 = vld [vmem:[#allocation5 + $0x1b8] sm:$0xff]
    %v693 = vld [vmem:[#allocation5 + $0x1c0] sm:$0xff]
    %v694 = vld [vmem:[#allocation5 + $0x1c8] sm:$0xff]
    %v695 = vld [vmem:[#allocation5 + $0x1d0] sm:$0xff]
    %v696 = vld [vmem:[#allocation5 + $0x1d8] sm:$0xff]
    %v697 = vld [vmem:[#allocation5 + $0x1e0] sm:$0xff]
    %v698 = vld [vmem:[#allocation5 + $0x1e8] sm:$0xff]
    %v699 = vld [vmem:[#allocation5 + $0x1f0] sm:$0xff]
    %v700 = vld [vmem:[#allocation5 + $0x1f8] sm:$0xff]
    %v701 = vld [vmem:[#allocation5 + $0x200] sm:$0xff]
    %v702 = vld [vmem:[#allocation5 + $0x208] sm:$0xff]
    %v703 = vld [vmem:[#allocation5 + $0x210] sm:$0xff]
    %v704 = vld [vmem:[#allocation5 + $0x218] sm:$0xff]
    %v705 = vld [vmem:[#allocation5 + $0x220] sm:$0xff]
    %v706 = vld [vmem:[#allocation5 + $0x228] sm:$0xff]
    %v707 = vld [vmem:[#allocation5 + $0x230] sm:$0xff]
    %v708 = vld [vmem:[#allocation5 + $0x238] sm:$0xff]
    %v709 = vld [vmem:[#allocation5 + $0x240] sm:$0xff]
    %v710 = vld [vmem:[#allocation5 + $0x248] sm:$0xff]
    %v711 = vld [vmem:[#allocation5 + $0x250] sm:$0xff]
    %v712 = vld [vmem:[#allocation5 + $0x258] sm:$0xff]
    %v713 = vld [vmem:[#allocation5 + $0x260] sm:$0xff]
    %v714 = vld [vmem:[#allocation5 + $0x268] sm:$0xff]
    %v715 = vld [vmem:[#allocation5 + $0x270] sm:$0xff]
    %v716 = vld [vmem:[#allocation5 + $0x278] sm:$0xff]
    %v717 = vld [vmem:[#allocation5 + $0x280] sm:$0xff]
    %v718 = vld [vmem:[#allocation5 + $0x288] sm:$0xff]
    %v719 = vld [vmem:[#allocation5 + $0x290] sm:$0xff]
    %v720 = vld [vmem:[#allocation5 + $0x298] sm:$0xff]
    %v721 = vld [vmem:[#allocation5 + $0x2a0] sm:$0xff]
    %v722 = vld [vmem:[#allocation5 + $0x2a8] sm:$0xff]
    %v723 = vld [vmem:[#allocation5 + $0x2b0] sm:$0xff]
    %v724 = vld [vmem:[#allocation5 + $0x2b8] sm:$0xff]
    %v725 = vld [vmem:[#allocation5 + $0x2c0] sm:$0xff]
    %v726 = vld [vmem:[#allocation5 + $0x2c8] sm:$0xff]
    %v727 = vld [vmem:[#allocation5 + $0x2d0] sm:$0xff]
    %v728 = vld [vmem:[#allocation5 + $0x2d8] sm:$0xff]
    %v729 = vld [vmem:[#allocation5 + $0x2e0] sm:$0xff]
    %v730 = vld [vmem:[#allocation5 + $0x2e8] sm:$0xff]
    %v731 = vld [vmem:[#allocation5 + $0x2f0] sm:$0xff]
    %v732 = vld [vmem:[#allocation5 + $0x2f8] sm:$0xff]
    %v733 = vld [vmem:[#allocation5 + $0x300] sm:$0xff]
    %v734 = vld [vmem:[#allocation5 + $0x308] sm:$0xff]
    %v735 = vld [vmem:[#allocation5 + $0x310] sm:$0xff]
    %v736 = vld [vmem:[#allocation5 + $0x318] sm:$0xff]
    %v737 = vld [vmem:[#allocation5 + $0x320] sm:$0xff]
    %v738 = vld [vmem:[#allocation5 + $0x328] sm:$0xff]
    %v739 = vld [vmem:[#allocation5 + $0x330] sm:$0xff]
    %v740 = vld [vmem:[#allocation5 + $0x338] sm:$0xff]
    %v741 = vld [vmem:[#allocation5 + $0x340] sm:$0xff]
    %v742 = vld [vmem:[#allocation5 + $0x348] sm:$0xff]
    %v743 = vld [vmem:[#allocation5 + $0x350] sm:$0xff]
    %v744 = vld [vmem:[#allocation5 + $0x358] sm:$0xff]
    %v745 = vld [vmem:[#allocation5 + $0x360] sm:$0xff]
    %v746 = vld [vmem:[#allocation5 + $0x368] sm:$0xff]
    %v747 = vld [vmem:[#allocation5 + $0x370] sm:$0xff]
    %v748 = vld [vmem:[#allocation5 + $0x378] sm:$0xff]
    %v749 = vld [vmem:[#allocation5 + $0x380] sm:$0xff]
    %v750 = vld [vmem:[#allocation5 + $0x388] sm:$0xff]
    %v751 = vld [vmem:[#allocation5 + $0x390] sm:$0xff]
    %v752 = vld [vmem:[#allocation5 + $0x398] sm:$0xff]
    %v753 = vld [vmem:[#allocation5 + $0x3a0] sm:$0xff]
    %v754 = vld [vmem:[#allocation5 + $0x3a8] sm:$0xff]
    %v755 = vld [vmem:[#allocation5 + $0x3b0] sm:$0xff]
    %v756 = vld [vmem:[#allocation5 + $0x3b8] sm:$0xff]
    %v757 = vld [vmem:[#allocation5 + $0x3c0] sm:$0xff]
    %v758 = vld [vmem:[#allocation5 + $0x3c8] sm:$0xff]
    %v759 = vld [vmem:[#allocation5 + $0x3d0] sm:$0xff]
    %v760 = vld [vmem:[#allocation5 + $0x3d8] sm:$0xff]
    %v761 = vld [vmem:[#allocation5 + $0x3e0] sm:$0xff]
    %v762 = vld [vmem:[#allocation5 + $0x3e8] sm:$0xff]
    %v763 = vld [vmem:[#allocation5 + $0x3f0] sm:$0xff]
    %v764 = vld [vmem:[#allocation5 + $0x3f8] sm:$0xff]
    %s765 = scalar_lea.vmem [#allocation7], 2
    %v766 = vld [vmem:[%s765] ss:$8 sm:$0xf]
    %v768 = vlaneseq
    %v769 = vshrl.u32 %v768, 7
    %v770 = vsub.s32 0, %v769
    %v771 = vrot.slane %v766, %v770
    %v772 = vlaneseq
    %v773 = vshrl.u32 %v772, 7
    %v774 = vsub.s32 1, %v773
    %v775 = vrot.slane %v766, %v774
    %v776 = vlaneseq
    %v777 = vshrl.u32 %v776, 7
    %v778 = vsub.s32 2, %v777
    %v779 = vrot.slane %v766, %v778
    %v780 = vlaneseq
    %v781 = vshrl.u32 %v780, 7
    %v782 = vsub.s32 3, %v781
    %v783 = vrot.slane %v766, %v782
    %v916 = vunpack.c.l.b16 %v637
    %v917 = vunpack.c.h.b16 %v637
    %v918 = vunpack.c.l.b16 %v638
    %v919 = vunpack.c.h.b16 %v638
    %v920 = vunpack.c.l.b16 %v639
    %v921 = vunpack.c.h.b16 %v639
    %v922 = vunpack.c.l.b16 %v640
    %v923 = vunpack.c.h.b16 %v640
    %v924 = vunpack.c.l.b16 %v641
    %v925 = vunpack.c.h.b16 %v641
    %v926 = vunpack.c.l.b16 %v642
    %v927 = vunpack.c.h.b16 %v642
    %v928 = vunpack.c.l.b16 %v643
    %v929 = vunpack.c.h.b16 %v643
    %v930 = vunpack.c.l.b16 %v644
    %v931 = vunpack.c.h.b16 %v644
    %v932 = vunpack.c.l.b16 %v645
    %v933 = vunpack.c.h.b16 %v645
    %v934 = vunpack.c.l.b16 %v646
    %v935 = vunpack.c.h.b16 %v646
    %v936 = vunpack.c.l.b16 %v647
    %v937 = vunpack.c.h.b16 %v647
    %v938 = vunpack.c.l.b16 %v648
    %v939 = vunpack.c.h.b16 %v648
    %v940 = vunpack.c.l.b16 %v649
    %v941 = vunpack.c.h.b16 %v649
    %v942 = vunpack.c.l.b16 %v650
    %v943 = vunpack.c.h.b16 %v650
    %v944 = vunpack.c.l.b16 %v651
    %v945 = vunpack.c.h.b16 %v651
    %v946 = vunpack.c.l.b16 %v652
    %v947 = vunpack.c.h.b16 %v652
    %v948 = vunpack.c.l.b16 %v653
    %v949 = vunpack.c.h.b16 %v653
    %v950 = vunpack.c.l.b16 %v654
    %v951 = vunpack.c.h.b16 %v654
    %v952 = vunpack.c.l.b16 %v655
    %v953 = vunpack.c.h.b16 %v655
    %v954 = vunpack.c.l.b16 %v656
    %v955 = vunpack.c.h.b16 %v656
    %v956 = vunpack.c.l.b16 %v657
    %v957 = vunpack.c.h.b16 %v657
    %v958 = vunpack.c.l.b16 %v658
    %v959 = vunpack.c.h.b16 %v658
    %v960 = vunpack.c.l.b16 %v659
    %v961 = vunpack.c.h.b16 %v659
    %v962 = vunpack.c.l.b16 %v660
    %v963 = vunpack.c.h.b16 %v660
    %v964 = vunpack.c.l.b16 %v661
    %v965 = vunpack.c.h.b16 %v661
    %v966 = vunpack.c.l.b16 %v662
    %v967 = vunpack.c.h.b16 %v662
    %v968 = vunpack.c.l.b16 %v663
    %v969 = vunpack.c.h.b16 %v663
    %v970 = vunpack.c.l.b16 %v664
    %v971 = vunpack.c.h.b16 %v664
    %v972 = vunpack.c.l.b16 %v665
    %v973 = vunpack.c.h.b16 %v665
    %v974 = vunpack.c.l.b16 %v666
    %v975 = vunpack.c.h.b16 %v666
    %v976 = vunpack.c.l.b16 %v667
    %v977 = vunpack.c.h.b16 %v667
    %v978 = vunpack.c.l.b16 %v668
    %v979 = vunpack.c.h.b16 %v668
    %v980 = vunpack.c.l.b16 %v669
    %v981 = vunpack.c.h.b16 %v669
    %v982 = vunpack.c.l.b16 %v670
    %v983 = vunpack.c.h.b16 %v670
    %v984 = vunpack.c.l.b16 %v671
    %v985 = vunpack.c.h.b16 %v671
    %v986 = vunpack.c.l.b16 %v672
    %v987 = vunpack.c.h.b16 %v672
    %v988 = vunpack.c.l.b16 %v673
    %v989 = vunpack.c.h.b16 %v673
    %v990 = vunpack.c.l.b16 %v674
    %v991 = vunpack.c.h.b16 %v674
    %v992 = vunpack.c.l.b16 %v675
    %v993 = vunpack.c.h.b16 %v675
    %v994 = vunpack.c.l.b16 %v676
    %v995 = vunpack.c.h.b16 %v676
    %v996 = vunpack.c.l.b16 %v677
    %v997 = vunpack.c.h.b16 %v677
    %v998 = vunpack.c.l.b16 %v678
    %v999 = vunpack.c.h.b16 %v678
    %v1000 = vunpack.c.l.b16 %v679
    %v1001 = vunpack.c.h.b16 %v679
    %v1002 = vunpack.c.l.b16 %v680
    %v1003 = vunpack.c.h.b16 %v680
    %v1004 = vunpack.c.l.b16 %v681
    %v1005 = vunpack.c.h.b16 %v681
    %v1006 = vunpack.c.l.b16 %v682
    %v1007 = vunpack.c.h.b16 %v682
    %v1008 = vunpack.c.l.b16 %v683
    %v1009 = vunpack.c.h.b16 %v683
    %v1010 = vunpack.c.l.b16 %v684
    %v1011 = vunpack.c.h.b16 %v684
    %v1012 = vunpack.c.l.b16 %v685
    %v1013 = vunpack.c.h.b16 %v685
    %v1014 = vunpack.c.l.b16 %v686
    %v1015 = vunpack.c.h.b16 %v686
    %v1016 = vunpack.c.l.b16 %v687
    %v1017 = vunpack.c.h.b16 %v687
    %v1018 = vunpack.c.l.b16 %v688
    %v1019 = vunpack.c.h.b16 %v688
    %v1020 = vunpack.c.l.b16 %v689
    %v1021 = vunpack.c.h.b16 %v689
    %v1022 = vunpack.c.l.b16 %v690
    %v1023 = vunpack.c.h.b16 %v690
    %v1024 = vunpack.c.l.b16 %v691
    %v1025 = vunpack.c.h.b16 %v691
    %v1026 = vunpack.c.l.b16 %v692
    %v1027 = vunpack.c.h.b16 %v692
    %v1028 = vunpack.c.l.b16 %v693
    %v1029 = vunpack.c.h.b16 %v693
    %v1030 = vunpack.c.l.b16 %v694
    %v1031 = vunpack.c.h.b16 %v694
    %v1032 = vunpack.c.l.b16 %v695
    %v1033 = vunpack.c.h.b16 %v695
    %v1034 = vunpack.c.l.b16 %v696
    %v1035 = vunpack.c.h.b16 %v696
    %v1036 = vunpack.c.l.b16 %v697
    %v1037 = vunpack.c.h.b16 %v697
    %v1038 = vunpack.c.l.b16 %v698
    %v1039 = vunpack.c.h.b16 %v698
    %v1040 = vunpack.c.l.b16 %v699
    %v1041 = vunpack.c.h.b16 %v699
    %v1042 = vunpack.c.l.b16 %v700
    %v1043 = vunpack.c.h.b16 %v700
    %v1044 = vunpack.c.l.b16 %v701
    %v1045 = vunpack.c.h.b16 %v701
    %v1046 = vunpack.c.l.b16 %v702
    %v1047 = vunpack.c.h.b16 %v702
    %v1048 = vunpack.c.l.b16 %v703
    %v1049 = vunpack.c.h.b16 %v703
    %v1050 = vunpack.c.l.b16 %v704
    %v1051 = vunpack.c.h.b16 %v704
    %v1052 = vunpack.c.l.b16 %v705
    %v1053 = vunpack.c.h.b16 %v705
    %v1054 = vunpack.c.l.b16 %v706
    %v1055 = vunpack.c.h.b16 %v706
    %v1056 = vunpack.c.l.b16 %v707
    %v1057 = vunpack.c.h.b16 %v707
    %v1058 = vunpack.c.l.b16 %v708
    %v1059 = vunpack.c.h.b16 %v708
    %v1060 = vunpack.c.l.b16 %v709
    %v1061 = vunpack.c.h.b16 %v709
    %v1062 = vunpack.c.l.b16 %v710
    %v1063 = vunpack.c.h.b16 %v710
    %v1064 = vunpack.c.l.b16 %v711
    %v1065 = vunpack.c.h.b16 %v711
    %v1066 = vunpack.c.l.b16 %v712
    %v1067 = vunpack.c.h.b16 %v712
    %v1068 = vunpack.c.l.b16 %v713
    %v1069 = vunpack.c.h.b16 %v713
    %v1070 = vunpack.c.l.b16 %v714
    %v1071 = vunpack.c.h.b16 %v714
    %v1072 = vunpack.c.l.b16 %v715
    %v1073 = vunpack.c.h.b16 %v715
    %v1074 = vunpack.c.l.b16 %v716
    %v1075 = vunpack.c.h.b16 %v716
    %v1076 = vunpack.c.l.b16 %v717
    %v1077 = vunpack.c.h.b16 %v717
    %v1078 = vunpack.c.l.b16 %v718
    %v1079 = vunpack.c.h.b16 %v718
    %v1080 = vunpack.c.l.b16 %v719
    %v1081 = vunpack.c.h.b16 %v719
    %v1082 = vunpack.c.l.b16 %v720
    %v1083 = vunpack.c.h.b16 %v720
    %v1084 = vunpack.c.l.b16 %v721
    %v1085 = vunpack.c.h.b16 %v721
    %v1086 = vunpack.c.l.b16 %v722
    %v1087 = vunpack.c.h.b16 %v722
    %v1088 = vunpack.c.l.b16 %v723
    %v1089 = vunpack.c.h.b16 %v723
    %v1090 = vunpack.c.l.b16 %v724
    %v1091 = vunpack.c.h.b16 %v724
    %v1092 = vunpack.c.l.b16 %v725
    %v1093 = vunpack.c.h.b16 %v725
    %v1094 = vunpack.c.l.b16 %v726
    %v1095 = vunpack.c.h.b16 %v726
    %v1096 = vunpack.c.l.b16 %v727
    %v1097 = vunpack.c.h.b16 %v727
    %v1098 = vunpack.c.l.b16 %v728
    %v1099 = vunpack.c.h.b16 %v728
    %v1100 = vunpack.c.l.b16 %v729
    %v1101 = vunpack.c.h.b16 %v729
    %v1102 = vunpack.c.l.b16 %v730
    %v1103 = vunpack.c.h.b16 %v730
    %v1104 = vunpack.c.l.b16 %v731
    %v1105 = vunpack.c.h.b16 %v731
    %v1106 = vunpack.c.l.b16 %v732
    %v1107 = vunpack.c.h.b16 %v732
    %v1108 = vunpack.c.l.b16 %v733
    %v1109 = vunpack.c.h.b16 %v733
    %v1110 = vunpack.c.l.b16 %v734
    %v1111 = vunpack.c.h.b16 %v734
    %v1112 = vunpack.c.l.b16 %v735
    %v1113 = vunpack.c.h.b16 %v735
    %v1114 = vunpack.c.l.b16 %v736
    %v1115 = vunpack.c.h.b16 %v736
    %v1116 = vunpack.c.l.b16 %v737
    %v1117 = vunpack.c.h.b16 %v737
    %v1118 = vunpack.c.l.b16 %v738
    %v1119 = vunpack.c.h.b16 %v738
    %v1120 = vunpack.c.l.b16 %v739
    %v1121 = vunpack.c.h.b16 %v739
    %v1122 = vunpack.c.l.b16 %v740
    %v1123 = vunpack.c.h.b16 %v740
    %v1124 = vunpack.c.l.b16 %v741
    %v1125 = vunpack.c.h.b16 %v741
    %v1126 = vunpack.c.l.b16 %v742
    %v1127 = vunpack.c.h.b16 %v742
    %v1128 = vunpack.c.l.b16 %v743
    %v1129 = vunpack.c.h.b16 %v743
    %v1130 = vunpack.c.l.b16 %v744
    %v1131 = vunpack.c.h.b16 %v744
    %v1132 = vunpack.c.l.b16 %v745
    %v1133 = vunpack.c.h.b16 %v745
    %v1134 = vunpack.c.l.b16 %v746
    %v1135 = vunpack.c.h.b16 %v746
    %v1136 = vunpack.c.l.b16 %v747
    %v1137 = vunpack.c.h.b16 %v747
    %v1138 = vunpack.c.l.b16 %v748
    %v1139 = vunpack.c.h.b16 %v748
    %v1140 = vunpack.c.l.b16 %v749
    %v1141 = vunpack.c.h.b16 %v749
    %v1142 = vunpack.c.l.b16 %v750
    %v1143 = vunpack.c.h.b16 %v750
    %v1144 = vunpack.c.l.b16 %v751
    %v1145 = vunpack.c.h.b16 %v751
    %v1146 = vunpack.c.l.b16 %v752
    %v1147 = vunpack.c.h.b16 %v752
    %v1148 = vunpack.c.l.b16 %v753
    %v1149 = vunpack.c.h.b16 %v753
    %v1150 = vunpack.c.l.b16 %v754
    %v1151 = vunpack.c.h.b16 %v754
    %v1152 = vunpack.c.l.b16 %v755
    %v1153 = vunpack.c.h.b16 %v755
    %v1154 = vunpack.c.l.b16 %v756
    %v1155 = vunpack.c.h.b16 %v756
    %v1156 = vunpack.c.l.b16 %v757
    %v1157 = vunpack.c.h.b16 %v757
    %v1158 = vunpack.c.l.b16 %v758
    %v1159 = vunpack.c.h.b16 %v758
    %v1160 = vunpack.c.l.b16 %v759
    %v1161 = vunpack.c.h.b16 %v759
    %v1162 = vunpack.c.l.b16 %v760
    %v1163 = vunpack.c.h.b16 %v760
    %v1164 = vunpack.c.l.b16 %v761
    %v1165 = vunpack.c.h.b16 %v761
    %v1166 = vunpack.c.l.b16 %v762
    %v1167 = vunpack.c.h.b16 %v762
    %v1168 = vunpack.c.l.b16 %v763
    %v1169 = vunpack.c.h.b16 %v763
    %v1170 = vunpack.c.l.b16 %v764
    %v1171 = vunpack.c.h.b16 %v764
    %v1172 = vpack.c.b16 %v920, %v916
    %v1173 = vpack.c.b16 %v921, %v917
    %v1174 = vpack.c.b16 %v922, %v918
    %v1175 = vpack.c.b16 %v923, %v919
    %v1176 = vpack.c.b16 %v928, %v924
    %v1177 = vpack.c.b16 %v929, %v925
    %v1178 = vpack.c.b16 %v930, %v926
    %v1179 = vpack.c.b16 %v931, %v927
    %v1180 = vpack.c.b16 %v936, %v932
    %v1181 = vpack.c.b16 %v937, %v933
    %v1182 = vpack.c.b16 %v938, %v934
    %v1183 = vpack.c.b16 %v939, %v935
    %v1184 = vpack.c.b16 %v944, %v940
    %v1185 = vpack.c.b16 %v945, %v941
    %v1186 = vpack.c.b16 %v946, %v942
    %v1187 = vpack.c.b16 %v947, %v943
    %v1188 = vpack.c.b16 %v952, %v948
    %v1189 = vpack.c.b16 %v953, %v949
    %v1190 = vpack.c.b16 %v954, %v950
    %v1191 = vpack.c.b16 %v955, %v951
    %v1192 = vpack.c.b16 %v960, %v956
    %v1193 = vpack.c.b16 %v961, %v957
    %v1194 = vpack.c.b16 %v962, %v958
    %v1195 = vpack.c.b16 %v963, %v959
    %v1196 = vpack.c.b16 %v968, %v964
    %v1197 = vpack.c.b16 %v969, %v965
    %v1198 = vpack.c.b16 %v970, %v966
    %v1199 = vpack.c.b16 %v971, %v967
    %v1200 = vpack.c.b16 %v976, %v972
    %v1201 = vpack.c.b16 %v977, %v973
    %v1202 = vpack.c.b16 %v978, %v974
    %v1203 = vpack.c.b16 %v979, %v975
    %v1204 = vpack.c.b16 %v984, %v980
    %v1205 = vpack.c.b16 %v985, %v981
    %v1206 = vpack.c.b16 %v986, %v982
    %v1207 = vpack.c.b16 %v987, %v983
    %v1208 = vpack.c.b16 %v992, %v988
    %v1209 = vpack.c.b16 %v993, %v989
    %v1210 = vpack.c.b16 %v994, %v990
    %v1211 = vpack.c.b16 %v995, %v991
    %v1212 = vpack.c.b16 %v1000, %v996
    %v1213 = vpack.c.b16 %v1001, %v997
    %v1214 = vpack.c.b16 %v1002, %v998
    %v1215 = vpack.c.b16 %v1003, %v999
    %v1216 = vpack.c.b16 %v1008, %v1004
    %v1217 = vpack.c.b16 %v1009, %v1005
    %v1218 = vpack.c.b16 %v1010, %v1006
    %v1219 = vpack.c.b16 %v1011, %v1007
    %v1220 = vpack.c.b16 %v1016, %v1012
    %v1221 = vpack.c.b16 %v1017, %v1013
    %v1222 = vpack.c.b16 %v1018, %v1014
    %v1223 = vpack.c.b16 %v1019, %v1015
    %v1224 = vpack.c.b16 %v1024, %v1020
    %v1225 = vpack.c.b16 %v1025, %v1021
    %v1226 = vpack.c.b16 %v1026, %v1022
    %v1227 = vpack.c.b16 %v1027, %v1023
    %v1228 = vpack.c.b16 %v1032, %v1028
    %v1229 = vpack.c.b16 %v1033, %v1029
    %v1230 = vpack.c.b16 %v1034, %v1030
    %v1231 = vpack.c.b16 %v1035, %v1031
    %v1232 = vpack.c.b16 %v1040, %v1036
    %v1233 = vpack.c.b16 %v1041, %v1037
    %v1234 = vpack.c.b16 %v1042, %v1038
    %v1235 = vpack.c.b16 %v1043, %v1039
    %v1236 = vpack.c.b16 %v1048, %v1044
    %v1237 = vpack.c.b16 %v1049, %v1045
    %v1238 = vpack.c.b16 %v1050, %v1046
    %v1239 = vpack.c.b16 %v1051, %v1047
    %v1240 = vpack.c.b16 %v1056, %v1052
    %v1241 = vpack.c.b16 %v1057, %v1053
    %v1242 = vpack.c.b16 %v1058, %v1054
    %v1243 = vpack.c.b16 %v1059, %v1055
    %v1244 = vpack.c.b16 %v1064, %v1060
    %v1245 = vpack.c.b16 %v1065, %v1061
    %v1246 = vpack.c.b16 %v1066, %v1062
    %v1247 = vpack.c.b16 %v1067, %v1063
    %v1248 = vpack.c.b16 %v1072, %v1068
    %v1249 = vpack.c.b16 %v1073, %v1069
    %v1250 = vpack.c.b16 %v1074, %v1070
    %v1251 = vpack.c.b16 %v1075, %v1071
    %v1252 = vpack.c.b16 %v1080, %v1076
    %v1253 = vpack.c.b16 %v1081, %v1077
    %v1254 = vpack.c.b16 %v1082, %v1078
    %v1255 = vpack.c.b16 %v1083, %v1079
    %v1256 = vpack.c.b16 %v1088, %v1084
    %v1257 = vpack.c.b16 %v1089, %v1085
    %v1258 = vpack.c.b16 %v1090, %v1086
    %v1259 = vpack.c.b16 %v1091, %v1087
    %v1260 = vpack.c.b16 %v1096, %v1092
    %v1261 = vpack.c.b16 %v1097, %v1093
    %v1262 = vpack.c.b16 %v1098, %v1094
    %v1263 = vpack.c.b16 %v1099, %v1095
    %v1264 = vpack.c.b16 %v1104, %v1100
    %v1265 = vpack.c.b16 %v1105, %v1101
    %v1266 = vpack.c.b16 %v1106, %v1102
    %v1267 = vpack.c.b16 %v1107, %v1103
    %v1268 = vpack.c.b16 %v1112, %v1108
    %v1269 = vpack.c.b16 %v1113, %v1109
    %v1270 = vpack.c.b16 %v1114, %v1110
    %v1271 = vpack.c.b16 %v1115, %v1111
    %v1272 = vpack.c.b16 %v1120, %v1116
    %v1273 = vpack.c.b16 %v1121, %v1117
    %v1274 = vpack.c.b16 %v1122, %v1118
    %v1275 = vpack.c.b16 %v1123, %v1119
    %v1276 = vpack.c.b16 %v1128, %v1124
    %v1277 = vpack.c.b16 %v1129, %v1125
    %v1278 = vpack.c.b16 %v1130, %v1126
    %v1279 = vpack.c.b16 %v1131, %v1127
    %v1280 = vpack.c.b16 %v1136, %v1132
    %v1281 = vpack.c.b16 %v1137, %v1133
    %v1282 = vpack.c.b16 %v1138, %v1134
    %v1283 = vpack.c.b16 %v1139, %v1135
    %v1284 = vpack.c.b16 %v1144, %v1140
    %v1285 = vpack.c.b16 %v1145, %v1141
    %v1286 = vpack.c.b16 %v1146, %v1142
    %v1287 = vpack.c.b16 %v1147, %v1143
    %v1288 = vpack.c.b16 %v1152, %v1148
    %v1289 = vpack.c.b16 %v1153, %v1149
    %v1290 = vpack.c.b16 %v1154, %v1150
    %v1291 = vpack.c.b16 %v1155, %v1151
    %v1292 = vpack.c.b16 %v1160, %v1156
    %v1293 = vpack.c.b16 %v1161, %v1157
    %v1294 = vpack.c.b16 %v1162, %v1158
    %v1295 = vpack.c.b16 %v1163, %v1159
    %v1296 = vpack.c.b16 %v1168, %v1164
    %v1297 = vpack.c.b16 %v1169, %v1165
    %v1298 = vpack.c.b16 %v1170, %v1166
    %v1299 = vpack.c.b16 %v1171, %v1167
    %1428 = vmatprep.subr.bf16.mxu0 %v1173
    %1429 = vmatpush1.bf16.msra.mxu0 %v1172
    %1430 = vmatprep.subr.bf16.mxu0 %v1177
    %1431 = vmatpush1.bf16.msra.mxu0 %v1176
    %1432 = vmatprep.subr.bf16.mxu0 %v1181
    %1433 = vmatpush1.bf16.msra.mxu0 %v1180
    %1434 = vmatprep.subr.bf16.mxu0 %v1185
    %1435 = vmatpush1.bf16.msra.mxu0 %v1184
    %1436 = vmatprep.subr.bf16.mxu0 %v1189
    %1437 = vmatpush1.bf16.msra.mxu0 %v1188
    %1438 = vmatprep.subr.bf16.mxu0 %v1193
    %1439 = vmatpush1.bf16.msra.mxu0 %v1192
    %1440 = vmatprep.subr.bf16.mxu0 %v1197
    %1441 = vmatpush1.bf16.msra.mxu0 %v1196
    %1442 = vmatprep.subr.bf16.mxu0 %v1201
    %1443 = vmatpush1.bf16.msra.mxu0 %v1200
    %1444 = vmatprep.subr.bf16.mxu0 %v1205
    %1445 = vmatpush1.bf16.msra.mxu0 %v1204
    %1446 = vmatprep.subr.bf16.mxu0 %v1209
    %1447 = vmatpush1.bf16.msra.mxu0 %v1208
    %1448 = vmatprep.subr.bf16.mxu0 %v1213
    %1449 = vmatpush1.bf16.msra.mxu0 %v1212
    %1450 = vmatprep.subr.bf16.mxu0 %v1217
    %1451 = vmatpush1.bf16.msra.mxu0 %v1216
    %1452 = vmatprep.subr.bf16.mxu0 %v1221
    %1453 = vmatpush1.bf16.msra.mxu0 %v1220
    %1454 = vmatprep.subr.bf16.mxu0 %v1225
    %1455 = vmatpush1.bf16.msra.mxu0 %v1224
    %1456 = vmatprep.subr.bf16.mxu0 %v1229
    %1457 = vmatpush1.bf16.msra.mxu0 %v1228
    %1458 = vmatprep.subr.bf16.mxu0 %v1233
    %1459 = vmatpush1.bf16.msra.mxu0 %v1232
    %1460 = vmatprep.mubr.bf16.mxu0 %v634
    %1461 = vmatmul.mubr.bf16.gmra.mrb[0].mxu0 %v633
    %v1462 = vpop.f32.mrb[0].mxu0
    %v1463 = vadd.f32 %v771, %v1462
    %v1464 = vpop.f32.mrb[0].mxu0
    %v1465 = vadd.f32 %v775, %v1464
    %v1466 = vpop.f32.mrb[0].mxu0
    %v1467 = vpop.f32.mrb[0].mxu0
    %1468 = vdwg.mxu0
    %1469 = vmatprep.subr.bf16.mxu0 %v1237
    %1470 = vmatpush1.bf16.msra.mxu0 %v1236
    %1471 = vmatprep.subr.bf16.mxu0 %v1241
    %1472 = vmatpush1.bf16.msra.mxu0 %v1240
    %1473 = vmatprep.subr.bf16.mxu0 %v1245
    %1474 = vmatpush1.bf16.msra.mxu0 %v1244
    %1475 = vmatprep.subr.bf16.mxu0 %v1249
    %1476 = vmatpush1.bf16.msra.mxu0 %v1248
    %1477 = vmatprep.subr.bf16.mxu0 %v1253
    %1478 = vmatpush1.bf16.msra.mxu0 %v1252
    %1479 = vmatprep.subr.bf16.mxu0 %v1257
    %1480 = vmatpush1.bf16.msra.mxu0 %v1256
    %1481 = vmatprep.subr.bf16.mxu0 %v1261
    %1482 = vmatpush1.bf16.msra.mxu0 %v1260
    %1483 = vmatprep.subr.bf16.mxu0 %v1265
    %1484 = vmatpush1.bf16.msra.mxu0 %v1264
    %1485 = vmatprep.subr.bf16.mxu0 %v1269
    %1486 = vmatpush1.bf16.msra.mxu0 %v1268
    %1487 = vmatprep.subr.bf16.mxu0 %v1273
    %1488 = vmatpush1.bf16.msra.mxu0 %v1272
    %1489 = vmatprep.subr.bf16.mxu0 %v1277
    %1490 = vmatpush1.bf16.msra.mxu0 %v1276
    %1491 = vmatprep.subr.bf16.mxu0 %v1281
    %1492 = vmatpush1.bf16.msra.mxu0 %v1280
    %1493 = vmatprep.subr.bf16.mxu0 %v1285
    %1494 = vmatpush1.bf16.msra.mxu0 %v1284
    %1495 = vmatprep.subr.bf16.mxu0 %v1289
    %1496 = vmatpush1.bf16.msra.mxu0 %v1288
    %1497 = vmatprep.subr.bf16.mxu0 %v1293
    %1498 = vmatpush1.bf16.msra.mxu0 %v1292
    %1499 = vmatprep.subr.bf16.mxu0 %v1297
    %1500 = vmatpush1.bf16.msra.mxu0 %v1296
    %1501 = vmatprep.mubr.bf16.mxu0 %v636
    %1502 = vmatmul.mubr.bf16.gmra.mrb[0].mxu0 %v635
    %v1503 = vpop.f32.mrb[0].mxu0
    %v1504 = vadd.f32 %v1463, %v1503
    %v1505 = vpop.f32.mrb[0].mxu0
    %v1506 = vadd.f32 %v1465, %v1505
    %v1507 = vpop.f32.mrb[0].mxu0
    %v1508 = vpop.f32.mrb[0].mxu0
    %1509 = vdwg.mxu0
    %1510 = vmatprep.subr.bf16.mxu0 %v1175
    %1511 = vmatpush1.bf16.msra.mxu0 %v1174
    %1512 = vmatprep.subr.bf16.mxu0 %v1179
    %1513 = vmatpush1.bf16.msra.mxu0 %v1178
    %1514 = vmatprep.subr.bf16.mxu0 %v1183
    %1515 = vmatpush1.bf16.msra.mxu0 %v1182
    %1516 = vmatprep.subr.bf16.mxu0 %v1187
    %1517 = vmatpush1.bf16.msra.mxu0 %v1186
    %1518 = vmatprep.subr.bf16.mxu0 %v1191
    %1519 = vmatpush1.bf16.msra.mxu0 %v1190
    %1520 = vmatprep.subr.bf16.mxu0 %v1195
    %1521 = vmatpush1.bf16.msra.mxu0 %v1194
    %1522 = vmatprep.subr.bf16.mxu0 %v1199
    %1523 = vmatpush1.bf16.msra.mxu0 %v1198
    %1524 = vmatprep.subr.bf16.mxu0 %v1203
    %1525 = vmatpush1.bf16.msra.mxu0 %v1202
    %1526 = vmatprep.subr.bf16.mxu0 %v1207
    %1527 = vmatpush1.bf16.msra.mxu0 %v1206
    %1528 = vmatprep.subr.bf16.mxu0 %v1211
    %1529 = vmatpush1.bf16.msra.mxu0 %v1210
    %1530 = vmatprep.subr.bf16.mxu0 %v1215
    %1531 = vmatpush1.bf16.msra.mxu0 %v1214
    %1532 = vmatprep.subr.bf16.mxu0 %v1219
    %1533 = vmatpush1.bf16.msra.mxu0 %v1218
    %1534 = vmatprep.subr.bf16.mxu0 %v1223
    %1535 = vmatpush1.bf16.msra.mxu0 %v1222
    %1536 = vmatprep.subr.bf16.mxu0 %v1227
    %1537 = vmatpush1.bf16.msra.mxu0 %v1226
    %1538 = vmatprep.subr.bf16.mxu0 %v1231
    %1539 = vmatpush1.bf16.msra.mxu0 %v1230
    %1540 = vmatprep.subr.bf16.mxu0 %v1235
    %1541 = vmatpush1.bf16.msra.mxu0 %v1234
    %1542 = vmatprep.mubr.bf16.mxu0 %v634
    %1543 = vmatmul.mubr.bf16.gmra.mrb[0].mxu0 %v633
    %v1544 = vpop.f32.mrb[0].mxu0
    %v1545 = vadd.f32 %v779, %v1544
    %v1546 = vpop.f32.mrb[0].mxu0
    %v1547 = vadd.f32 %v783, %v1546
    %v1548 = vpop.f32.mrb[0].mxu0
    %v1549 = vpop.f32.mrb[0].mxu0
    %1550 = vdwg.mxu0
    %1551 = vmatprep.subr.bf16.mxu0 %v1239
    %1552 = vmatpush1.bf16.msra.mxu0 %v1238
    %1553 = vmatprep.subr.bf16.mxu0 %v1243
    %1554 = vmatpush1.bf16.msra.mxu0 %v1242
    %1555 = vmatprep.subr.bf16.mxu0 %v1247
    %1556 = vmatpush1.bf16.msra.mxu0 %v1246
    %1557 = vmatprep.subr.bf16.mxu0 %v1251
    %1558 = vmatpush1.bf16.msra.mxu0 %v1250
    %1559 = vmatprep.subr.bf16.mxu0 %v1255
    %1560 = vmatpush1.bf16.msra.mxu0 %v1254
    %1561 = vmatprep.subr.bf16.mxu0 %v1259
    %1562 = vmatpush1.bf16.msra.mxu0 %v1258
    %1563 = vmatprep.subr.bf16.mxu0 %v1263
    %1564 = vmatpush1.bf16.msra.mxu0 %v1262
    %1565 = vmatprep.subr.bf16.mxu0 %v1267
    %1566 = vmatpush1.bf16.msra.mxu0 %v1266
    %1567 = vmatprep.subr.bf16.mxu0 %v1271
    %1568 = vmatpush1.bf16.msra.mxu0 %v1270
    %1569 = vmatprep.subr.bf16.mxu0 %v1275
    %1570 = vmatpush1.bf16.msra.mxu0 %v1274
    %1571 = vmatprep.subr.bf16.mxu0 %v1279
    %1572 = vmatpush1.bf16.msra.mxu0 %v1278
    %1573 = vmatprep.subr.bf16.mxu0 %v1283
    %1574 = vmatpush1.bf16.msra.mxu0 %v1282
    %1575 = vmatprep.subr.bf16.mxu0 %v1287
    %1576 = vmatpush1.bf16.msra.mxu0 %v1286
    %1577 = vmatprep.subr.bf16.mxu0 %v1291
    %1578 = vmatpush1.bf16.msra.mxu0 %v1290
    %1579 = vmatprep.subr.bf16.mxu0 %v1295
    %1580 = vmatpush1.bf16.msra.mxu0 %v1294
    %1581 = vmatprep.subr.bf16.mxu0 %v1299
    %1582 = vmatpush1.bf16.msra.mxu0 %v1298
    %1583 = vmatprep.mubr.bf16.mxu0 %v636
    %1584 = vmatmul.mubr.bf16.gmra.mrb[0].mxu0 %v635
    %v1585 = vpop.f32.mrb[0].mxu0
    %v1586 = vadd.f32 %v1545, %v1585
    %v1587 = vpop.f32.mrb[0].mxu0
    %v1588 = vadd.f32 %v1547, %v1587
    %v1589 = vpop.f32.mrb[0].mxu0
    %v1590 = vpop.f32.mrb[0].mxu0
    %1591 = vdwg.mxu0
    %v1592 = vmax.f32 %v1504, 0.0
    %v1593 = vmax.f32 %v1506, 0.0
    %v1594 = vmax.f32 %v1586, 0.0
    %v1595 = vmax.f32 %v1588, 0.0
    %v1596 = vpack.c.bf16 %v1592, %v1592
    %v1597 = vpack.c.bf16 %v1593, %v1593
    %v1598 = vpack.c.bf16 %v1594, %v1594
    %v1599 = vpack.c.bf16 %v1595, %v1595
    %v1600 = vld [vmem:[#allocation5 + $0x600] sm:$0xff]
    %v1601 = vld [vmem:[#allocation5 + $0x610] sm:$0xff]
    %v1602 = vld [vmem:[#allocation5 + $0x620] sm:$0xff]
    %v1603 = vld [vmem:[#allocation5 + $0x630] sm:$0xff]
    %v1604 = vld [vmem:[#allocation5 + $0x640] sm:$0xff]
    %v1605 = vld [vmem:[#allocation5 + $0x650] sm:$0xff]
    %v1606 = vld [vmem:[#allocation5 + $0x660] sm:$0xff]
    %v1607 = vld [vmem:[#allocation5 + $0x670] sm:$0xff]
    %v1608 = vld [vmem:[#allocation5 + $0x680] sm:$0xff]
    %v1609 = vld [vmem:[#allocation5 + $0x690] sm:$0xff]
    %v1610 = vld [vmem:[#allocation5 + $0x6a0] sm:$0xff]
    %v1611 = vld [vmem:[#allocation5 + $0x6b0] sm:$0xff]
    %v1612 = vld [vmem:[#allocation5 + $0x6c0] sm:$0xff]
    %v1613 = vld [vmem:[#allocation5 + $0x6d0] sm:$0xff]
    %v1614 = vld [vmem:[#allocation5 + $0x6e0] sm:$0xff]
    %v1615 = vld [vmem:[#allocation5 + $0x6f0] sm:$0xff]
    %v1616 = vld [vmem:[#allocation5 + $0x700] sm:$0xff]
    %v1617 = vld [vmem:[#allocation5 + $0x710] sm:$0xff]
    %v1618 = vld [vmem:[#allocation5 + $0x720] sm:$0xff]
    %v1619 = vld [vmem:[#allocation5 + $0x730] sm:$0xff]
    %v1620 = vld [vmem:[#allocation5 + $0x740] sm:$0xff]
    %v1621 = vld [vmem:[#allocation5 + $0x750] sm:$0xff]
    %v1622 = vld [vmem:[#allocation5 + $0x760] sm:$0xff]
    %v1623 = vld [vmem:[#allocation5 + $0x770] sm:$0xff]
    %v1624 = vld [vmem:[#allocation5 + $0x780] sm:$0xff]
    %v1625 = vld [vmem:[#allocation5 + $0x790] sm:$0xff]
    %v1626 = vld [vmem:[#allocation5 + $0x7a0] sm:$0xff]
    %v1627 = vld [vmem:[#allocation5 + $0x7b0] sm:$0xff]
    %v1628 = vld [vmem:[#allocation5 + $0x7c0] sm:$0xff]
    %v1629 = vld [vmem:[#allocation5 + $0x7d0] sm:$0xff]
    %v1630 = vld [vmem:[#allocation5 + $0x7e0] sm:$0xff]
    %v1631 = vld [vmem:[#allocation5 + $0x7f0] sm:$0xff]
    %v1632 = vld [vmem:[#allocation5 + $0x800] sm:$0xff]
    %v1633 = vld [vmem:[#allocation5 + $0x810] sm:$0xff]
    %v1634 = vld [vmem:[#allocation5 + $0x820] sm:$0xff]
    %v1635 = vld [vmem:[#allocation5 + $0x830] sm:$0xff]
    %v1636 = vld [vmem:[#allocation5 + $0x840] sm:$0xff]
    %v1637 = vld [vmem:[#allocation5 + $0x850] sm:$0xff]
    %v1638 = vld [vmem:[#allocation5 + $0x860] sm:$0xff]
    %v1639 = vld [vmem:[#allocation5 + $0x870] sm:$0xff]
    %v1640 = vld [vmem:[#allocation5 + $0x880] sm:$0xff]
    %v1641 = vld [vmem:[#allocation5 + $0x890] sm:$0xff]
    %v1642 = vld [vmem:[#allocation5 + $0x8a0] sm:$0xff]
    %v1643 = vld [vmem:[#allocation5 + $0x8b0] sm:$0xff]
    %v1644 = vld [vmem:[#allocation5 + $0x8c0] sm:$0xff]
    %v1645 = vld [vmem:[#allocation5 + $0x8d0] sm:$0xff]
    %v1646 = vld [vmem:[#allocation5 + $0x8e0] sm:$0xff]
    %v1647 = vld [vmem:[#allocation5 + $0x8f0] sm:$0xff]
    %v1648 = vld [vmem:[#allocation5 + $0x900] sm:$0xff]
    %v1649 = vld [vmem:[#allocation5 + $0x910] sm:$0xff]
    %v1650 = vld [vmem:[#allocation5 + $0x920] sm:$0xff]
    %v1651 = vld [vmem:[#allocation5 + $0x930] sm:$0xff]
    %v1652 = vld [vmem:[#allocation5 + $0x940] sm:$0xff]
    %v1653 = vld [vmem:[#allocation5 + $0x950] sm:$0xff]
    %v1654 = vld [vmem:[#allocation5 + $0x960] sm:$0xff]
    %v1655 = vld [vmem:[#allocation5 + $0x970] sm:$0xff]
    %v1656 = vld [vmem:[#allocation5 + $0x980] sm:$0xff]
    %v1657 = vld [vmem:[#allocation5 + $0x990] sm:$0xff]
    %v1658 = vld [vmem:[#allocation5 + $0x9a0] sm:$0xff]
    %v1659 = vld [vmem:[#allocation5 + $0x9b0] sm:$0xff]
    %v1660 = vld [vmem:[#allocation5 + $0x9c0] sm:$0xff]
    %v1661 = vld [vmem:[#allocation5 + $0x9d0] sm:$0xff]
    %v1662 = vld [vmem:[#allocation5 + $0x9e0] sm:$0xff]
    %v1663 = vld [vmem:[#allocation5 + $0x9f0] sm:$0xff]
    %s1664 = scalar_lea.vmem [#allocation7], 3
    %v1665 = vld [vmem:[%s1664] ss:$8 sm:$0x3]
    %v1667 = vlaneseq
    %v1668 = vshrl.u32 %v1667, 7
    %v1669 = vsub.s32 0, %v1668
    %v1670 = vrot.slane %v1665, %v1669
    %v1671 = vlaneseq
    %v1672 = vshrl.u32 %v1671, 7
    %v1673 = vsub.s32 1, %v1672
    %v1674 = vrot.slane %v1665, %v1673
    %v1741 = vunpack.c.l.b16 %v1600
    %v1742 = vunpack.c.h.b16 %v1600
    %v1743 = vunpack.c.l.b16 %v1601
    %v1744 = vunpack.c.h.b16 %v1601
    %v1745 = vunpack.c.l.b16 %v1602
    %v1746 = vunpack.c.h.b16 %v1602
    %v1747 = vunpack.c.l.b16 %v1603
    %v1748 = vunpack.c.h.b16 %v1603
    %v1749 = vunpack.c.l.b16 %v1604
    %v1750 = vunpack.c.h.b16 %v1604
    %v1751 = vunpack.c.l.b16 %v1605
    %v1752 = vunpack.c.h.b16 %v1605
    %v1753 = vunpack.c.l.b16 %v1606
    %v1754 = vunpack.c.h.b16 %v1606
    %v1755 = vunpack.c.l.b16 %v1607
    %v1756 = vunpack.c.h.b16 %v1607
    %v1757 = vunpack.c.l.b16 %v1608
    %v1758 = vunpack.c.h.b16 %v1608
    %v1759 = vunpack.c.l.b16 %v1609
    %v1760 = vunpack.c.h.b16 %v1609
    %v1761 = vunpack.c.l.b16 %v1610
    %v1762 = vunpack.c.h.b16 %v1610
    %v1763 = vunpack.c.l.b16 %v1611
    %v1764 = vunpack.c.h.b16 %v1611
    %v1765 = vunpack.c.l.b16 %v1612
    %v1766 = vunpack.c.h.b16 %v1612
    %v1767 = vunpack.c.l.b16 %v1613
    %v1768 = vunpack.c.h.b16 %v1613
    %v1769 = vunpack.c.l.b16 %v1614
    %v1770 = vunpack.c.h.b16 %v1614
    %v1771 = vunpack.c.l.b16 %v1615
    %v1772 = vunpack.c.h.b16 %v1615
    %v1773 = vunpack.c.l.b16 %v1616
    %v1774 = vunpack.c.h.b16 %v1616
    %v1775 = vunpack.c.l.b16 %v1617
    %v1776 = vunpack.c.h.b16 %v1617
    %v1777 = vunpack.c.l.b16 %v1618
    %v1778 = vunpack.c.h.b16 %v1618
    %v1779 = vunpack.c.l.b16 %v1619
    %v1780 = vunpack.c.h.b16 %v1619
    %v1781 = vunpack.c.l.b16 %v1620
    %v1782 = vunpack.c.h.b16 %v1620
    %v1783 = vunpack.c.l.b16 %v1621
    %v1784 = vunpack.c.h.b16 %v1621
    %v1785 = vunpack.c.l.b16 %v1622
    %v1786 = vunpack.c.h.b16 %v1622
    %v1787 = vunpack.c.l.b16 %v1623
    %v1788 = vunpack.c.h.b16 %v1623
    %v1789 = vunpack.c.l.b16 %v1624
    %v1790 = vunpack.c.h.b16 %v1624
    %v1791 = vunpack.c.l.b16 %v1625
    %v1792 = vunpack.c.h.b16 %v1625
    %v1793 = vunpack.c.l.b16 %v1626
    %v1794 = vunpack.c.h.b16 %v1626
    %v1795 = vunpack.c.l.b16 %v1627
    %v1796 = vunpack.c.h.b16 %v1627
    %v1797 = vunpack.c.l.b16 %v1628
    %v1798 = vunpack.c.h.b16 %v1628
    %v1799 = vunpack.c.l.b16 %v1629
    %v1800 = vunpack.c.h.b16 %v1629
    %v1801 = vunpack.c.l.b16 %v1630
    %v1802 = vunpack.c.h.b16 %v1630
    %v1803 = vunpack.c.l.b16 %v1631
    %v1804 = vunpack.c.h.b16 %v1631
    %v1805 = vunpack.c.l.b16 %v1632
    %v1806 = vunpack.c.h.b16 %v1632
    %v1807 = vunpack.c.l.b16 %v1633
    %v1808 = vunpack.c.h.b16 %v1633
    %v1809 = vunpack.c.l.b16 %v1634
    %v1810 = vunpack.c.h.b16 %v1634
    %v1811 = vunpack.c.l.b16 %v1635
    %v1812 = vunpack.c.h.b16 %v1635
    %v1813 = vunpack.c.l.b16 %v1636
    %v1814 = vunpack.c.h.b16 %v1636
    %v1815 = vunpack.c.l.b16 %v1637
    %v1816 = vunpack.c.h.b16 %v1637
    %v1817 = vunpack.c.l.b16 %v1638
    %v1818 = vunpack.c.h.b16 %v1638
    %v1819 = vunpack.c.l.b16 %v1639
    %v1820 = vunpack.c.h.b16 %v1639
    %v1821 = vunpack.c.l.b16 %v1640
    %v1822 = vunpack.c.h.b16 %v1640
    %v1823 = vunpack.c.l.b16 %v1641
    %v1824 = vunpack.c.h.b16 %v1641
    %v1825 = vunpack.c.l.b16 %v1642
    %v1826 = vunpack.c.h.b16 %v1642
    %v1827 = vunpack.c.l.b16 %v1643
    %v1828 = vunpack.c.h.b16 %v1643
    %v1829 = vunpack.c.l.b16 %v1644
    %v1830 = vunpack.c.h.b16 %v1644
    %v1831 = vunpack.c.l.b16 %v1645
    %v1832 = vunpack.c.h.b16 %v1645
    %v1833 = vunpack.c.l.b16 %v1646
    %v1834 = vunpack.c.h.b16 %v1646
    %v1835 = vunpack.c.l.b16 %v1647
    %v1836 = vunpack.c.h.b16 %v1647
    %v1837 = vunpack.c.l.b16 %v1648
    %v1838 = vunpack.c.h.b16 %v1648
    %v1839 = vunpack.c.l.b16 %v1649
    %v1840 = vunpack.c.h.b16 %v1649
    %v1841 = vunpack.c.l.b16 %v1650
    %v1842 = vunpack.c.h.b16 %v1650
    %v1843 = vunpack.c.l.b16 %v1651
    %v1844 = vunpack.c.h.b16 %v1651
    %v1845 = vunpack.c.l.b16 %v1652
    %v1846 = vunpack.c.h.b16 %v1652
    %v1847 = vunpack.c.l.b16 %v1653
    %v1848 = vunpack.c.h.b16 %v1653
    %v1849 = vunpack.c.l.b16 %v1654
    %v1850 = vunpack.c.h.b16 %v1654
    %v1851 = vunpack.c.l.b16 %v1655
    %v1852 = vunpack.c.h.b16 %v1655
    %v1853 = vunpack.c.l.b16 %v1656
    %v1854 = vunpack.c.h.b16 %v1656
    %v1855 = vunpack.c.l.b16 %v1657
    %v1856 = vunpack.c.h.b16 %v1657
    %v1857 = vunpack.c.l.b16 %v1658
    %v1858 = vunpack.c.h.b16 %v1658
    %v1859 = vunpack.c.l.b16 %v1659
    %v1860 = vunpack.c.h.b16 %v1659
    %v1861 = vunpack.c.l.b16 %v1660
    %v1862 = vunpack.c.h.b16 %v1660
    %v1863 = vunpack.c.l.b16 %v1661
    %v1864 = vunpack.c.h.b16 %v1661
    %v1865 = vunpack.c.l.b16 %v1662
    %v1866 = vunpack.c.h.b16 %v1662
    %v1867 = vunpack.c.l.b16 %v1663
    %v1868 = vunpack.c.h.b16 %v1663
    %v1869 = vpack.c.b16 %v1743, %v1741
    %v1870 = vpack.c.b16 %v1744, %v1742
    %v1871 = vpack.c.b16 %v1747, %v1745
    %v1872 = vpack.c.b16 %v1748, %v1746
    %v1873 = vpack.c.b16 %v1751, %v1749
    %v1874 = vpack.c.b16 %v1752, %v1750
    %v1875 = vpack.c.b16 %v1755, %v1753
    %v1876 = vpack.c.b16 %v1756, %v1754
    %v1877 = vpack.c.b16 %v1759, %v1757
    %v1878 = vpack.c.b16 %v1760, %v1758
    %v1879 = vpack.c.b16 %v1763, %v1761
    %v1880 = vpack.c.b16 %v1764, %v1762
    %v1881 = vpack.c.b16 %v1767, %v1765
    %v1882 = vpack.c.b16 %v1768, %v1766
    %v1883 = vpack.c.b16 %v1771, %v1769
    %v1884 = vpack.c.b16 %v1772, %v1770
    %v1885 = vpack.c.b16 %v1775, %v1773
    %v1886 = vpack.c.b16 %v1776, %v1774
    %v1887 = vpack.c.b16 %v1779, %v1777
    %v1888 = vpack.c.b16 %v1780, %v1778
    %v1889 = vpack.c.b16 %v1783, %v1781
    %v1890 = vpack.c.b16 %v1784, %v1782
    %v1891 = vpack.c.b16 %v1787, %v1785
    %v1892 = vpack.c.b16 %v1788, %v1786
    %v1893 = vpack.c.b16 %v1791, %v1789
    %v1894 = vpack.c.b16 %v1792, %v1790
    %v1895 = vpack.c.b16 %v1795, %v1793
    %v1896 = vpack.c.b16 %v1796, %v1794
    %v1897 = vpack.c.b16 %v1799, %v1797
    %v1898 = vpack.c.b16 %v1800, %v1798
    %v1899 = vpack.c.b16 %v1803, %v1801
    %v1900 = vpack.c.b16 %v1804, %v1802
    %v1901 = vpack.c.b16 %v1807, %v1805
    %v1902 = vpack.c.b16 %v1808, %v1806
    %v1903 = vpack.c.b16 %v1811, %v1809
    %v1904 = vpack.c.b16 %v1812, %v1810
    %v1905 = vpack.c.b16 %v1815, %v1813
    %v1906 = vpack.c.b16 %v1816, %v1814
    %v1907 = vpack.c.b16 %v1819, %v1817
    %v1908 = vpack.c.b16 %v1820, %v1818
    %v1909 = vpack.c.b16 %v1823, %v1821
    %v1910 = vpack.c.b16 %v1824, %v1822
    %v1911 = vpack.c.b16 %v1827, %v1825
    %v1912 = vpack.c.b16 %v1828, %v1826
    %v1913 = vpack.c.b16 %v1831, %v1829
    %v1914 = vpack.c.b16 %v1832, %v1830
    %v1915 = vpack.c.b16 %v1835, %v1833
    %v1916 = vpack.c.b16 %v1836, %v1834
    %v1917 = vpack.c.b16 %v1839, %v1837
    %v1918 = vpack.c.b16 %v1840, %v1838
    %v1919 = vpack.c.b16 %v1843, %v1841
    %v1920 = vpack.c.b16 %v1844, %v1842
    %v1921 = vpack.c.b16 %v1847, %v1845
    %v1922 = vpack.c.b16 %v1848, %v1846
    %v1923 = vpack.c.b16 %v1851, %v1849
    %v1924 = vpack.c.b16 %v1852, %v1850
    %v1925 = vpack.c.b16 %v1855, %v1853
    %v1926 = vpack.c.b16 %v1856, %v1854
    %v1927 = vpack.c.b16 %v1859, %v1857
    %v1928 = vpack.c.b16 %v1860, %v1858
    %v1929 = vpack.c.b16 %v1863, %v1861
    %v1930 = vpack.c.b16 %v1864, %v1862
    %v1931 = vpack.c.b16 %v1867, %v1865
    %v1932 = vpack.c.b16 %v1868, %v1866
    %1997 = vmatprep.subr.bf16.mxu0 %v1870
    %1998 = vmatpush1.bf16.msra.mxu0 %v1869
    %1999 = vmatprep.subr.bf16.mxu0 %v1872
    %2000 = vmatpush1.bf16.msra.mxu0 %v1871
    %2001 = vmatprep.subr.bf16.mxu0 %v1874
    %2002 = vmatpush1.bf16.msra.mxu0 %v1873
    %2003 = vmatprep.subr.bf16.mxu0 %v1876
    %2004 = vmatpush1.bf16.msra.mxu0 %v1875
    %2005 = vmatprep.subr.bf16.mxu0 %v1878
    %2006 = vmatpush1.bf16.msra.mxu0 %v1877
    %2007 = vmatprep.subr.bf16.mxu0 %v1880
    %2008 = vmatpush1.bf16.msra.mxu0 %v1879
    %2009 = vmatprep.subr.bf16.mxu0 %v1882
    %2010 = vmatpush1.bf16.msra.mxu0 %v1881
    %2011 = vmatprep.subr.bf16.mxu0 %v1884
    %2012 = vmatpush1.bf16.msra.mxu0 %v1883
    %2013 = vmatprep.subr.bf16.mxu0 %v1886
    %2014 = vmatpush1.bf16.msra.mxu0 %v1885
    %2015 = vmatprep.subr.bf16.mxu0 %v1888
    %2016 = vmatpush1.bf16.msra.mxu0 %v1887
    %2017 = vmatprep.subr.bf16.mxu0 %v1890
    %2018 = vmatpush1.bf16.msra.mxu0 %v1889
    %2019 = vmatprep.subr.bf16.mxu0 %v1892
    %2020 = vmatpush1.bf16.msra.mxu0 %v1891
    %2021 = vmatprep.subr.bf16.mxu0 %v1894
    %2022 = vmatpush1.bf16.msra.mxu0 %v1893
    %2023 = vmatprep.subr.bf16.mxu0 %v1896
    %2024 = vmatpush1.bf16.msra.mxu0 %v1895
    %2025 = vmatprep.subr.bf16.mxu0 %v1898
    %2026 = vmatpush1.bf16.msra.mxu0 %v1897
    %2027 = vmatprep.subr.bf16.mxu0 %v1900
    %2028 = vmatpush1.bf16.msra.mxu0 %v1899
    %2029 = vmatprep.mubr.bf16.mxu0 %v1597
    %2030 = vmatmul.mubr.bf16.gmra.mrb[0].mxu0 %v1596
    %v2031 = vpop.f32.mrb[0].mxu0
    %v2032 = vadd.f32 %v1670, %v2031
    %v2033 = vpop.f32.mrb[0].mxu0
    %v2034 = vadd.f32 %v1674, %v2033
    %v2035 = vpop.f32.mrb[0].mxu0
    %v2036 = vpop.f32.mrb[0].mxu0
    %2037 = vdwg.mxu0
    %2038 = vmatprep.subr.bf16.mxu0 %v1902
    %2039 = vmatpush1.bf16.msra.mxu0 %v1901
    %2040 = vmatprep.subr.bf16.mxu0 %v1904
    %2041 = vmatpush1.bf16.msra.mxu0 %v1903
    %2042 = vmatprep.subr.bf16.mxu0 %v1906
    %2043 = vmatpush1.bf16.msra.mxu0 %v1905
    %2044 = vmatprep.subr.bf16.mxu0 %v1908
    %2045 = vmatpush1.bf16.msra.mxu0 %v1907
    %2046 = vmatprep.subr.bf16.mxu0 %v1910
    %2047 = vmatpush1.bf16.msra.mxu0 %v1909
    %2048 = vmatprep.subr.bf16.mxu0 %v1912
    %2049 = vmatpush1.bf16.msra.mxu0 %v1911
    %2050 = vmatprep.subr.bf16.mxu0 %v1914
    %2051 = vmatpush1.bf16.msra.mxu0 %v1913
    %2052 = vmatprep.subr.bf16.mxu0 %v1916
    %2053 = vmatpush1.bf16.msra.mxu0 %v1915
    %2054 = vmatprep.subr.bf16.mxu0 %v1918
    %2055 = vmatpush1.bf16.msra.mxu0 %v1917
    %2056 = vmatprep.subr.bf16.mxu0 %v1920
    %2057 = vmatpush1.bf16.msra.mxu0 %v1919
    %2058 = vmatprep.subr.bf16.mxu0 %v1922
    %2059 = vmatpush1.bf16.msra.mxu0 %v1921
    %2060 = vmatprep.subr.bf16.mxu0 %v1924
    %2061 = vmatpush1.bf16.msra.mxu0 %v1923
    %2062 = vmatprep.subr.bf16.mxu0 %v1926
    %2063 = vmatpush1.bf16.msra.mxu0 %v1925
    %2064 = vmatprep.subr.bf16.mxu0 %v1928
    %2065 = vmatpush1.bf16.msra.mxu0 %v1927
    %2066 = vmatprep.subr.bf16.mxu0 %v1930
    %2067 = vmatpush1.bf16.msra.mxu0 %v1929
    %2068 = vmatprep.subr.bf16.mxu0 %v1932
    %2069 = vmatpush1.bf16.msra.mxu0 %v1931
    %2070 = vmatprep.mubr.bf16.mxu0 %v1599
    %2071 = vmatmul.mubr.bf16.gmra.mrb[0].mxu0 %v1598
    %v2072 = vpop.f32.mrb[0].mxu0
    %v2073 = vadd.f32 %v2032, %v2072
    %v2074 = vpop.f32.mrb[0].mxu0
    %v2075 = vadd.f32 %v2034, %v2074
    %v2076 = vpop.f32.mrb[0].mxu0
    %v2077 = vpop.f32.mrb[0].mxu0
    %2078 = vdwg.mxu0
    %v2079 = vmax.f32 %v2073, 0.0
    %v2080 = vmax.f32 %v2075, 0.0
    %v2081 = vpack.c.bf16 %v2079, %v2079
    %v2082 = vpack.c.bf16 %v2080, %v2080
    %v2083 = vld [vmem:[#allocation5 + $0x648] sm:$0xf]
    %v2084 = vld [vmem:[#allocation5 + $0x658] sm:$0xf]
    %v2085 = vld [vmem:[#allocation5 + $0x668] sm:$0xf]
    %v2086 = vld [vmem:[#allocation5 + $0x678] sm:$0xf]
    %v2087 = vld [vmem:[#allocation5 + $0x688] sm:$0xf]
    %v2088 = vld [vmem:[#allocation5 + $0x698] sm:$0xf]
    %v2089 = vld [vmem:[#allocation5 + $0x6a8] sm:$0xf]
    %v2090 = vld [vmem:[#allocation5 + $0x6b8] sm:$0xf]
    %v2091 = vld [vmem:[#allocation5 + $0x6c8] sm:$0xf]
    %v2092 = vld [vmem:[#allocation5 + $0x6d8] sm:$0xf]
    %v2093 = vld [vmem:[#allocation5 + $0x6e8] sm:$0xf]
    %v2094 = vld [vmem:[#allocation5 + $0x6f8] sm:$0xf]
    %v2095 = vld [vmem:[#allocation5 + $0x708] sm:$0xf]
    %v2096 = vld [vmem:[#allocation5 + $0x718] sm:$0xf]
    %v2097 = vld [vmem:[#allocation5 + $0x728] sm:$0xf]
    %v2098 = vld [vmem:[#allocation5 + $0x738] sm:$0xf]
    %v2099 = vld [vmem:[#allocation5 + $0x748] sm:$0xf]
    %v2100 = vld [vmem:[#allocation5 + $0x758] sm:$0xf]
    %v2101 = vld [vmem:[#allocation5 + $0x768] sm:$0xf]
    %v2102 = vld [vmem:[#allocation5 + $0x778] sm:$0xf]
    %v2103 = vld [vmem:[#allocation5 + $0x788] sm:$0xf]
    %v2104 = vld [vmem:[#allocation5 + $0x798] sm:$0xf]
    %v2105 = vld [vmem:[#allocation5 + $0x7a8] sm:$0xf]
    %v2106 = vld [vmem:[#allocation5 + $0x7b8] sm:$0xf]
    %v2107 = vld [vmem:[#allocation5 + $0x7c8] sm:$0xf]
    %v2108 = vld [vmem:[#allocation5 + $0x7d8] sm:$0xf]
    %v2109 = vld [vmem:[#allocation5 + $0x7e8] sm:$0xf]
    %v2110 = vld [vmem:[#allocation5 + $0x7f8] sm:$0xf]
    %v2111 = vld [vmem:[#allocation5 + $0x808] sm:$0xf]
    %v2112 = vld [vmem:[#allocation5 + $0x818] sm:$0xf]
    %v2113 = vld [vmem:[#allocation5 + $0x828] sm:$0xf]
    %v2114 = vld [vmem:[#allocation5 + $0x838] sm:$0xf]
    %v2115 = vld [vmem:[#allocation7 + $0x4] ss:$0 sm:$0xff]
    %v2148 = vunpack.c.l.b16 %v2083
    %v2149 = vunpack.c.l.b16 %v2084
    %v2150 = vunpack.c.l.b16 %v2085
    %v2151 = vunpack.c.l.b16 %v2086
    %v2152 = vunpack.c.l.b16 %v2087
    %v2153 = vunpack.c.l.b16 %v2088
    %v2154 = vunpack.c.l.b16 %v2089
    %v2155 = vunpack.c.l.b16 %v2090
    %v2156 = vunpack.c.l.b16 %v2091
    %v2157 = vunpack.c.l.b16 %v2092
    %v2158 = vunpack.c.l.b16 %v2093
    %v2159 = vunpack.c.l.b16 %v2094
    %v2160 = vunpack.c.l.b16 %v2095
    %v2161 = vunpack.c.l.b16 %v2096
    %v2162 = vunpack.c.l.b16 %v2097
    %v2163 = vunpack.c.l.b16 %v2098
    %v2164 = vunpack.c.l.b16 %v2099
    %v2165 = vunpack.c.l.b16 %v2100
    %v2166 = vunpack.c.l.b16 %v2101
    %v2167 = vunpack.c.l.b16 %v2102
    %v2168 = vunpack.c.l.b16 %v2103
    %v2169 = vunpack.c.l.b16 %v2104
    %v2170 = vunpack.c.l.b16 %v2105
    %v2171 = vunpack.c.l.b16 %v2106
    %v2172 = vunpack.c.l.b16 %v2107
    %v2173 = vunpack.c.l.b16 %v2108
    %v2174 = vunpack.c.l.b16 %v2109
    %v2175 = vunpack.c.l.b16 %v2110
    %v2176 = vunpack.c.l.b16 %v2111
    %v2177 = vunpack.c.l.b16 %v2112
    %v2178 = vunpack.c.l.b16 %v2113
    %v2179 = vunpack.c.l.b16 %v2114
    %v2180 = vpack.c.b16 %v2149, %v2148
    %v2181 = vpack.c.b16 %v2151, %v2150
    %v2182 = vpack.c.b16 %v2153, %v2152
    %v2183 = vpack.c.b16 %v2155, %v2154
    %v2184 = vpack.c.b16 %v2157, %v2156
    %v2185 = vpack.c.b16 %v2159, %v2158
    %v2186 = vpack.c.b16 %v2161, %v2160
    %v2187 = vpack.c.b16 %v2163, %v2162
    %v2188 = vpack.c.b16 %v2165, %v2164
    %v2189 = vpack.c.b16 %v2167, %v2166
    %v2190 = vpack.c.b16 %v2169, %v2168
    %v2191 = vpack.c.b16 %v2171, %v2170
    %v2192 = vpack.c.b16 %v2173, %v2172
    %v2193 = vpack.c.b16 %v2175, %v2174
    %v2194 = vpack.c.b16 %v2177, %v2176
    %v2195 = vpack.c.b16 %v2179, %v2178
    %2212 = vmatprep.subr.bf16.mxu0 0
    %2213 = vmatpush1.bf16.msra.mxu0 %v2180
    %2214 = vmatprep.subr.bf16.mxu0 0
    %2215 = vmatpush1.bf16.msra.mxu0 %v2181
    %2216 = vmatprep.subr.bf16.mxu0 0
    %2217 = vmatpush1.bf16.msra.mxu0 %v2182
    %2218 = vmatprep.subr.bf16.mxu0 0
    %2219 = vmatpush1.bf16.msra.mxu0 %v2183
    %2220 = vmatprep.subr.bf16.mxu0 0
    %2221 = vmatpush1.bf16.msra.mxu0 %v2184
    %2222 = vmatprep.subr.bf16.mxu0 0
    %2223 = vmatpush1.bf16.msra.mxu0 %v2185
    %2224 = vmatprep.subr.bf16.mxu0 0
    %2225 = vmatpush1.bf16.msra.mxu0 %v2186
    %2226 = vmatprep.subr.bf16.mxu0 0
    %2227 = vmatpush1.bf16.msra.mxu0 %v2187
    %2228 = vmatprep.subr.bf16.mxu0 0
    %2229 = vmatpush1.bf16.msra.mxu0 %v2188
    %2230 = vmatprep.subr.bf16.mxu0 0
    %2231 = vmatpush1.bf16.msra.mxu0 %v2189
    %2232 = vmatprep.subr.bf16.mxu0 0
    %2233 = vmatpush1.bf16.msra.mxu0 %v2190
    %2234 = vmatprep.subr.bf16.mxu0 0
    %2235 = vmatpush1.bf16.msra.mxu0 %v2191
    %2236 = vmatprep.subr.bf16.mxu0 0
    %2237 = vmatpush1.bf16.msra.mxu0 %v2192
    %2238 = vmatprep.subr.bf16.mxu0 0
    %2239 = vmatpush1.bf16.msra.mxu0 %v2193
    %2240 = vmatprep.subr.bf16.mxu0 0
    %2241 = vmatpush1.bf16.msra.mxu0 %v2194
    %2242 = vmatprep.subr.bf16.mxu0 0
    %2243 = vmatpush1.bf16.msra.mxu0 %v2195
    %2244 = vmatprep.mubr.bf16.mxu0 %v2082
    %2245 = vmatmul.mubr.bf16.gmra.mrb[0].mxu0 %v2081
    %v2246 = vpop.f32.mrb[0].mxu0
    %v2247 = vadd.f32 %v2115, %v2246
    %v2248 = vpop.f32.mrb[0].mxu0
    %v2249 = vpop.f32.mrb[0].mxu0
    %v2250 = vpop.f32.mrb[0].mxu0
    %2251 = vdwg.mxu0
    %2252 = vst [vmem:[#allocation8] sm:$0xff] %v2247
    // Predicated region
    $region26: #{tpu_custom_call.1} parent=1 // pred_check
      _
    $region27: #{tpu_custom_call.1} parent=1 // pred_check_branch
      %2254 = sbr.rel (0) target = $region29
    $region28: #{tpu_custom_call.1} parent=1 // pred_region
      %s2256 = ssub.s32 128, 128
      %2257 = vsyncadd [#allocation4], %s2256
      %s2259 = sshll.u32 [#allocation8], 4
      %s2260 = int_to_ptr.vmem [resolvable:$true] %s2259
      %2262 = dma.vmem_to_hbm [thread:$0]  %s2260, 128, %s3, [#allocation4]
    $region29: #{tpu_custom_call.1} parent=1 // pred_fallthru
      _
    // Predicated region
    $region30: #{tpu_custom_call.1} parent=1 // pred_check
      _
    $region31: #{tpu_custom_call.1} parent=1 // pred_check_branch
      %2264 = sbr.rel (0) target = $region33
    $region32: #{tpu_custom_call.1} parent=1 // pred_region
      %2265 = dma.done [#allocation4], 128
    $region33: #{tpu_custom_call.1} parent=1 // pred_fallthru
      _
    %2266 = vsyncpa [#allocation3], 1
    %2267 = vsyncpa [#allocation6], 1
    %2268 = vsyncpa [#allocation4], 1

// kernel: tpu_custom_call.1
$region0: #{tpu_custom_call.1}
  #allocation0 [shape = 'u32[]', space=smem, size = 0x4, offset = 0x4, fixed_abs, tag = 'smem constant byte address 0x4 - core index']
  #allocation1 [shape = 'u32[144,128]{1,0:T(1,128)}', space=vmem, size = 0x12000, scoped, tag = 'internal scratch']
  %s0 = inlined_call_operand.hbm [shape: f32[8,32], index: 0, kind: input, shape index: {}]
  %s1 = inlined_call_operand.hbm [shape: bf16[1280,512], index: 1, kind: input, shape index: {}]
  %s2 = inlined_call_operand.hbm [shape: f32[5,512], index: 2, kind: input, shape index: {}]
  %s3 = inlined_call_operand.hbm [shape: f32[8,128], index: 3, kind: output, shape index: {}]
  %s4 = sld [smem:[#allocation0]]
  $region34: #{tpu_custom_call.1} parent=0
    _
  %s6 = ssub.s32 1, %s4
  %s7 = scalar_select 0, %s6, %s4
  $region1: #{tpu_custom_call.1} parent=0
    #allocation2 [shape = 'u8[4096]{0}', space=vmem, size = 0x1000, scoped, tag = 'input window, operand 0, single buffered']
    #allocation3 [shape = 's32[1]{0}', space=sflag, size = 0x4, scoped, tag = 'scoped memory for tpu_custom_call.1']
    #allocation4 [shape = 's32[1]{0}', space=sflag, size = 0x4, scoped, tag = 'scoped memory for tpu_custom_call.1']
    #allocation5 [shape = 'u8[1310720]{0}', space=vmem, size = 0x140000, scoped, tag = 'input window, operand 1, single buffered']
    #allocation6 [shape = 's32[1]{0}', space=sflag, size = 0x4, scoped, tag = 'scoped memory for tpu_custom_call.1']
    #allocation7 [shape = 'u8[16384]{0}', space=vmem, size = 0x4000, scoped, tag = 'input window, operand 2, single buffered']
    #allocation8 [shape = 'u8[4096]{0}', space=vmem, size = 0x1000, scoped, tag = 'output window, operand 0, single buffered']
    %8 = vsyncpa [#allocation3], 0
    %9 = vsyncpa [#allocation6], 0
    %10 = vsyncpa [#allocation4], 0
    // Predicated region
    $region2: #{tpu_custom_call.1} parent=1 // pred_check
      _
    $region3: #{tpu_custom_call.1} parent=1 // pred_check_branch
      %12 = sbr.rel (0) target = $region5
    $region4: #{tpu_custom_call.1} parent=1 // pred_region
      %s14 = ssub.s32 128, 128
      %15 = vsyncadd [#allocation3], %s14
      %s17 = sshll.u32 [#allocation2], 4
      %s18 = int_to_ptr.vmem [resolvable:$true] %s17
      %20 = dma.hbm_to_vmem [thread:$0]  %s0, 128, %s18, [#allocation3]
    $region5: #{tpu_custom_call.1} parent=1 // pred_fallthru
      _
    // Predicated region
    $region6: #{tpu_custom_call.1} parent=1 // pred_check
      _
    $region7: #{tpu_custom_call.1} parent=1 // pred_check_branch
      %22 = sbr.rel (0) target = $region9
    $region8: #{tpu_custom_call.1} parent=1 // pred_region
      %s24 = ssub.s32 40960, 40960
      %25 = vsyncadd [#allocation6], %s24
      %s26 = sshll.u32 [#allocation5], 4
      %s27 = int_to_ptr.vmem [resolvable:$true] %s26
      %32 = dma.hbm_to_vmem [thread:$0]  %s1, 40960, %s27, [#allocation6], 256, 256, 16
    $region9: #{tpu_custom_call.1} parent=1 // pred_fallthru
      _
    // Predicated region
    $region10: #{tpu_custom_call.1} parent=1 // pred_check
      _
    $region11: #{tpu_custom_call.1} parent=1 // pred_check_branch
      %34 = sbr.rel (0) target = $region13
    $region12: #{tpu_custom_call.1} parent=1 // pred_region
      %s36 = ssub.s32 512, 512
      %37 = vsyncadd [#allocation6], %s36
      %s39 = sshll.u32 [#allocation7], 4
      %s40 = int_to_ptr.vmem [resolvable:$true] %s39
      %42 = dma.hbm_to_vmem [thread:$0]  %s2, 512, %s40, [#allocation6]
    $region13: #{tpu_custom_call.1} parent=1 // pred_fallthru
      _
    // Predicated region
    $region14: #{tpu_custom_call.1} parent=1 // pred_check
      _
    $region15: #{tpu_custom_call.1} parent=1 // pred_check_branch
      %44 = sbr.rel (0) target = $region17
    $region16: #{tpu_custom_call.1} parent=1 // pred_region
      %45 = dma.done [#allocation3], 128
    $region17: #{tpu_custom_call.1} parent=1 // pred_fallthru
      _
    // Predicated region
    $region18: #{tpu_custom_call.1} parent=1 // pred_check
      _
    $region19: #{tpu_custom_call.1} parent=1 // pred_check_branch
      %47 = sbr.rel (0) target = $region21
    $region20: #{tpu_custom_call.1} parent=1 // pred_region
      %48 = dma.done [#allocation6], 40960
    $region21: #{tpu_custom_call.1} parent=1 // pred_fallthru
      _
    // Predicated region
    $region22: #{tpu_custom_call.1} parent=1 // pred_check
      _
    $region23: #{tpu_custom_call.1} parent=1 // pred_check_branch
      %50 = sbr.rel (0) target = $region25
    $region24: #{tpu_custom_call.1} parent=1 // pred_region
      %51 = dma.done [#allocation6], 512
    $region25: #{tpu_custom_call.1} parent=1 // pred_fallthru
      _
    %v53 = vld [vmem:[#allocation2] sm:$0xff]
    %v54 = vpack.c.bf16 %v53, %v53
    %v55 = vld [vmem:[#allocation5 + $0x608] sm:$0xff]
    %v56 = vld [vmem:[#allocation5 + $0x618] sm:$0xff]
    %v57 = vld [vmem:[#allocation5 + $0x628] sm:$0xff]
    %v58 = vld [vmem:[#allocation5 + $0x638] sm:$0xff]
    %v59 = vld [vmem:[#allocation7] ss:$8 sm:$0x3]
    %v61 = vlaneseq
    %v62 = vshrl.u32 %v61, 7
    %v63 = vsub.s32 0, %v62
    %v64 = vrot.slane %v59, %v63
    %v65 = vlaneseq
    %v66 = vshrl.u32 %v65, 7
    %v67 = vsub.s32 1, %v66
    %v68 = vrot.slane %v59, %v67
    %v75 = vunpack.c.l.b16 %v55
    %v76 = vunpack.c.h.b16 %v55
    %v77 = vunpack.c.l.b16 %v56
    %v78 = vunpack.c.h.b16 %v56
    %v79 = vunpack.c.l.b16 %v57
    %v80 = vunpack.c.h.b16 %v57
    %v81 = vunpack.c.l.b16 %v58
    %v82 = vunpack.c.h.b16 %v58
    %v83 = vpack.c.b16 %v77, %v75
    %v84 = vpack.c.b16 %v78, %v76
    %v85 = vpack.c.b16 %v81, %v79
    %v86 = vpack.c.b16 %v82, %v80
    %vm91 = vcmask 261120
    %v93 = vsel %vm91, %v54, 0
    %95 = vmatprep.subr.bf16.mxu0 %v84
    %96 = vmatpush1.bf16.msra.mxu0 %v83
    %97 = vmatprep.subr.bf16.mxu0 %v86
    %98 = vmatpush1.bf16.msra.mxu0 %v85
    %99 = vmatprep.subr.bf16.mxu0 0
    %100 = vmatpush1.bf16.msra.mxu0 0
    %101 = vmatprep.subr.bf16.mxu0 0
    %102 = vmatpush1.bf16.msra.mxu0 0
    %103 = vmatprep.subr.bf16.mxu0 0
    %104 = vmatpush1.bf16.msra.mxu0 0
    %105 = vmatprep.subr.bf16.mxu0 0
    %106 = vmatpush1.bf16.msra.mxu0 0
    %107 = vmatprep.subr.bf16.mxu0 0
    %108 = vmatpush1.bf16.msra.mxu0 0
    %109 = vmatprep.subr.bf16.mxu0 0
    %110 = vmatpush1.bf16.msra.mxu0 0
    %111 = vmatprep.subr.bf16.mxu0 0
    %112 = vmatpush1.bf16.msra.mxu0 0
    %113 = vmatprep.subr.bf16.mxu0 0
    %114 = vmatpush1.bf16.msra.mxu0 0
    %115 = vmatprep.subr.bf16.mxu0 0
    %116 = vmatpush1.bf16.msra.mxu0 0
    %117 = vmatprep.subr.bf16.mxu0 0
    %118 = vmatpush1.bf16.msra.mxu0 0
    %119 = vmatprep.subr.bf16.mxu0 0
    %120 = vmatpush1.bf16.msra.mxu0 0
    %121 = vmatprep.subr.bf16.mxu0 0
    %122 = vmatpush1.bf16.msra.mxu0 0
    %123 = vmatprep.subr.bf16.mxu0 0
    %124 = vmatpush1.bf16.msra.mxu0 0
    %125 = vmatprep.subr.bf16.mxu0 0
    %126 = vmatpush1.bf16.msra.mxu0 0
    %127 = vmatprep.mubr.bf16.mxu0 0
    %128 = vmatmul.mubr.bf16.gmra.mrb[0].mxu0 %v93
    %v129 = vpop.f32.mrb[0].mxu0
    %v130 = vadd.f32 %v64, %v129
    %v131 = vpop.f32.mrb[0].mxu0
    %v132 = vadd.f32 %v68, %v131
    %v133 = vpop.f32.mrb[0].mxu0
    %v134 = vpop.f32.mrb[0].mxu0
    %135 = vdwg.mxu0
    %v136 = vmax.f32 %v130, 0.0
    %v137 = vmax.f32 %v132, 0.0
    %v138 = vpack.c.bf16 %v136, %v136
    %v139 = vpack.c.bf16 %v137, %v137
    %v140 = vld [vmem:[#allocation5 + $0x400] sm:$0xff]
    %v141 = vld [vmem:[#allocation5 + $0x408] sm:$0xff]
    %v142 = vld [vmem:[#allocation5 + $0x410] sm:$0xff]
    %v143 = vld [vmem:[#allocation5 + $0x418] sm:$0xff]
    %v144 = vld [vmem:[#allocation5 + $0x420] sm:$0xff]
    %v145 = vld [vmem:[#allocation5 + $0x428] sm:$0xff]
    %v146 = vld [vmem:[#allocation5 + $0x430] sm:$0xff]
    %v147 = vld [vmem:[#allocation5 + $0x438] sm:$0xff]
    %v148 = vld [vmem:[#allocation5 + $0x440] sm:$0xff]
    %v149 = vld [vmem:[#allocation5 + $0x448] sm:$0xff]
    %v150 = vld [vmem:[#allocation5 + $0x450] sm:$0xff]
    %v151 = vld [vmem:[#allocation5 + $0x458] sm:$0xff]
    %v152 = vld [vmem:[#allocation5 + $0x460] sm:$0xff]
    %v153 = vld [vmem:[#allocation5 + $0x468] sm:$0xff]
    %v154 = vld [vmem:[#allocation5 + $0x470] sm:$0xff]
    %v155 = vld [vmem:[#allocation5 + $0x478] sm:$0xff]
    %v156 = vld [vmem:[#allocation5 + $0x480] sm:$0xff]
    %v157 = vld [vmem:[#allocation5 + $0x488] sm:$0xff]
    %v158 = vld [vmem:[#allocation5 + $0x490] sm:$0xff]
    %v159 = vld [vmem:[#allocation5 + $0x498] sm:$0xff]
    %v160 = vld [vmem:[#allocation5 + $0x4a0] sm:$0xff]
    %v161 = vld [vmem:[#allocation5 + $0x4a8] sm:$0xff]
    %v162 = vld [vmem:[#allocation5 + $0x4b0] sm:$0xff]
    %v163 = vld [vmem:[#allocation5 + $0x4b8] sm:$0xff]
    %v164 = vld [vmem:[#allocation5 + $0x4c0] sm:$0xff]
    %v165 = vld [vmem:[#allocation5 + $0x4c8] sm:$0xff]
    %v166 = vld [vmem:[#allocation5 + $0x4d0] sm:$0xff]
    %v167 = vld [vmem:[#allocation5 + $0x4d8] sm:$0xff]
    %v168 = vld [vmem:[#allocation5 + $0x4e0] sm:$0xff]
    %v169 = vld [vmem:[#allocation5 + $0x4e8] sm:$0xff]
    %v170 = vld [vmem:[#allocation5 + $0x4f0] sm:$0xff]
    %v171 = vld [vmem:[#allocation5 + $0x4f8] sm:$0xff]
    %v172 = vld [vmem:[#allocation5 + $0x500] sm:$0xff]
    %v173 = vld [vmem:[#allocation5 + $0x508] sm:$0xff]
    %v174 = vld [vmem:[#allocation5 + $0x510] sm:$0xff]
    %v175 = vld [vmem:[#allocation5 + $0x518] sm:$0xff]
    %v176 = vld [vmem:[#allocation5 + $0x520] sm:$0xff]
    %v177 = vld [vmem:[#allocation5 + $0x528] sm:$0xff]
    %v178 = vld [vmem:[#allocation5 + $0x530] sm:$0xff]
    %v179 = vld [vmem:[#allocation5 + $0x538] sm:$0xff]
    %v180 = vld [vmem:[#allocation5 + $0x540] sm:$0xff]
    %v181 = vld [vmem:[#allocation5 + $0x548] sm:$0xff]
    %v182 = vld [vmem:[#allocation5 + $0x550] sm:$0xff]
    %v183 = vld [vmem:[#allocation5 + $0x558] sm:$0xff]
    %v184 = vld [vmem:[#allocation5 + $0x560] sm:$0xff]
    %v185 = vld [vmem:[#allocation5 + $0x568] sm:$0xff]
    %v186 = vld [vmem:[#allocation5 + $0x570] sm:$0xff]
    %v187 = vld [vmem:[#allocation5 + $0x578] sm:$0xff]
    %v188 = vld [vmem:[#allocation5 + $0x580] sm:$0xff]
    %v189 = vld [vmem:[#allocation5 + $0x588] sm:$0xff]
    %v190 = vld [vmem:[#allocation5 + $0x590] sm:$0xff]
    %v191 = vld [vmem:[#allocation5 + $0x598] sm:$0xff]
    %v192 = vld [vmem:[#allocation5 + $0x5a0] sm:$0xff]
    %v193 = vld [vmem:[#allocation5 + $0x5a8] sm:$0xff]
    %v194 = vld [vmem:[#allocation5 + $0x5b0] sm:$0xff]
    %v195 = vld [vmem:[#allocation5 + $0x5b8] sm:$0xff]
    %v196 = vld [vmem:[#allocation5 + $0x5c0] sm:$0xff]
    %v197 = vld [vmem:[#allocation5 + $0x5c8] sm:$0xff]
    %v198 = vld [vmem:[#allocation5 + $0x5d0] sm:$0xff]
    %v199 = vld [vmem:[#allocation5 + $0x5d8] sm:$0xff]
    %v200 = vld [vmem:[#allocation5 + $0x5e0] sm:$0xff]
    %v201 = vld [vmem:[#allocation5 + $0x5e8] sm:$0xff]
    %v202 = vld [vmem:[#allocation5 + $0x5f0] sm:$0xff]
    %v203 = vld [vmem:[#allocation5 + $0x5f8] sm:$0xff]
    %s204 = scalar_lea.vmem [#allocation7], 1
    %v205 = vld [vmem:[%s204] ss:$8 sm:$0xf]
    %v207 = vlaneseq
    %v208 = vshrl.u32 %v207, 7
    %v209 = vsub.s32 0, %v208
    %v210 = vrot.slane %v205, %v209
    %v211 = vlaneseq
    %v212 = vshrl.u32 %v211, 7
    %v213 = vsub.s32 1, %v212
    %v214 = vrot.slane %v205, %v213
    %v215 = vlaneseq
    %v216 = vshrl.u32 %v215, 7
    %v217 = vsub.s32 2, %v216
    %v218 = vrot.slane %v205, %v217
    %v219 = vlaneseq
    %v220 = vshrl.u32 %v219, 7
    %v221 = vsub.s32 3, %v220
    %v222 = vrot.slane %v205, %v221
    %v291 = vunpack.c.l.b16 %v140
    %v292 = vunpack.c.h.b16 %v140
    %v293 = vunpack.c.l.b16 %v141
    %v294 = vunpack.c.h.b16 %v141
    %v295 = vunpack.c.l.b16 %v142
    %v296 = vunpack.c.h.b16 %v142
    %v297 = vunpack.c.l.b16 %v143
    %v298 = vunpack.c.h.b16 %v143
    %v299 = vunpack.c.l.b16 %v144
    %v300 = vunpack.c.h.b16 %v144
    %v301 = vunpack.c.l.b16 %v145
    %v302 = vunpack.c.h.b16 %v145
    %v303 = vunpack.c.l.b16 %v146
    %v304 = vunpack.c.h.b16 %v146
    %v305 = vunpack.c.l.b16 %v147
    %v306 = vunpack.c.h.b16 %v147
    %v307 = vunpack.c.l.b16 %v148
    %v308 = vunpack.c.h.b16 %v148
    %v309 = vunpack.c.l.b16 %v149
    %v310 = vunpack.c.h.b16 %v149
    %v311 = vunpack.c.l.b16 %v150
    %v312 = vunpack.c.h.b16 %v150
    %v313 = vunpack.c.l.b16 %v151
    %v314 = vunpack.c.h.b16 %v151
    %v315 = vunpack.c.l.b16 %v152
    %v316 = vunpack.c.h.b16 %v152
    %v317 = vunpack.c.l.b16 %v153
    %v318 = vunpack.c.h.b16 %v153
    %v319 = vunpack.c.l.b16 %v154
    %v320 = vunpack.c.h.b16 %v154
    %v321 = vunpack.c.l.b16 %v155
    %v322 = vunpack.c.h.b16 %v155
    %v323 = vunpack.c.l.b16 %v156
    %v324 = vunpack.c.h.b16 %v156
    %v325 = vunpack.c.l.b16 %v157
    %v326 = vunpack.c.h.b16 %v157
    %v327 = vunpack.c.l.b16 %v158
    %v328 = vunpack.c.h.b16 %v158
    %v329 = vunpack.c.l.b16 %v159
    %v330 = vunpack.c.h.b16 %v159
    %v331 = vunpack.c.l.b16 %v160
    %v332 = vunpack.c.h.b16 %v160
    %v333 = vunpack.c.l.b16 %v161
    %v334 = vunpack.c.h.b16 %v161
    %v335 = vunpack.c.l.b16 %v162
    %v336 = vunpack.c.h.b16 %v162
    %v337 = vunpack.c.l.b16 %v163
    %v338 = vunpack.c.h.b16 %v163
    %v339 = vunpack.c.l.b16 %v164
    %v340 = vunpack.c.h.b16 %v164
    %v341 = vunpack.c.l.b16 %v165
    %v342 = vunpack.c.h.b16 %v165
    %v343 = vunpack.c.l.b16 %v166
    %v344 = vunpack.c.h.b16 %v166
    %v345 = vunpack.c.l.b16 %v167
    %v346 = vunpack.c.h.b16 %v167
    %v347 = vunpack.c.l.b16 %v168
    %v348 = vunpack.c.h.b16 %v168
    %v349 = vunpack.c.l.b16 %v169
    %v350 = vunpack.c.h.b16 %v169
    %v351 = vunpack.c.l.b16 %v170
    %v352 = vunpack.c.h.b16 %v170
    %v353 = vunpack.c.l.b16 %v171
    %v354 = vunpack.c.h.b16 %v171
    %v355 = vunpack.c.l.b16 %v172
    %v356 = vunpack.c.h.b16 %v172
    %v357 = vunpack.c.l.b16 %v173
    %v358 = vunpack.c.h.b16 %v173
    %v359 = vunpack.c.l.b16 %v174
    %v360 = vunpack.c.h.b16 %v174
    %v361 = vunpack.c.l.b16 %v175
    %v362 = vunpack.c.h.b16 %v175
    %v363 = vunpack.c.l.b16 %v176
    %v364 = vunpack.c.h.b16 %v176
    %v365 = vunpack.c.l.b16 %v177
    %v366 = vunpack.c.h.b16 %v177
    %v367 = vunpack.c.l.b16 %v178
    %v368 = vunpack.c.h.b16 %v178
    %v369 = vunpack.c.l.b16 %v179
    %v370 = vunpack.c.h.b16 %v179
    %v371 = vunpack.c.l.b16 %v180
    %v372 = vunpack.c.h.b16 %v180
    %v373 = vunpack.c.l.b16 %v181
    %v374 = vunpack.c.h.b16 %v181
    %v375 = vunpack.c.l.b16 %v182
    %v376 = vunpack.c.h.b16 %v182
    %v377 = vunpack.c.l.b16 %v183
    %v378 = vunpack.c.h.b16 %v183
    %v379 = vunpack.c.l.b16 %v184
    %v380 = vunpack.c.h.b16 %v184
    %v381 = vunpack.c.l.b16 %v185
    %v382 = vunpack.c.h.b16 %v185
    %v383 = vunpack.c.l.b16 %v186
    %v384 = vunpack.c.h.b16 %v186
    %v385 = vunpack.c.l.b16 %v187
    %v386 = vunpack.c.h.b16 %v187
    %v387 = vunpack.c.l.b16 %v188
    %v388 = vunpack.c.h.b16 %v188
    %v389 = vunpack.c.l.b16 %v189
    %v390 = vunpack.c.h.b16 %v189
    %v391 = vunpack.c.l.b16 %v190
    %v392 = vunpack.c.h.b16 %v190
    %v393 = vunpack.c.l.b16 %v191
    %v394 = vunpack.c.h.b16 %v191
    %v395 = vunpack.c.l.b16 %v192
    %v396 = vunpack.c.h.b16 %v192
    %v397 = vunpack.c.l.b16 %v193
    %v398 = vunpack.c.h.b16 %v193
    %v399 = vunpack.c.l.b16 %v194
    %v400 = vunpack.c.h.b16 %v194
    %v401 = vunpack.c.l.b16 %v195
    %v402 = vunpack.c.h.b16 %v195
    %v403 = vunpack.c.l.b16 %v196
    %v404 = vunpack.c.h.b16 %v196
    %v405 = vunpack.c.l.b16 %v197
    %v406 = vunpack.c.h.b16 %v197
    %v407 = vunpack.c.l.b16 %v198
    %v408 = vunpack.c.h.b16 %v198
    %v409 = vunpack.c.l.b16 %v199
    %v410 = vunpack.c.h.b16 %v199
    %v411 = vunpack.c.l.b16 %v200
    %v412 = vunpack.c.h.b16 %v200
    %v413 = vunpack.c.l.b16 %v201
    %v414 = vunpack.c.h.b16 %v201
    %v415 = vunpack.c.l.b16 %v202
    %v416 = vunpack.c.h.b16 %v202
    %v417 = vunpack.c.l.b16 %v203
    %v418 = vunpack.c.h.b16 %v203
    %v419 = vpack.c.b16 %v295, %v291
    %v420 = vpack.c.b16 %v296, %v292
    %v421 = vpack.c.b16 %v297, %v293
    %v422 = vpack.c.b16 %v298, %v294
    %v423 = vpack.c.b16 %v303, %v299
    %v424 = vpack.c.b16 %v304, %v300
    %v425 = vpack.c.b16 %v305, %v301
    %v426 = vpack.c.b16 %v306, %v302
    %v427 = vpack.c.b16 %v311, %v307
    %v428 = vpack.c.b16 %v312, %v308
    %v429 = vpack.c.b16 %v313, %v309
    %v430 = vpack.c.b16 %v314, %v310
    %v431 = vpack.c.b16 %v319, %v315
    %v432 = vpack.c.b16 %v320, %v316
    %v433 = vpack.c.b16 %v321, %v317
    %v434 = vpack.c.b16 %v322, %v318
    %v435 = vpack.c.b16 %v327, %v323
    %v436 = vpack.c.b16 %v328, %v324
    %v437 = vpack.c.b16 %v329, %v325
    %v438 = vpack.c.b16 %v330, %v326
    %v439 = vpack.c.b16 %v335, %v331
    %v440 = vpack.c.b16 %v336, %v332
    %v441 = vpack.c.b16 %v337, %v333
    %v442 = vpack.c.b16 %v338, %v334
    %v443 = vpack.c.b16 %v343, %v339
    %v444 = vpack.c.b16 %v344, %v340
    %v445 = vpack.c.b16 %v345, %v341
    %v446 = vpack.c.b16 %v346, %v342
    %v447 = vpack.c.b16 %v351, %v347
    %v448 = vpack.c.b16 %v352, %v348
    %v449 = vpack.c.b16 %v353, %v349
    %v450 = vpack.c.b16 %v354, %v350
    %v451 = vpack.c.b16 %v359, %v355
    %v452 = vpack.c.b16 %v360, %v356
    %v453 = vpack.c.b16 %v361, %v357
    %v454 = vpack.c.b16 %v362, %v358
    %v455 = vpack.c.b16 %v367, %v363
    %v456 = vpack.c.b16 %v368, %v364
    %v457 = vpack.c.b16 %v369, %v365
    %v458 = vpack.c.b16 %v370, %v366
    %v459 = vpack.c.b16 %v375, %v371
    %v460 = vpack.c.b16 %v376, %v372
    %v461 = vpack.c.b16 %v377, %v373
    %v462 = vpack.c.b16 %v378, %v374
    %v463 = vpack.c.b16 %v383, %v379
    %v464 = vpack.c.b16 %v384, %v380
    %v465 = vpack.c.b16 %v385, %v381
    %v466 = vpack.c.b16 %v386, %v382
    %v467 = vpack.c.b16 %v391, %v387
    %v468 = vpack.c.b16 %v392, %v388
    %v469 = vpack.c.b16 %v393, %v389
    %v470 = vpack.c.b16 %v394, %v390
    %v471 = vpack.c.b16 %v399, %v395
    %v472 = vpack.c.b16 %v400, %v396
    %v473 = vpack.c.b16 %v401, %v397
    %v474 = vpack.c.b16 %v402, %v398
    %v475 = vpack.c.b16 %v407, %v403
    %v476 = vpack.c.b16 %v408, %v404
    %v477 = vpack.c.b16 %v409, %v405
    %v478 = vpack.c.b16 %v410, %v406
    %v479 = vpack.c.b16 %v415, %v411
    %v480 = vpack.c.b16 %v416, %v412
    %v481 = vpack.c.b16 %v417, %v413
    %v482 = vpack.c.b16 %v418, %v414
    %547 = vmatprep.subr.bf16.mxu0 %v420
    %548 = vmatpush1.bf16.msra.mxu0 %v419
    %549 = vmatprep.subr.bf16.mxu0 %v424
    %550 = vmatpush1.bf16.msra.mxu0 %v423
    %551 = vmatprep.subr.bf16.mxu0 %v428
    %552 = vmatpush1.bf16.msra.mxu0 %v427
    %553 = vmatprep.subr.bf16.mxu0 %v432
    %554 = vmatpush1.bf16.msra.mxu0 %v431
    %555 = vmatprep.subr.bf16.mxu0 %v436
    %556 = vmatpush1.bf16.msra.mxu0 %v435
    %557 = vmatprep.subr.bf16.mxu0 %v440
    %558 = vmatpush1.bf16.msra.mxu0 %v439
    %559 = vmatprep.subr.bf16.mxu0 %v444
    %560 = vmatpush1.bf16.msra.mxu0 %v443
    %561 = vmatprep.subr.bf16.mxu0 %v448
    %562 = vmatpush1.bf16.msra.mxu0 %v447
    %563 = vmatprep.subr.bf16.mxu0 %v452
    %564 = vmatpush1.bf16.msra.mxu0 %v451
    %565 = vmatprep.subr.bf16.mxu0 %v456
    %566 = vmatpush1.bf16.msra.mxu0 %v455
    %567 = vmatprep.subr.bf16.mxu0 %v460
    %568 = vmatpush1.bf16.msra.mxu0 %v459
    %569 = vmatprep.subr.bf16.mxu0 %v464
    %570 = vmatpush1.bf16.msra.mxu0 %v463
    %571 = vmatprep.subr.bf16.mxu0 %v468
    %572 = vmatpush1.bf16.msra.mxu0 %v467
    %573 = vmatprep.subr.bf16.mxu0 %v472
    %574 = vmatpush1.bf16.msra.mxu0 %v471
    %575 = vmatprep.subr.bf16.mxu0 %v476
    %576 = vmatpush1.bf16.msra.mxu0 %v475
    %577 = vmatprep.subr.bf16.mxu0 %v480
    %578 = vmatpush1.bf16.msra.mxu0 %v479
    %579 = vmatprep.mubr.bf16.mxu0 %v139
    %580 = vmatmul.mubr.bf16.gmra.mrb[0].mxu0 %v138
    %v581 = vpop.f32.mrb[0].mxu0
    %v582 = vadd.f32 %v210, %v581
    %v583 = vpop.f32.mrb[0].mxu0
    %v584 = vadd.f32 %v214, %v583
    %v585 = vpop.f32.mrb[0].mxu0
    %v586 = vpop.f32.mrb[0].mxu0
    %587 = vdwg.mxu0
    %588 = vmatprep.subr.bf16.mxu0 %v422
    %589 = vmatpush1.bf16.msra.mxu0 %v421
    %590 = vmatprep.subr.bf16.mxu0 %v426
    %591 = vmatpush1.bf16.msra.mxu0 %v425
    %592 = vmatprep.subr.bf16.mxu0 %v430
    %593 = vmatpush1.bf16.msra.mxu0 %v429
    %594 = vmatprep.subr.bf16.mxu0 %v434
    %595 = vmatpush1.bf16.msra.mxu0 %v433
    %596 = vmatprep.subr.bf16.mxu0 %v438
    %597 = vmatpush1.bf16.msra.mxu0 %v437
    %598 = vmatprep.subr.bf16.mxu0 %v442
    %599 = vmatpush1.bf16.msra.mxu0 %v441
    %600 = vmatprep.subr.bf16.mxu0 %v446
    %601 = vmatpush1.bf16.msra.mxu0 %v445
    %602 = vmatprep.subr.bf16.mxu0 %v450
    %603 = vmatpush1.bf16.msra.mxu0 %v449
    %604 = vmatprep.subr.bf16.mxu0 %v454
    %605 = vmatpush1.bf16.msra.mxu0 %v453
    %606 = vmatprep.subr.bf16.mxu0 %v458
    %607 = vmatpush1.bf16.msra.mxu0 %v457
    %608 = vmatprep.subr.bf16.mxu0 %v462
    %609 = vmatpush1.bf16.msra.mxu0 %v461
    %610 = vmatprep.subr.bf16.mxu0 %v466
    %611 = vmatpush1.bf16.msra.mxu0 %v465
    %612 = vmatprep.subr.bf16.mxu0 %v470
    %613 = vmatpush1.bf16.msra.mxu0 %v469
    %614 = vmatprep.subr.bf16.mxu0 %v474
    %615 = vmatpush1.bf16.msra.mxu0 %v473
    %616 = vmatprep.subr.bf16.mxu0 %v478
    %617 = vmatpush1.bf16.msra.mxu0 %v477
    %618 = vmatprep.subr.bf16.mxu0 %v482
    %619 = vmatpush1.bf16.msra.mxu0 %v481
    %620 = vmatprep.mubr.bf16.mxu0 %v139
    %621 = vmatmul.mubr.bf16.gmra.mrb[0].mxu0 %v138
    %v622 = vpop.f32.mrb[0].mxu0
    %v623 = vadd.f32 %v218, %v622
    %v624 = vpop.f32.mrb[0].mxu0
    %v625 = vadd.f32 %v222, %v624
    %v626 = vpop.f32.mrb[0].mxu0
    %v627 = vpop.f32.mrb[0].mxu0
    %628 = vdwg.mxu0
    %v629 = vmax.f32 %v582, 0.0
    %v630 = vmax.f32 %v584, 0.0
    %v631 = vmax.f32 %v623, 0.0
    %v632 = vmax.f32 %v625, 0.0
    %v633 = vpack.c.bf16 %v629, %v629
    %v634 = vpack.c.bf16 %v630, %v630
    %v635 = vpack.c.bf16 %v631, %v631
    %v636 = vpack.c.bf16 %v632, %v632
    %v637 = vld [vmem:[#allocation5] sm:$0xff]
    %v638 = vld [vmem:[#allocation5 + $0x8] sm:$0xff]
    %v639 = vld [vmem:[#allocation5 + $0x10] sm:$0xff]
    %v640 = vld [vmem:[#allocation5 + $0x18] sm:$0xff]
    %v641 = vld [vmem:[#allocation5 + $0x20] sm:$0xff]
    %v642 = vld [vmem:[#allocation5 + $0x28] sm:$0xff]
    %v643 = vld [vmem:[#allocation5 + $0x30] sm:$0xff]
    %v644 = vld [vmem:[#allocation5 + $0x38] sm:$0xff]
    %v645 = vld [vmem:[#allocation5 + $0x40] sm:$0xff]
    %v646 = vld [vmem:[#allocation5 + $0x48] sm:$0xff]
    %v647 = vld [vmem:[#allocation5 + $0x50] sm:$0xff]
    %v648 = vld [vmem:[#allocation5 + $0x58] sm:$0xff]
    %v649 = vld [vmem:[#allocation5 + $0x60] sm:$0xff]
    %v650 = vld [vmem:[#allocation5 + $0x68] sm:$0xff]
    %v651 = vld [vmem:[#allocation5 + $0x70] sm:$0xff]
    %v652 = vld [vmem:[#allocation5 + $0x78] sm:$0xff]
    %v653 = vld [vmem:[#allocation5 + $0x80] sm:$0xff]
    %v654 = vld [vmem:[#allocation5 + $0x88] sm:$0xff]
    %v655 = vld [vmem:[#allocation5 + $0x90] sm:$0xff]
    %v656 = vld [vmem:[#allocation5 + $0x98] sm:$0xff]
    %v657 = vld [vmem:[#allocation5 + $0xa0] sm:$0xff]
    %v658 = vld [vmem:[#allocation5 + $0xa8] sm:$0xff]
    %v659 = vld [vmem:[#allocation5 + $0xb0] sm:$0xff]
    %v660 = vld [vmem:[#allocation5 + $0xb8] sm:$0xff]
    %v661 = vld [vmem:[#allocation5 + $0xc0] sm:$0xff]
    %v662 = vld [vmem:[#allocation5 + $0xc8] sm:$0xff]
    %v663 = vld [vmem:[#allocation5 + $0xd0] sm:$0xff]
    %v664 = vld [vmem:[#allocation5 + $0xd8] sm:$0xff]
    %v665 = vld [vmem:[#allocation5 + $0xe0] sm:$0xff]
    %v666 = vld [vmem:[#allocation5 + $0xe8] sm:$0xff]
    %v667 = vld [vmem:[#allocation5 + $0xf0] sm:$0xff]
    %v668 = vld [vmem:[#allocation5 + $0xf8] sm:$0xff]
    %v669 = vld [vmem:[#allocation5 + $0x100] sm:$0xff]
    %v670 = vld [vmem:[#allocation5 + $0x108] sm:$0xff]
    %v671 = vld [vmem:[#allocation5 + $0x110] sm:$0xff]
    %v672 = vld [vmem:[#allocation5 + $0x118] sm:$0xff]
    %v673 = vld [vmem:[#allocation5 + $0x120] sm:$0xff]
    %v674 = vld [vmem:[#allocation5 + $0x128] sm:$0xff]
    %v675 = vld [vmem:[#allocation5 + $0x130] sm:$0xff]
    %v676 = vld [vmem:[#allocation5 + $0x138] sm:$0xff]
    %v677 = vld [vmem:[#allocation5 + $0x140] sm:$0xff]
    %v678 = vld [vmem:[#allocation5 + $0x148] sm:$0xff]
    %v679 = vld [vmem:[#allocation5 + $0x150] sm:$0xff]
    %v680 = vld [vmem:[#allocation5 + $0x158] sm:$0xff]
    %v681 = vld [vmem:[#allocation5 + $0x160] sm:$0xff]
    %v682 = vld [vmem:[#allocation5 + $0x168] sm:$0xff]
    %v683 = vld [vmem:[#allocation5 + $0x170] sm:$0xff]
    %v684 = vld [vmem:[#allocation5 + $0x178] sm:$0xff]
    %v685 = vld [vmem:[#allocation5 + $0x180] sm:$0xff]
    %v686 = vld [vmem:[#allocation5 + $0x188] sm:$0xff]
    %v687 = vld [vmem:[#allocation5 + $0x190] sm:$0xff]
    %v688 = vld [vmem:[#allocation5 + $0x198] sm:$0xff]
    %v689 = vld [vmem:[#allocation5 + $0x1a0] sm:$0xff]
    %v690 = vld [vmem:[#allocation5 + $0x1a8] sm:$0xff]
    %v691 = vld [vmem:[#allocation5 + $0x1b0] sm:$0xff]
    %v692 = vld [vmem:[#allocation5 + $0x1b8] sm:$0xff]
    %v693 = vld [vmem:[#allocation5 + $0x1c0] sm:$0xff]
    %v694 = vld [vmem:[#allocation5 + $0x1c8] sm:$0xff]
    %v695 = vld [vmem:[#allocation5 + $0x1d0] sm:$0xff]
    %v696 = vld [vmem:[#allocation5 + $0x1d8] sm:$0xff]
    %v697 = vld [vmem:[#allocation5 + $0x1e0] sm:$0xff]
    %v698 = vld [vmem:[#allocation5 + $0x1e8] sm:$0xff]
    %v699 = vld [vmem:[#allocation5 + $0x1f0] sm:$0xff]
    %v700 = vld [vmem:[#allocation5 + $0x1f8] sm:$0xff]
    %v701 = vld [vmem:[#allocation5 + $0x200] sm:$0xff]
    %v702 = vld [vmem:[#allocation5 + $0x208] sm:$0xff]
    %v703 = vld [vmem:[#allocation5 + $0x210] sm:$0xff]
    %v704 = vld [vmem:[#allocation5 + $0x218] sm:$0xff]
    %v705 = vld [vmem:[#allocation5 + $0x220] sm:$0xff]
    %v706 = vld [vmem:[#allocation5 + $0x228] sm:$0xff]
    %v707 = vld [vmem:[#allocation5 + $0x230] sm:$0xff]
    %v708 = vld [vmem:[#allocation5 + $0x238] sm:$0xff]
    %v709 = vld [vmem:[#allocation5 + $0x240] sm:$0xff]
    %v710 = vld [vmem:[#allocation5 + $0x248] sm:$0xff]
    %v711 = vld [vmem:[#allocation5 + $0x250] sm:$0xff]
    %v712 = vld [vmem:[#allocation5 + $0x258] sm:$0xff]
    %v713 = vld [vmem:[#allocation5 + $0x260] sm:$0xff]
    %v714 = vld [vmem:[#allocation5 + $0x268] sm:$0xff]
    %v715 = vld [vmem:[#allocation5 + $0x270] sm:$0xff]
    %v716 = vld [vmem:[#allocation5 + $0x278] sm:$0xff]
    %v717 = vld [vmem:[#allocation5 + $0x280] sm:$0xff]
    %v718 = vld [vmem:[#allocation5 + $0x288] sm:$0xff]
    %v719 = vld [vmem:[#allocation5 + $0x290] sm:$0xff]
    %v720 = vld [vmem:[#allocation5 + $0x298] sm:$0xff]
    %v721 = vld [vmem:[#allocation5 + $0x2a0] sm:$0xff]
    %v722 = vld [vmem:[#allocation5 + $0x2a8] sm:$0xff]
    %v723 = vld [vmem:[#allocation5 + $0x2b0] sm:$0xff]
    %v724 = vld [vmem:[#allocation5 + $0x2b8] sm:$0xff]
    %v725 = vld [vmem:[#allocation5 + $0x2c0] sm:$0xff]
    %v726 = vld [vmem:[#allocation5 + $0x2c8] sm:$0xff]
    %v727 = vld [vmem:[#allocation5 + $0x2d0] sm:$0xff]
    %v728 = vld [vmem:[#allocation5 + $0x2d8] sm:$0xff]
    %v729 = vld [vmem:[#allocation5 + $0x2e0] sm:$0xff]
    %v730 = vld [vmem:[#allocation5 + $0x2e8] sm:$0xff]
    %v731 = vld [vmem:[#allocation5 + $0x2f0] sm:$0xff]
    %v732 = vld [vmem:[#allocation5 + $0x2f8] sm:$0xff]
    %v733 = vld [vmem:[#allocation5 + $0x300] sm:$0xff]
    %v734 = vld [vmem:[#allocation5 + $0x308] sm:$0xff]
    %v735 = vld [vmem:[#allocation5 + $0x310] sm:$0xff]
    %v736 = vld [vmem:[#allocation5 + $0x318] sm:$0xff]
    %v737 = vld [vmem:[#allocation5 + $0x320] sm:$0xff]
    %v738 = vld [vmem:[#allocation5 + $0x328] sm:$0xff]
    %v739 = vld [vmem:[#allocation5 + $0x330] sm:$0xff]
    %v740 = vld [vmem:[#allocation5 + $0x338] sm:$0xff]
    %v741 = vld [vmem:[#allocation5 + $0x340] sm:$0xff]
    %v742 = vld [vmem:[#allocation5 + $0x348] sm:$0xff]
    %v743 = vld [vmem:[#allocation5 + $0x350] sm:$0xff]
    %v744 = vld [vmem:[#allocation5 + $0x358] sm:$0xff]
    %v745 = vld [vmem:[#allocation5 + $0x360] sm:$0xff]
    %v746 = vld [vmem:[#allocation5 + $0x368] sm:$0xff]
    %v747 = vld [vmem:[#allocation5 + $0x370] sm:$0xff]
    %v748 = vld [vmem:[#allocation5 + $0x378] sm:$0xff]
    %v749 = vld [vmem:[#allocation5 + $0x380] sm:$0xff]
    %v750 = vld [vmem:[#allocation5 + $0x388] sm:$0xff]
    %v751 = vld [vmem:[#allocation5 + $0x390] sm:$0xff]
    %v752 = vld [vmem:[#allocation5 + $0x398] sm:$0xff]
    %v753 = vld [vmem:[#allocation5 + $0x3a0] sm:$0xff]
    %v754 = vld [vmem:[#allocation5 + $0x3a8] sm:$0xff]
    %v755 = vld [vmem:[#allocation5 + $0x3b0] sm:$0xff]
    %v756 = vld [vmem:[#allocation5 + $0x3b8] sm:$0xff]
    %v757 = vld [vmem:[#allocation5 + $0x3c0] sm:$0xff]
    %v758 = vld [vmem:[#allocation5 + $0x3c8] sm:$0xff]
    %v759 = vld [vmem:[#allocation5 + $0x3d0] sm:$0xff]
    %v760 = vld [vmem:[#allocation5 + $0x3d8] sm:$0xff]
    %v761 = vld [vmem:[#allocation5 + $0x3e0] sm:$0xff]
    %v762 = vld [vmem:[#allocation5 + $0x3e8] sm:$0xff]
    %v763 = vld [vmem:[#allocation5 + $0x3f0] sm:$0xff]
    %v764 = vld [vmem:[#allocation5 + $0x3f8] sm:$0xff]
    %s765 = scalar_lea.vmem [#allocation7], 2
    %v766 = vld [vmem:[%s765] ss:$8 sm:$0xf]
    %v768 = vlaneseq
    %v769 = vshrl.u32 %v768, 7
    %v770 = vsub.s32 0, %v769
    %v771 = vrot.slane %v766, %v770
    %v772 = vlaneseq
    %v773 = vshrl.u32 %v772, 7
    %v774 = vsub.s32 1, %v773
    %v775 = vrot.slane %v766, %v774
    %v776 = vlaneseq
    %v777 = vshrl.u32 %v776, 7
    %v778 = vsub.s32 2, %v777
    %v779 = vrot.slane %v766, %v778
    %v780 = vlaneseq
    %v781 = vshrl.u32 %v780, 7
    %v782 = vsub.s32 3, %v781
    %v783 = vrot.slane %v766, %v782
    %v916 = vunpack.c.l.b16 %v637
    %v917 = vunpack.c.h.b16 %v637
    %v918 = vunpack.c.l.b16 %v638
    %v919 = vunpack.c.h.b16 %v638
    %v920 = vunpack.c.l.b16 %v639
    %v921 = vunpack.c.h.b16 %v639
    %v922 = vunpack.c.l.b16 %v640
    %v923 = vunpack.c.h.b16 %v640
    %v924 = vunpack.c.l.b16 %v641
    %v925 = vunpack.c.h.b16 %v641
    %v926 = vunpack.c.l.b16 %v642
    %v927 = vunpack.c.h.b16 %v642
    %v928 = vunpack.c.l.b16 %v643
    %v929 = vunpack.c.h.b16 %v643
    %v930 = vunpack.c.l.b16 %v644
    %v931 = vunpack.c.h.b16 %v644
    %v932 = vunpack.c.l.b16 %v645
    %v933 = vunpack.c.h.b16 %v645
    %v934 = vunpack.c.l.b16 %v646
    %v935 = vunpack.c.h.b16 %v646
    %v936 = vunpack.c.l.b16 %v647
    %v937 = vunpack.c.h.b16 %v647
    %v938 = vunpack.c.l.b16 %v648
    %v939 = vunpack.c.h.b16 %v648
    %v940 = vunpack.c.l.b16 %v649
    %v941 = vunpack.c.h.b16 %v649
    %v942 = vunpack.c.l.b16 %v650
    %v943 = vunpack.c.h.b16 %v650
    %v944 = vunpack.c.l.b16 %v651
    %v945 = vunpack.c.h.b16 %v651
    %v946 = vunpack.c.l.b16 %v652
    %v947 = vunpack.c.h.b16 %v652
    %v948 = vunpack.c.l.b16 %v653
    %v949 = vunpack.c.h.b16 %v653
    %v950 = vunpack.c.l.b16 %v654
    %v951 = vunpack.c.h.b16 %v654
    %v952 = vunpack.c.l.b16 %v655
    %v953 = vunpack.c.h.b16 %v655
    %v954 = vunpack.c.l.b16 %v656
    %v955 = vunpack.c.h.b16 %v656
    %v956 = vunpack.c.l.b16 %v657
    %v957 = vunpack.c.h.b16 %v657
    %v958 = vunpack.c.l.b16 %v658
    %v959 = vunpack.c.h.b16 %v658
    %v960 = vunpack.c.l.b16 %v659
    %v961 = vunpack.c.h.b16 %v659
    %v962 = vunpack.c.l.b16 %v660
    %v963 = vunpack.c.h.b16 %v660
    %v964 = vunpack.c.l.b16 %v661
    %v965 = vunpack.c.h.b16 %v661
    %v966 = vunpack.c.l.b16 %v662
    %v967 = vunpack.c.h.b16 %v662
    %v968 = vunpack.c.l.b16 %v663
    %v969 = vunpack.c.h.b16 %v663
    %v970 = vunpack.c.l.b16 %v664
    %v971 = vunpack.c.h.b16 %v664
    %v972 = vunpack.c.l.b16 %v665
    %v973 = vunpack.c.h.b16 %v665
    %v974 = vunpack.c.l.b16 %v666
    %v975 = vunpack.c.h.b16 %v666
    %v976 = vunpack.c.l.b16 %v667
    %v977 = vunpack.c.h.b16 %v667
    %v978 = vunpack.c.l.b16 %v668
    %v979 = vunpack.c.h.b16 %v668
    %v980 = vunpack.c.l.b16 %v669
    %v981 = vunpack.c.h.b16 %v669
    %v982 = vunpack.c.l.b16 %v670
    %v983 = vunpack.c.h.b16 %v670
    %v984 = vunpack.c.l.b16 %v671
    %v985 = vunpack.c.h.b16 %v671
    %v986 = vunpack.c.l.b16 %v672
    %v987 = vunpack.c.h.b16 %v672
    %v988 = vunpack.c.l.b16 %v673
    %v989 = vunpack.c.h.b16 %v673
    %v990 = vunpack.c.l.b16 %v674
    %v991 = vunpack.c.h.b16 %v674
    %v992 = vunpack.c.l.b16 %v675
    %v993 = vunpack.c.h.b16 %v675
    %v994 = vunpack.c.l.b16 %v676
    %v995 = vunpack.c.h.b16 %v676
    %v996 = vunpack.c.l.b16 %v677
    %v997 = vunpack.c.h.b16 %v677
    %v998 = vunpack.c.l.b16 %v678
    %v999 = vunpack.c.h.b16 %v678
    %v1000 = vunpack.c.l.b16 %v679
    %v1001 = vunpack.c.h.b16 %v679
    %v1002 = vunpack.c.l.b16 %v680
    %v1003 = vunpack.c.h.b16 %v680
    %v1004 = vunpack.c.l.b16 %v681
    %v1005 = vunpack.c.h.b16 %v681
    %v1006 = vunpack.c.l.b16 %v682
    %v1007 = vunpack.c.h.b16 %v682
    %v1008 = vunpack.c.l.b16 %v683
    %v1009 = vunpack.c.h.b16 %v683
    %v1010 = vunpack.c.l.b16 %v684
    %v1011 = vunpack.c.h.b16 %v684
    %v1012 = vunpack.c.l.b16 %v685
    %v1013 = vunpack.c.h.b16 %v685
    %v1014 = vunpack.c.l.b16 %v686
    %v1015 = vunpack.c.h.b16 %v686
    %v1016 = vunpack.c.l.b16 %v687
    %v1017 = vunpack.c.h.b16 %v687
    %v1018 = vunpack.c.l.b16 %v688
    %v1019 = vunpack.c.h.b16 %v688
    %v1020 = vunpack.c.l.b16 %v689
    %v1021 = vunpack.c.h.b16 %v689
    %v1022 = vunpack.c.l.b16 %v690
    %v1023 = vunpack.c.h.b16 %v690
    %v1024 = vunpack.c.l.b16 %v691
    %v1025 = vunpack.c.h.b16 %v691
    %v1026 = vunpack.c.l.b16 %v692
    %v1027 = vunpack.c.h.b16 %v692
    %v1028 = vunpack.c.l.b16 %v693
    %v1029 = vunpack.c.h.b16 %v693
    %v1030 = vunpack.c.l.b16 %v694
    %v1031 = vunpack.c.h.b16 %v694
    %v1032 = vunpack.c.l.b16 %v695
    %v1033 = vunpack.c.h.b16 %v695
    %v1034 = vunpack.c.l.b16 %v696
    %v1035 = vunpack.c.h.b16 %v696
    %v1036 = vunpack.c.l.b16 %v697
    %v1037 = vunpack.c.h.b16 %v697
    %v1038 = vunpack.c.l.b16 %v698
    %v1039 = vunpack.c.h.b16 %v698
    %v1040 = vunpack.c.l.b16 %v699
    %v1041 = vunpack.c.h.b16 %v699
    %v1042 = vunpack.c.l.b16 %v700
    %v1043 = vunpack.c.h.b16 %v700
    %v1044 = vunpack.c.l.b16 %v701
    %v1045 = vunpack.c.h.b16 %v701
    %v1046 = vunpack.c.l.b16 %v702
    %v1047 = vunpack.c.h.b16 %v702
    %v1048 = vunpack.c.l.b16 %v703
    %v1049 = vunpack.c.h.b16 %v703
    %v1050 = vunpack.c.l.b16 %v704
    %v1051 = vunpack.c.h.b16 %v704
    %v1052 = vunpack.c.l.b16 %v705
    %v1053 = vunpack.c.h.b16 %v705
    %v1054 = vunpack.c.l.b16 %v706
    %v1055 = vunpack.c.h.b16 %v706
    %v1056 = vunpack.c.l.b16 %v707
    %v1057 = vunpack.c.h.b16 %v707
    %v1058 = vunpack.c.l.b16 %v708
    %v1059 = vunpack.c.h.b16 %v708
    %v1060 = vunpack.c.l.b16 %v709
    %v1061 = vunpack.c.h.b16 %v709
    %v1062 = vunpack.c.l.b16 %v710
    %v1063 = vunpack.c.h.b16 %v710
    %v1064 = vunpack.c.l.b16 %v711
    %v1065 = vunpack.c.h.b16 %v711
    %v1066 = vunpack.c.l.b16 %v712
    %v1067 = vunpack.c.h.b16 %v712
    %v1068 = vunpack.c.l.b16 %v713
    %v1069 = vunpack.c.h.b16 %v713
    %v1070 = vunpack.c.l.b16 %v714
    %v1071 = vunpack.c.h.b16 %v714
    %v1072 = vunpack.c.l.b16 %v715
    %v1073 = vunpack.c.h.b16 %v715
    %v1074 = vunpack.c.l.b16 %v716
    %v1075 = vunpack.c.h.b16 %v716
    %v1076 = vunpack.c.l.b16 %v717
    %v1077 = vunpack.c.h.b16 %v717
    %v1078 = vunpack.c.l.b16 %v718
    %v1079 = vunpack.c.h.b16 %v718
    %v1080 = vunpack.c.l.b16 %v719
    %v1081 = vunpack.c.h.b16 %v719
    %v1082 = vunpack.c.l.b16 %v720
    %v1083 = vunpack.c.h.b16 %v720
    %v1084 = vunpack.c.l.b16 %v721
    %v1085 = vunpack.c.h.b16 %v721
    %v1086 = vunpack.c.l.b16 %v722
    %v1087 = vunpack.c.h.b16 %v722
    %v1088 = vunpack.c.l.b16 %v723
    %v1089 = vunpack.c.h.b16 %v723
    %v1090 = vunpack.c.l.b16 %v724
    %v1091 = vunpack.c.h.b16 %v724
    %v1092 = vunpack.c.l.b16 %v725
    %v1093 = vunpack.c.h.b16 %v725
    %v1094 = vunpack.c.l.b16 %v726
    %v1095 = vunpack.c.h.b16 %v726
    %v1096 = vunpack.c.l.b16 %v727
    %v1097 = vunpack.c.h.b16 %v727
    %v1098 = vunpack.c.l.b16 %v728
    %v1099 = vunpack.c.h.b16 %v728
    %v1100 = vunpack.c.l.b16 %v729
    %v1101 = vunpack.c.h.b16 %v729
    %v1102 = vunpack.c.l.b16 %v730
    %v1103 = vunpack.c.h.b16 %v730
    %v1104 = vunpack.c.l.b16 %v731
    %v1105 = vunpack.c.h.b16 %v731
    %v1106 = vunpack.c.l.b16 %v732
    %v1107 = vunpack.c.h.b16 %v732
    %v1108 = vunpack.c.l.b16 %v733
    %v1109 = vunpack.c.h.b16 %v733
    %v1110 = vunpack.c.l.b16 %v734
    %v1111 = vunpack.c.h.b16 %v734
    %v1112 = vunpack.c.l.b16 %v735
    %v1113 = vunpack.c.h.b16 %v735
    %v1114 = vunpack.c.l.b16 %v736
    %v1115 = vunpack.c.h.b16 %v736
    %v1116 = vunpack.c.l.b16 %v737
    %v1117 = vunpack.c.h.b16 %v737
    %v1118 = vunpack.c.l.b16 %v738
    %v1119 = vunpack.c.h.b16 %v738
    %v1120 = vunpack.c.l.b16 %v739
    %v1121 = vunpack.c.h.b16 %v739
    %v1122 = vunpack.c.l.b16 %v740
    %v1123 = vunpack.c.h.b16 %v740
    %v1124 = vunpack.c.l.b16 %v741
    %v1125 = vunpack.c.h.b16 %v741
    %v1126 = vunpack.c.l.b16 %v742
    %v1127 = vunpack.c.h.b16 %v742
    %v1128 = vunpack.c.l.b16 %v743
    %v1129 = vunpack.c.h.b16 %v743
    %v1130 = vunpack.c.l.b16 %v744
    %v1131 = vunpack.c.h.b16 %v744
    %v1132 = vunpack.c.l.b16 %v745
    %v1133 = vunpack.c.h.b16 %v745
    %v1134 = vunpack.c.l.b16 %v746
    %v1135 = vunpack.c.h.b16 %v746
    %v1136 = vunpack.c.l.b16 %v747
    %v1137 = vunpack.c.h.b16 %v747
    %v1138 = vunpack.c.l.b16 %v748
    %v1139 = vunpack.c.h.b16 %v748
    %v1140 = vunpack.c.l.b16 %v749
    %v1141 = vunpack.c.h.b16 %v749
    %v1142 = vunpack.c.l.b16 %v750
    %v1143 = vunpack.c.h.b16 %v750
    %v1144 = vunpack.c.l.b16 %v751
    %v1145 = vunpack.c.h.b16 %v751
    %v1146 = vunpack.c.l.b16 %v752
    %v1147 = vunpack.c.h.b16 %v752
    %v1148 = vunpack.c.l.b16 %v753
    %v1149 = vunpack.c.h.b16 %v753
    %v1150 = vunpack.c.l.b16 %v754
    %v1151 = vunpack.c.h.b16 %v754
    %v1152 = vunpack.c.l.b16 %v755
    %v1153 = vunpack.c.h.b16 %v755
    %v1154 = vunpack.c.l.b16 %v756
    %v1155 = vunpack.c.h.b16 %v756
    %v1156 = vunpack.c.l.b16 %v757
    %v1157 = vunpack.c.h.b16 %v757
    %v1158 = vunpack.c.l.b16 %v758
    %v1159 = vunpack.c.h.b16 %v758
    %v1160 = vunpack.c.l.b16 %v759
    %v1161 = vunpack.c.h.b16 %v759
    %v1162 = vunpack.c.l.b16 %v760
    %v1163 = vunpack.c.h.b16 %v760
    %v1164 = vunpack.c.l.b16 %v761
    %v1165 = vunpack.c.h.b16 %v761
    %v1166 = vunpack.c.l.b16 %v762
    %v1167 = vunpack.c.h.b16 %v762
    %v1168 = vunpack.c.l.b16 %v763
    %v1169 = vunpack.c.h.b16 %v763
    %v1170 = vunpack.c.l.b16 %v764
    %v1171 = vunpack.c.h.b16 %v764
    %v1172 = vpack.c.b16 %v920, %v916
    %v1173 = vpack.c.b16 %v921, %v917
    %v1174 = vpack.c.b16 %v922, %v918
    %v1175 = vpack.c.b16 %v923, %v919
    %v1176 = vpack.c.b16 %v928, %v924
    %v1177 = vpack.c.b16 %v929, %v925
    %v1178 = vpack.c.b16 %v930, %v926
    %v1179 = vpack.c.b16 %v931, %v927
    %v1180 = vpack.c.b16 %v936, %v932
    %v1181 = vpack.c.b16 %v937, %v933
    %v1182 = vpack.c.b16 %v938, %v934
    %v1183 = vpack.c.b16 %v939, %v935
    %v1184 = vpack.c.b16 %v944, %v940
    %v1185 = vpack.c.b16 %v945, %v941
    %v1186 = vpack.c.b16 %v946, %v942
    %v1187 = vpack.c.b16 %v947, %v943
    %v1188 = vpack.c.b16 %v952, %v948
    %v1189 = vpack.c.b16 %v953, %v949
    %v1190 = vpack.c.b16 %v954, %v950
    %v1191 = vpack.c.b16 %v955, %v951
    %v1192 = vpack.c.b16 %v960, %v956
    %v1193 = vpack.c.b16 %v961, %v957
    %v1194 = vpack.c.b16 %v962, %v958
    %v1195 = vpack.c.b16 %v963, %v959
    %v1196 = vpack.c.b16 %v968, %v964
    %v1197 = vpack.c.b16 %v969, %v965
    %v1198 = vpack.c.b16 %v970, %v966
    %v1199 = vpack.c.b16 %v971, %v967
    %v1200 = vpack.c.b16 %v976, %v972
    %v1201 = vpack.c.b16 %v977, %v973
    %v1202 = vpack.c.b16 %v978, %v974
    %v1203 = vpack.c.b16 %v979, %v975
    %v1204 = vpack.c.b16 %v984, %v980
    %v1205 = vpack.c.b16 %v985, %v981
    %v1206 = vpack.c.b16 %v986, %v982
    %v1207 = vpack.c.b16 %v987, %v983
    %v1208 = vpack.c.b16 %v992, %v988
    %v1209 = vpack.c.b16 %v993, %v989
    %v1210 = vpack.c.b16 %v994, %v990
    %v1211 = vpack.c.b16 %v995, %v991
    %v1212 = vpack.c.b16 %v1000, %v996
    %v1213 = vpack.c.b16 %v1001, %v997
    %v1214 = vpack.c.b16 %v1002, %v998
    %v1215 = vpack.c.b16 %v1003, %v999
    %v1216 = vpack.c.b16 %v1008, %v1004
    %v1217 = vpack.c.b16 %v1009, %v1005
    %v1218 = vpack.c.b16 %v1010, %v1006
    %v1219 = vpack.c.b16 %v1011, %v1007
    %v1220 = vpack.c.b16 %v1016, %v1012
    %v1221 = vpack.c.b16 %v1017, %v1013
    %v1222 = vpack.c.b16 %v1018, %v1014
    %v1223 = vpack.c.b16 %v1019, %v1015
    %v1224 = vpack.c.b16 %v1024, %v1020
    %v1225 = vpack.c.b16 %v1025, %v1021
    %v1226 = vpack.c.b16 %v1026, %v1022
    %v1227 = vpack.c.b16 %v1027, %v1023
    %v1228 = vpack.c.b16 %v1032, %v1028
    %v1229 = vpack.c.b16 %v1033, %v1029
    %v1230 = vpack.c.b16 %v1034, %v1030
    %v1231 = vpack.c.b16 %v1035, %v1031
    %v1232 = vpack.c.b16 %v1040, %v1036
    %v1233 = vpack.c.b16 %v1041, %v1037
    %v1234 = vpack.c.b16 %v1042, %v1038
    %v1235 = vpack.c.b16 %v1043, %v1039
    %v1236 = vpack.c.b16 %v1048, %v1044
    %v1237 = vpack.c.b16 %v1049, %v1045
    %v1238 = vpack.c.b16 %v1050, %v1046
    %v1239 = vpack.c.b16 %v1051, %v1047
    %v1240 = vpack.c.b16 %v1056, %v1052
    %v1241 = vpack.c.b16 %v1057, %v1053
    %v1242 = vpack.c.b16 %v1058, %v1054
    %v1243 = vpack.c.b16 %v1059, %v1055
    %v1244 = vpack.c.b16 %v1064, %v1060
    %v1245 = vpack.c.b16 %v1065, %v1061
    %v1246 = vpack.c.b16 %v1066, %v1062
    %v1247 = vpack.c.b16 %v1067, %v1063
    %v1248 = vpack.c.b16 %v1072, %v1068
    %v1249 = vpack.c.b16 %v1073, %v1069
    %v1250 = vpack.c.b16 %v1074, %v1070
    %v1251 = vpack.c.b16 %v1075, %v1071
    %v1252 = vpack.c.b16 %v1080, %v1076
    %v1253 = vpack.c.b16 %v1081, %v1077
    %v1254 = vpack.c.b16 %v1082, %v1078
    %v1255 = vpack.c.b16 %v1083, %v1079
    %v1256 = vpack.c.b16 %v1088, %v1084
    %v1257 = vpack.c.b16 %v1089, %v1085
    %v1258 = vpack.c.b16 %v1090, %v1086
    %v1259 = vpack.c.b16 %v1091, %v1087
    %v1260 = vpack.c.b16 %v1096, %v1092
    %v1261 = vpack.c.b16 %v1097, %v1093
    %v1262 = vpack.c.b16 %v1098, %v1094
    %v1263 = vpack.c.b16 %v1099, %v1095
    %v1264 = vpack.c.b16 %v1104, %v1100
    %v1265 = vpack.c.b16 %v1105, %v1101
    %v1266 = vpack.c.b16 %v1106, %v1102
    %v1267 = vpack.c.b16 %v1107, %v1103
    %v1268 = vpack.c.b16 %v1112, %v1108
    %v1269 = vpack.c.b16 %v1113, %v1109
    %v1270 = vpack.c.b16 %v1114, %v1110
    %v1271 = vpack.c.b16 %v1115, %v1111
    %v1272 = vpack.c.b16 %v1120, %v1116
    %v1273 = vpack.c.b16 %v1121, %v1117
    %v1274 = vpack.c.b16 %v1122, %v1118
    %v1275 = vpack.c.b16 %v1123, %v1119
    %v1276 = vpack.c.b16 %v1128, %v1124
    %v1277 = vpack.c.b16 %v1129, %v1125
    %v1278 = vpack.c.b16 %v1130, %v1126
    %v1279 = vpack.c.b16 %v1131, %v1127
    %v1280 = vpack.c.b16 %v1136, %v1132
    %v1281 = vpack.c.b16 %v1137, %v1133
    %v1282 = vpack.c.b16 %v1138, %v1134
    %v1283 = vpack.c.b16 %v1139, %v1135
    %v1284 = vpack.c.b16 %v1144, %v1140
    %v1285 = vpack.c.b16 %v1145, %v1141
    %v1286 = vpack.c.b16 %v1146, %v1142
    %v1287 = vpack.c.b16 %v1147, %v1143
    %v1288 = vpack.c.b16 %v1152, %v1148
    %v1289 = vpack.c.b16 %v1153, %v1149
    %v1290 = vpack.c.b16 %v1154, %v1150
    %v1291 = vpack.c.b16 %v1155, %v1151
    %v1292 = vpack.c.b16 %v1160, %v1156
    %v1293 = vpack.c.b16 %v1161, %v1157
    %v1294 = vpack.c.b16 %v1162, %v1158
    %v1295 = vpack.c.b16 %v1163, %v1159
    %v1296 = vpack.c.b16 %v1168, %v1164
    %v1297 = vpack.c.b16 %v1169, %v1165
    %v1298 = vpack.c.b16 %v1170, %v1166
    %v1299 = vpack.c.b16 %v1171, %v1167
    %1428 = vmatprep.subr.bf16.mxu0 %v1173
    %1429 = vmatpush1.bf16.msra.mxu0 %v1172
    %1430 = vmatprep.subr.bf16.mxu0 %v1177
    %1431 = vmatpush1.bf16.msra.mxu0 %v1176
    %1432 = vmatprep.subr.bf16.mxu0 %v1181
    %1433 = vmatpush1.bf16.msra.mxu0 %v1180
    %1434 = vmatprep.subr.bf16.mxu0 %v1185
    %1435 = vmatpush1.bf16.msra.mxu0 %v1184
    %1436 = vmatprep.subr.bf16.mxu0 %v1189
    %1437 = vmatpush1.bf16.msra.mxu0 %v1188
    %1438 = vmatprep.subr.bf16.mxu0 %v1193
    %1439 = vmatpush1.bf16.msra.mxu0 %v1192
    %1440 = vmatprep.subr.bf16.mxu0 %v1197
    %1441 = vmatpush1.bf16.msra.mxu0 %v1196
    %1442 = vmatprep.subr.bf16.mxu0 %v1201
    %1443 = vmatpush1.bf16.msra.mxu0 %v1200
    %1444 = vmatprep.subr.bf16.mxu0 %v1205
    %1445 = vmatpush1.bf16.msra.mxu0 %v1204
    %1446 = vmatprep.subr.bf16.mxu0 %v1209
    %1447 = vmatpush1.bf16.msra.mxu0 %v1208
    %1448 = vmatprep.subr.bf16.mxu0 %v1213
    %1449 = vmatpush1.bf16.msra.mxu0 %v1212
    %1450 = vmatprep.subr.bf16.mxu0 %v1217
    %1451 = vmatpush1.bf16.msra.mxu0 %v1216
    %1452 = vmatprep.subr.bf16.mxu0 %v1221
    %1453 = vmatpush1.bf16.msra.mxu0 %v1220
    %1454 = vmatprep.subr.bf16.mxu0 %v1225
    %1455 = vmatpush1.bf16.msra.mxu0 %v1224
    %1456 = vmatprep.subr.bf16.mxu0 %v1229
    %1457 = vmatpush1.bf16.msra.mxu0 %v1228
    %1458 = vmatprep.subr.bf16.mxu0 %v1233
    %1459 = vmatpush1.bf16.msra.mxu0 %v1232
    %1460 = vmatprep.mubr.bf16.mxu0 %v634
    %1461 = vmatmul.mubr.bf16.gmra.mrb[0].mxu0 %v633
    %v1462 = vpop.f32.mrb[0].mxu0
    %v1463 = vadd.f32 %v771, %v1462
    %v1464 = vpop.f32.mrb[0].mxu0
    %v1465 = vadd.f32 %v775, %v1464
    %v1466 = vpop.f32.mrb[0].mxu0
    %v1467 = vpop.f32.mrb[0].mxu0
    %1468 = vdwg.mxu0
    %1469 = vmatprep.subr.bf16.mxu0 %v1237
    %1470 = vmatpush1.bf16.msra.mxu0 %v1236
    %1471 = vmatprep.subr.bf16.mxu0 %v1241
    %1472 = vmatpush1.bf16.msra.mxu0 %v1240
    %1473 = vmatprep.subr.bf16.mxu0 %v1245
    %1474 = vmatpush1.bf16.msra.mxu0 %v1244
    %1475 = vmatprep.subr.bf16.mxu0 %v1249
    %1476 = vmatpush1.bf16.msra.mxu0 %v1248
    %1477 = vmatprep.subr.bf16.mxu0 %v1253
    %1478 = vmatpush1.bf16.msra.mxu0 %v1252
    %1479 = vmatprep.subr.bf16.mxu0 %v1257
    %1480 = vmatpush1.bf16.msra.mxu0 %v1256
    %1481 = vmatprep.subr.bf16.mxu0 %v1261
    %1482 = vmatpush1.bf16.msra.mxu0 %v1260
    %1483 = vmatprep.subr.bf16.mxu0 %v1265
    %1484 = vmatpush1.bf16.msra.mxu0 %v1264
    %1485 = vmatprep.subr.bf16.mxu0 %v1269
    %1486 = vmatpush1.bf16.msra.mxu0 %v1268
    %1487 = vmatprep.subr.bf16.mxu0 %v1273
    %1488 = vmatpush1.bf16.msra.mxu0 %v1272
    %1489 = vmatprep.subr.bf16.mxu0 %v1277
    %1490 = vmatpush1.bf16.msra.mxu0 %v1276
    %1491 = vmatprep.subr.bf16.mxu0 %v1281
    %1492 = vmatpush1.bf16.msra.mxu0 %v1280
    %1493 = vmatprep.subr.bf16.mxu0 %v1285
    %1494 = vmatpush1.bf16.msra.mxu0 %v1284
    %1495 = vmatprep.subr.bf16.mxu0 %v1289
    %1496 = vmatpush1.bf16.msra.mxu0 %v1288
    %1497 = vmatprep.subr.bf16.mxu0 %v1293
    %1498 = vmatpush1.bf16.msra.mxu0 %v1292
    %1499 = vmatprep.subr.bf16.mxu0 %v1297
    %1500 = vmatpush1.bf16.msra.mxu0 %v1296
    %1501 = vmatprep.mubr.bf16.mxu0 %v636
    %1502 = vmatmul.mubr.bf16.gmra.mrb[0].mxu0 %v635
    %v1503 = vpop.f32.mrb[0].mxu0
    %v1504 = vadd.f32 %v1463, %v1503
    %v1505 = vpop.f32.mrb[0].mxu0
    %v1506 = vadd.f32 %v1465, %v1505
    %v1507 = vpop.f32.mrb[0].mxu0
    %v1508 = vpop.f32.mrb[0].mxu0
    %1509 = vdwg.mxu0
    %1510 = vmatprep.subr.bf16.mxu0 %v1175
    %1511 = vmatpush1.bf16.msra.mxu0 %v1174
    %1512 = vmatprep.subr.bf16.mxu0 %v1179
    %1513 = vmatpush1.bf16.msra.mxu0 %v1178
    %1514 = vmatprep.subr.bf16.mxu0 %v1183
    %1515 = vmatpush1.bf16.msra.mxu0 %v1182
    %1516 = vmatprep.subr.bf16.mxu0 %v1187
    %1517 = vmatpush1.bf16.msra.mxu0 %v1186
    %1518 = vmatprep.subr.bf16.mxu0 %v1191
    %1519 = vmatpush1.bf16.msra.mxu0 %v1190
    %1520 = vmatprep.subr.bf16.mxu0 %v1195
    %1521 = vmatpush1.bf16.msra.mxu0 %v1194
    %1522 = vmatprep.subr.bf16.mxu0 %v1199
    %1523 = vmatpush1.bf16.msra.mxu0 %v1198
    %1524 = vmatprep.subr.bf16.mxu0 %v1203
    %1525 = vmatpush1.bf16.msra.mxu0 %v1202
    %1526 = vmatprep.subr.bf16.mxu0 %v1207
    %1527 = vmatpush1.bf16.msra.mxu0 %v1206
    %1528 = vmatprep.subr.bf16.mxu0 %v1211
    %1529 = vmatpush1.bf16.msra.mxu0 %v1210
    %1530 = vmatprep.subr.bf16.mxu0 %v1215
    %1531 = vmatpush1.bf16.msra.mxu0 %v1214
    %1532 = vmatprep.subr.bf16.mxu0 %v1219
    %1533 = vmatpush1.bf16.msra.mxu0 %v1218
    %1534 = vmatprep.subr.bf16.mxu0 %v1223
    %1535 = vmatpush1.bf16.msra.mxu0 %v1222
    %1536 = vmatprep.subr.bf16.mxu0 %v1227
    %1537 = vmatpush1.bf16.msra.mxu0 %v1226
    %1538 = vmatprep.subr.bf16.mxu0 %v1231
    %1539 = vmatpush1.bf16.msra.mxu0 %v1230
    %1540 = vmatprep.subr.bf16.mxu0 %v1235
    %1541 = vmatpush1.bf16.msra.mxu0 %v1234
    %1542 = vmatprep.mubr.bf16.mxu0 %v634
    %1543 = vmatmul.mubr.bf16.gmra.mrb[0].mxu0 %v633
    %v1544 = vpop.f32.mrb[0].mxu0
    %v1545 = vadd.f32 %v779, %v1544
    %v1546 = vpop.f32.mrb[0].mxu0
    %v1547 = vadd.f32 %v783, %v1546
    %v1548 = vpop.f32.mrb[0].mxu0
    %v1549 = vpop.f32.mrb[0].mxu0
    %1550 = vdwg.mxu0
    %1551 = vmatprep.subr.bf16.mxu0 %v1239
    %1552 = vmatpush1.bf16.msra.mxu0 %v1238
    %1553 = vmatprep.subr.bf16.mxu0 %v1243
    %1554 = vmatpush1.bf16.msra.mxu0 %v1242
    %1555 = vmatprep.subr.bf16.mxu0 %v1247
    %1556 = vmatpush1.bf16.msra.mxu0 %v1246
    %1557 = vmatprep.subr.bf16.mxu0 %v1251
    %1558 = vmatpush1.bf16.msra.mxu0 %v1250
    %1559 = vmatprep.subr.bf16.mxu0 %v1255
    %1560 = vmatpush1.bf16.msra.mxu0 %v1254
    %1561 = vmatprep.subr.bf16.mxu0 %v1259
    %1562 = vmatpush1.bf16.msra.mxu0 %v1258
    %1563 = vmatprep.subr.bf16.mxu0 %v1263
    %1564 = vmatpush1.bf16.msra.mxu0 %v1262
    %1565 = vmatprep.subr.bf16.mxu0 %v1267
    %1566 = vmatpush1.bf16.msra.mxu0 %v1266
    %1567 = vmatprep.subr.bf16.mxu0 %v1271
    %1568 = vmatpush1.bf16.msra.mxu0 %v1270
    %1569 = vmatprep.subr.bf16.mxu0 %v1275
    %1570 = vmatpush1.bf16.msra.mxu0 %v1274
    %1571 = vmatprep.subr.bf16.mxu0 %v1279
    %1572 = vmatpush1.bf16.msra.mxu0 %v1278
    %1573 = vmatprep.subr.bf16.mxu0 %v1283
    %1574 = vmatpush1.bf16.msra.mxu0 %v1282
    %1575 = vmatprep.subr.bf16.mxu0 %v1287
    %1576 = vmatpush1.bf16.msra.mxu0 %v1286
    %1577 = vmatprep.subr.bf16.mxu0 %v1291
    %1578 = vmatpush1.bf16.msra.mxu0 %v1290
    %1579 = vmatprep.subr.bf16.mxu0 %v1295
    %1580 = vmatpush1.bf16.msra.mxu0 %v1294
    %1581 = vmatprep.subr.bf16.mxu0 %v1299
    %1582 = vmatpush1.bf16.msra.mxu0 %v1298
    %1583 = vmatprep.mubr.bf16.mxu0 %v636
    %1584 = vmatmul.mubr.bf16.gmra.mrb[0].mxu0 %v635
    %v1585 = vpop.f32.mrb[0].mxu0
    %v1586 = vadd.f32 %v1545, %v1585
    %v1587 = vpop.f32.mrb[0].mxu0
    %v1588 = vadd.f32 %v1547, %v1587
    %v1589 = vpop.f32.mrb[0].mxu0
    %v1590 = vpop.f32.mrb[0].mxu0
    %1591 = vdwg.mxu0
    %v1592 = vmax.f32 %v1504, 0.0
    %v1593 = vmax.f32 %v1506, 0.0
    %v1594 = vmax.f32 %v1586, 0.0
    %v1595 = vmax.f32 %v1588, 0.0
    %v1596 = vpack.c.bf16 %v1592, %v1592
    %v1597 = vpack.c.bf16 %v1593, %v1593
    %v1598 = vpack.c.bf16 %v1594, %v1594
    %v1599 = vpack.c.bf16 %v1595, %v1595
    %v1600 = vld [vmem:[#allocation5 + $0x600] sm:$0xff]
    %v1601 = vld [vmem:[#allocation5 + $0x610] sm:$0xff]
    %v1602 = vld [vmem:[#allocation5 + $0x620] sm:$0xff]
    %v1603 = vld [vmem:[#allocation5 + $0x630] sm:$0xff]
    %v1604 = vld [vmem:[#allocation5 + $0x640] sm:$0xff]
    %v1605 = vld [vmem:[#allocation5 + $0x650] sm:$0xff]
    %v1606 = vld [vmem:[#allocation5 + $0x660] sm:$0xff]
    %v1607 = vld [vmem:[#allocation5 + $0x670] sm:$0xff]
    %v1608 = vld [vmem:[#allocation5 + $0x680] sm:$0xff]
    %v1609 = vld [vmem:[#allocation5 + $0x690] sm:$0xff]
    %v1610 = vld [vmem:[#allocation5 + $0x6a0] sm:$0xff]
    %v1611 = vld [vmem:[#allocation5 + $0x6b0] sm:$0xff]
    %v1612 = vld [vmem:[#allocation5 + $0x6c0] sm:$0xff]
    %v1613 = vld [vmem:[#allocation5 + $0x6d0] sm:$0xff]
    %v1614 = vld [vmem:[#allocation5 + $0x6e0] sm:$0xff]
    %v1615 = vld [vmem:[#allocation5 + $0x6f0] sm:$0xff]
    %v1616 = vld [vmem:[#allocation5 + $0x700] sm:$0xff]
    %v1617 = vld [vmem:[#allocation5 + $0x710] sm:$0xff]
    %v1618 = vld [vmem:[#allocation5 + $0x720] sm:$0xff]
    %v1619 = vld [vmem:[#allocation5 + $0x730] sm:$0xff]
    %v1620 = vld [vmem:[#allocation5 + $0x740] sm:$0xff]
    %v1621 = vld [vmem:[#allocation5 + $0x750] sm:$0xff]
    %v1622 = vld [vmem:[#allocation5 + $0x760] sm:$0xff]
    %v1623 = vld [vmem:[#allocation5 + $0x770] sm:$0xff]
    %v1624 = vld [vmem:[#allocation5 + $0x780] sm:$0xff]
    %v1625 = vld [vmem:[#allocation5 + $0x790] sm:$0xff]
    %v1626 = vld [vmem:[#allocation5 + $0x7a0] sm:$0xff]
    %v1627 = vld [vmem:[#allocation5 + $0x7b0] sm:$0xff]
    %v1628 = vld [vmem:[#allocation5 + $0x7c0] sm:$0xff]
    %v1629 = vld [vmem:[#allocation5 + $0x7d0] sm:$0xff]
    %v1630 = vld [vmem:[#allocation5 + $0x7e0] sm:$0xff]
    %v1631 = vld [vmem:[#allocation5 + $0x7f0] sm:$0xff]
    %v1632 = vld [vmem:[#allocation5 + $0x800] sm:$0xff]
    %v1633 = vld [vmem:[#allocation5 + $0x810] sm:$0xff]
    %v1634 = vld [vmem:[#allocation5 + $0x820] sm:$0xff]
    %v1635 = vld [vmem:[#allocation5 + $0x830] sm:$0xff]
    %v1636 = vld [vmem:[#allocation5 + $0x840] sm:$0xff]
    %v1637 = vld [vmem:[#allocation5 + $0x850] sm:$0xff]
    %v1638 = vld [vmem:[#allocation5 + $0x860] sm:$0xff]
    %v1639 = vld [vmem:[#allocation5 + $0x870] sm:$0xff]
    %v1640 = vld [vmem:[#allocation5 + $0x880] sm:$0xff]
    %v1641 = vld [vmem:[#allocation5 + $0x890] sm:$0xff]
    %v1642 = vld [vmem:[#allocation5 + $0x8a0] sm:$0xff]
    %v1643 = vld [vmem:[#allocation5 + $0x8b0] sm:$0xff]
    %v1644 = vld [vmem:[#allocation5 + $0x8c0] sm:$0xff]
    %v1645 = vld [vmem:[#allocation5 + $0x8d0] sm:$0xff]
    %v1646 = vld [vmem:[#allocation5 + $0x8e0] sm:$0xff]
    %v1647 = vld [vmem:[#allocation5 + $0x8f0] sm:$0xff]
    %v1648 = vld [vmem:[#allocation5 + $0x900] sm:$0xff]
    %v1649 = vld [vmem:[#allocation5 + $0x910] sm:$0xff]
    %v1650 = vld [vmem:[#allocation5 + $0x920] sm:$0xff]
    %v1651 = vld [vmem:[#allocation5 + $0x930] sm:$0xff]
    %v1652 = vld [vmem:[#allocation5 + $0x940] sm:$0xff]
    %v1653 = vld [vmem:[#allocation5 + $0x950] sm:$0xff]
    %v1654 = vld [vmem:[#allocation5 + $0x960] sm:$0xff]
    %v1655 = vld [vmem:[#allocation5 + $0x970] sm:$0xff]
    %v1656 = vld [vmem:[#allocation5 + $0x980] sm:$0xff]
    %v1657 = vld [vmem:[#allocation5 + $0x990] sm:$0xff]
    %v1658 = vld [vmem:[#allocation5 + $0x9a0] sm:$0xff]
    %v1659 = vld [vmem:[#allocation5 + $0x9b0] sm:$0xff]
    %v1660 = vld [vmem:[#allocation5 + $0x9c0] sm:$0xff]
    %v1661 = vld [vmem:[#allocation5 + $0x9d0] sm:$0xff]
    %v1662 = vld [vmem:[#allocation5 + $0x9e0] sm:$0xff]
    %v1663 = vld [vmem:[#allocation5 + $0x9f0] sm:$0xff]
    %s1664 = scalar_lea.vmem [#allocation7], 3
    %v1665 = vld [vmem:[%s1664] ss:$8 sm:$0x3]
    %v1667 = vlaneseq
    %v1668 = vshrl.u32 %v1667, 7
    %v1669 = vsub.s32 0, %v1668
    %v1670 = vrot.slane %v1665, %v1669
    %v1671 = vlaneseq
    %v1672 = vshrl.u32 %v1671, 7
    %v1673 = vsub.s32 1, %v1672
    %v1674 = vrot.slane %v1665, %v1673
    %v1741 = vunpack.c.l.b16 %v1600
    %v1742 = vunpack.c.h.b16 %v1600
    %v1743 = vunpack.c.l.b16 %v1601
    %v1744 = vunpack.c.h.b16 %v1601
    %v1745 = vunpack.c.l.b16 %v1602
    %v1746 = vunpack.c.h.b16 %v1602
    %v1747 = vunpack.c.l.b16 %v1603
    %v1748 = vunpack.c.h.b16 %v1603
    %v1749 = vunpack.c.l.b16 %v1604
    %v1750 = vunpack.c.h.b16 %v1604
    %v1751 = vunpack.c.l.b16 %v1605
    %v1752 = vunpack.c.h.b16 %v1605
    %v1753 = vunpack.c.l.b16 %v1606
    %v1754 = vunpack.c.h.b16 %v1606
    %v1755 = vunpack.c.l.b16 %v1607
    %v1756 = vunpack.c.h.b16 %v1607
    %v1757 = vunpack.c.l.b16 %v1608
    %v1758 = vunpack.c.h.b16 %v1608
    %v1759 = vunpack.c.l.b16 %v1609
    %v1760 = vunpack.c.h.b16 %v1609
    %v1761 = vunpack.c.l.b16 %v1610
    %v1762 = vunpack.c.h.b16 %v1610
    %v1763 = vunpack.c.l.b16 %v1611
    %v1764 = vunpack.c.h.b16 %v1611
    %v1765 = vunpack.c.l.b16 %v1612
    %v1766 = vunpack.c.h.b16 %v1612
    %v1767 = vunpack.c.l.b16 %v1613
    %v1768 = vunpack.c.h.b16 %v1613
    %v1769 = vunpack.c.l.b16 %v1614
    %v1770 = vunpack.c.h.b16 %v1614
    %v1771 = vunpack.c.l.b16 %v1615
    %v1772 = vunpack.c.h.b16 %v1615
    %v1773 = vunpack.c.l.b16 %v1616
    %v1774 = vunpack.c.h.b16 %v1616
    %v1775 = vunpack.c.l.b16 %v1617
    %v1776 = vunpack.c.h.b16 %v1617
    %v1777 = vunpack.c.l.b16 %v1618
    %v1778 = vunpack.c.h.b16 %v1618
    %v1779 = vunpack.c.l.b16 %v1619
    %v1780 = vunpack.c.h.b16 %v1619
    %v1781 = vunpack.c.l.b16 %v1620
    %v1782 = vunpack.c.h.b16 %v1620
    %v1783 = vunpack.c.l.b16 %v1621
    %v1784 = vunpack.c.h.b16 %v1621
    %v1785 = vunpack.c.l.b16 %v1622
    %v1786 = vunpack.c.h.b16 %v1622
    %v1787 = vunpack.c.l.b16 %v1623
    %v1788 = vunpack.c.h.b16 %v1623
    %v1789 = vunpack.c.l.b16 %v1624
    %v1790 = vunpack.c.h.b16 %v1624
    %v1791 = vunpack.c.l.b16 %v1625
    %v1792 = vunpack.c.h.b16 %v1625
    %v1793 = vunpack.c.l.b16 %v1626
    %v1794 = vunpack.c.h.b16 %v1626
    %v1795 = vunpack.c.l.b16 %v1627
    %v1796 = vunpack.c.h.b16 %v1627
    %v1797 = vunpack.c.l.b16 %v1628
    %v1798 = vunpack.c.h.b16 %v1628
    %v1799 = vunpack.c.l.b16 %v1629
    %v1800 = vunpack.c.h.b16 %v1629
    %v1801 = vunpack.c.l.b16 %v1630
    %v1802 = vunpack.c.h.b16 %v1630
    %v1803 = vunpack.c.l.b16 %v1631
    %v1804 = vunpack.c.h.b16 %v1631
    %v1805 = vunpack.c.l.b16 %v1632
    %v1806 = vunpack.c.h.b16 %v1632
    %v1807 = vunpack.c.l.b16 %v1633
    %v1808 = vunpack.c.h.b16 %v1633
    %v1809 = vunpack.c.l.b16 %v1634
    %v1810 = vunpack.c.h.b16 %v1634
    %v1811 = vunpack.c.l.b16 %v1635
    %v1812 = vunpack.c.h.b16 %v1635
    %v1813 = vunpack.c.l.b16 %v1636
    %v1814 = vunpack.c.h.b16 %v1636
    %v1815 = vunpack.c.l.b16 %v1637
    %v1816 = vunpack.c.h.b16 %v1637
    %v1817 = vunpack.c.l.b16 %v1638
    %v1818 = vunpack.c.h.b16 %v1638
    %v1819 = vunpack.c.l.b16 %v1639
    %v1820 = vunpack.c.h.b16 %v1639
    %v1821 = vunpack.c.l.b16 %v1640
    %v1822 = vunpack.c.h.b16 %v1640
    %v1823 = vunpack.c.l.b16 %v1641
    %v1824 = vunpack.c.h.b16 %v1641
    %v1825 = vunpack.c.l.b16 %v1642
    %v1826 = vunpack.c.h.b16 %v1642
    %v1827 = vunpack.c.l.b16 %v1643
    %v1828 = vunpack.c.h.b16 %v1643
    %v1829 = vunpack.c.l.b16 %v1644
    %v1830 = vunpack.c.h.b16 %v1644
    %v1831 = vunpack.c.l.b16 %v1645
    %v1832 = vunpack.c.h.b16 %v1645
    %v1833 = vunpack.c.l.b16 %v1646
    %v1834 = vunpack.c.h.b16 %v1646
    %v1835 = vunpack.c.l.b16 %v1647
    %v1836 = vunpack.c.h.b16 %v1647
    %v1837 = vunpack.c.l.b16 %v1648
    %v1838 = vunpack.c.h.b16 %v1648
    %v1839 = vunpack.c.l.b16 %v1649
    %v1840 = vunpack.c.h.b16 %v1649
    %v1841 = vunpack.c.l.b16 %v1650
    %v1842 = vunpack.c.h.b16 %v1650
    %v1843 = vunpack.c.l.b16 %v1651
    %v1844 = vunpack.c.h.b16 %v1651
    %v1845 = vunpack.c.l.b16 %v1652
    %v1846 = vunpack.c.h.b16 %v1652
    %v1847 = vunpack.c.l.b16 %v1653
    %v1848 = vunpack.c.h.b16 %v1653
    %v1849 = vunpack.c.l.b16 %v1654
    %v1850 = vunpack.c.h.b16 %v1654
    %v1851 = vunpack.c.l.b16 %v1655
    %v1852 = vunpack.c.h.b16 %v1655
    %v1853 = vunpack.c.l.b16 %v1656
    %v1854 = vunpack.c.h.b16 %v1656
    %v1855 = vunpack.c.l.b16 %v1657
    %v1856 = vunpack.c.h.b16 %v1657
    %v1857 = vunpack.c.l.b16 %v1658
    %v1858 = vunpack.c.h.b16 %v1658
    %v1859 = vunpack.c.l.b16 %v1659
    %v1860 = vunpack.c.h.b16 %v1659
    %v1861 = vunpack.c.l.b16 %v1660
    %v1862 = vunpack.c.h.b16 %v1660
    %v1863 = vunpack.c.l.b16 %v1661
    %v1864 = vunpack.c.h.b16 %v1661
    %v1865 = vunpack.c.l.b16 %v1662
    %v1866 = vunpack.c.h.b16 %v1662
    %v1867 = vunpack.c.l.b16 %v1663
    %v1868 = vunpack.c.h.b16 %v1663
    %v1869 = vpack.c.b16 %v1743, %v1741
    %v1870 = vpack.c.b16 %v1744, %v1742
    %v1871 = vpack.c.b16 %v1747, %v1745
    %v1872 = vpack.c.b16 %v1748, %v1746
    %v1873 = vpack.c.b16 %v1751, %v1749
    %v1874 = vpack.c.b16 %v1752, %v1750
    %v1875 = vpack.c.b16 %v1755, %v1753
    %v1876 = vpack.c.b16 %v1756, %v1754
    %v1877 = vpack.c.b16 %v1759, %v1757
    %v1878 = vpack.c.b16 %v1760, %v1758
    %v1879 = vpack.c.b16 %v1763, %v1761
    %v1880 = vpack.c.b16 %v1764, %v1762
    %v1881 = vpack.c.b16 %v1767, %v1765
    %v1882 = vpack.c.b16 %v1768, %v1766
    %v1883 = vpack.c.b16 %v1771, %v1769
    %v1884 = vpack.c.b16 %v1772, %v1770
    %v1885 = vpack.c.b16 %v1775, %v1773
    %v1886 = vpack.c.b16 %v1776, %v1774
    %v1887 = vpack.c.b16 %v1779, %v1777
    %v1888 = vpack.c.b16 %v1780, %v1778
    %v1889 = vpack.c.b16 %v1783, %v1781
    %v1890 = vpack.c.b16 %v1784, %v1782
    %v1891 = vpack.c.b16 %v1787, %v1785
    %v1892 = vpack.c.b16 %v1788, %v1786
    %v1893 = vpack.c.b16 %v1791, %v1789
    %v1894 = vpack.c.b16 %v1792, %v1790
    %v1895 = vpack.c.b16 %v1795, %v1793
    %v1896 = vpack.c.b16 %v1796, %v1794
    %v1897 = vpack.c.b16 %v1799, %v1797
    %v1898 = vpack.c.b16 %v1800, %v1798
    %v1899 = vpack.c.b16 %v1803, %v1801
    %v1900 = vpack.c.b16 %v1804, %v1802
    %v1901 = vpack.c.b16 %v1807, %v1805
    %v1902 = vpack.c.b16 %v1808, %v1806
    %v1903 = vpack.c.b16 %v1811, %v1809
    %v1904 = vpack.c.b16 %v1812, %v1810
    %v1905 = vpack.c.b16 %v1815, %v1813
    %v1906 = vpack.c.b16 %v1816, %v1814
    %v1907 = vpack.c.b16 %v1819, %v1817
    %v1908 = vpack.c.b16 %v1820, %v1818
    %v1909 = vpack.c.b16 %v1823, %v1821
    %v1910 = vpack.c.b16 %v1824, %v1822
    %v1911 = vpack.c.b16 %v1827, %v1825
    %v1912 = vpack.c.b16 %v1828, %v1826
    %v1913 = vpack.c.b16 %v1831, %v1829
    %v1914 = vpack.c.b16 %v1832, %v1830
    %v1915 = vpack.c.b16 %v1835, %v1833
    %v1916 = vpack.c.b16 %v1836, %v1834
    %v1917 = vpack.c.b16 %v1839, %v1837
    %v1918 = vpack.c.b16 %v1840, %v1838
    %v1919 = vpack.c.b16 %v1843, %v1841
    %v1920 = vpack.c.b16 %v1844, %v1842
    %v1921 = vpack.c.b16 %v1847, %v1845
    %v1922 = vpack.c.b16 %v1848, %v1846
    %v1923 = vpack.c.b16 %v1851, %v1849
    %v1924 = vpack.c.b16 %v1852, %v1850
    %v1925 = vpack.c.b16 %v1855, %v1853
    %v1926 = vpack.c.b16 %v1856, %v1854
    %v1927 = vpack.c.b16 %v1859, %v1857
    %v1928 = vpack.c.b16 %v1860, %v1858
    %v1929 = vpack.c.b16 %v1863, %v1861
    %v1930 = vpack.c.b16 %v1864, %v1862
    %v1931 = vpack.c.b16 %v1867, %v1865
    %v1932 = vpack.c.b16 %v1868, %v1866
    %1997 = vmatprep.subr.bf16.mxu0 %v1870
    %1998 = vmatpush1.bf16.msra.mxu0 %v1869
    %1999 = vmatprep.subr.bf16.mxu0 %v1872
    %2000 = vmatpush1.bf16.msra.mxu0 %v1871
    %2001 = vmatprep.subr.bf16.mxu0 %v1874
    %2002 = vmatpush1.bf16.msra.mxu0 %v1873
    %2003 = vmatprep.subr.bf16.mxu0 %v1876
    %2004 = vmatpush1.bf16.msra.mxu0 %v1875
    %2005 = vmatprep.subr.bf16.mxu0 %v1878
    %2006 = vmatpush1.bf16.msra.mxu0 %v1877
    %2007 = vmatprep.subr.bf16.mxu0 %v1880
    %2008 = vmatpush1.bf16.msra.mxu0 %v1879
    %2009 = vmatprep.subr.bf16.mxu0 %v1882
    %2010 = vmatpush1.bf16.msra.mxu0 %v1881
    %2011 = vmatprep.subr.bf16.mxu0 %v1884
    %2012 = vmatpush1.bf16.msra.mxu0 %v1883
    %2013 = vmatprep.subr.bf16.mxu0 %v1886
    %2014 = vmatpush1.bf16.msra.mxu0 %v1885
    %2015 = vmatprep.subr.bf16.mxu0 %v1888
    %2016 = vmatpush1.bf16.msra.mxu0 %v1887
    %2017 = vmatprep.subr.bf16.mxu0 %v1890
    %2018 = vmatpush1.bf16.msra.mxu0 %v1889
    %2019 = vmatprep.subr.bf16.mxu0 %v1892
    %2020 = vmatpush1.bf16.msra.mxu0 %v1891
    %2021 = vmatprep.subr.bf16.mxu0 %v1894
    %2022 = vmatpush1.bf16.msra.mxu0 %v1893
    %2023 = vmatprep.subr.bf16.mxu0 %v1896
    %2024 = vmatpush1.bf16.msra.mxu0 %v1895
    %2025 = vmatprep.subr.bf16.mxu0 %v1898
    %2026 = vmatpush1.bf16.msra.mxu0 %v1897
    %2027 = vmatprep.subr.bf16.mxu0 %v1900
    %2028 = vmatpush1.bf16.msra.mxu0 %v1899
    %2029 = vmatprep.mubr.bf16.mxu0 %v1597
    %2030 = vmatmul.mubr.bf16.gmra.mrb[0].mxu0 %v1596
    %v2031 = vpop.f32.mrb[0].mxu0
    %v2032 = vadd.f32 %v1670, %v2031
    %v2033 = vpop.f32.mrb[0].mxu0
    %v2034 = vadd.f32 %v1674, %v2033
    %v2035 = vpop.f32.mrb[0].mxu0
    %v2036 = vpop.f32.mrb[0].mxu0
    %2037 = vdwg.mxu0
    %2038 = vmatprep.subr.bf16.mxu0 %v1902
    %2039 = vmatpush1.bf16.msra.mxu0 %v1901
    %2040 = vmatprep.subr.bf16.mxu0 %v1904
    %2041 = vmatpush1.bf16.msra.mxu0 %v1903
    %2042 = vmatprep.subr.bf16.mxu0 %v1906
    %2043 = vmatpush1.bf16.msra.mxu0 %v1905
    %2044 = vmatprep.subr.bf16.mxu0 %v1908
    %2045 = vmatpush1.bf16.msra.mxu0 %v1907
    %2046 = vmatprep.subr.bf16.mxu0 %v1910
    %2047 = vmatpush1.bf16.msra.mxu0 %v1909
    %2048 = vmatprep.subr.bf16.mxu0 %v1912
    %2049 = vmatpush1.bf16.msra.mxu0 %v1911
    %2050 = vmatprep.subr.bf16.mxu0 %v1914
    %2051 = vmatpush1.bf16.msra.mxu0 %v1913
    %2052 = vmatprep.subr.bf16.mxu0 %v1916
    %2053 = vmatpush1.bf16.msra.mxu0 %v1915
    %2054 = vmatprep.subr.bf16.mxu0 %v1918
    %2055 = vmatpush1.bf16.msra.mxu0 %v1917
    %2056 = vmatprep.subr.bf16.mxu0 %v1920
    %2057 = vmatpush1.bf16.msra.mxu0 %v1919
    %2058 = vmatprep.subr.bf16.mxu0 %v1922
    %2059 = vmatpush1.bf16.msra.mxu0 %v1921
    %2060 = vmatprep.subr.bf16.mxu0 %v1924
    %2061 = vmatpush1.bf16.msra.mxu0 %v1923
    %2062 = vmatprep.subr.bf16.mxu0 %v1926
    %2063 = vmatpush1.bf16.msra.mxu0 %v1925
    %2064 = vmatprep.subr.bf16.mxu0 %v1928
    %2065 = vmatpush1.bf16.msra.mxu0 %v1927
    %2066 = vmatprep.subr.bf16.mxu0 %v1930
    %2067 = vmatpush1.bf16.msra.mxu0 %v1929
    %2068 = vmatprep.subr.bf16.mxu0 %v1932
    %2069 = vmatpush1.bf16.msra.mxu0 %v1931
    %2070 = vmatprep.mubr.bf16.mxu0 %v1599
    %2071 = vmatmul.mubr.bf16.gmra.mrb[0].mxu0 %v1598
    %v2072 = vpop.f32.mrb[0].mxu0
    %v2073 = vadd.f32 %v2032, %v2072
    %v2074 = vpop.f32.mrb[0].mxu0
    %v2075 = vadd.f32 %v2034, %v2074
    %v2076 = vpop.f32.mrb[0].mxu0
    %v2077 = vpop.f32.mrb[0].mxu0
    %2078 = vdwg.mxu0
    %v2079 = vmax.f32 %v2073, 0.0
    %v2080 = vmax.f32 %v2075, 0.0
    %v2081 = vpack.c.bf16 %v2079, %v2079
    %v2082 = vpack.c.bf16 %v2080, %v2080
    %v2083 = vld [vmem:[#allocation5 + $0x648] sm:$0xf]
    %v2084 = vld [vmem:[#allocation5 + $0x658] sm:$0xf]
    %v2085 = vld [vmem:[#allocation5 + $0x668] sm:$0xf]
    %v2086 = vld [vmem:[#allocation5 + $0x678] sm:$0xf]
    %v2087 = vld [vmem:[#allocation5 + $0x688] sm:$0xf]
    %v2088 = vld [vmem:[#allocation5 + $0x698] sm:$0xf]
    %v2089 = vld [vmem:[#allocation5 + $0x6a8] sm:$0xf]
    %v2090 = vld [vmem:[#allocation5 + $0x6b8] sm:$0xf]
    %v2091 = vld [vmem:[#allocation5 + $0x6c8] sm:$0xf]
    %v2092 = vld [vmem:[#allocation5 + $0x6d8] sm:$0xf]
    %v2093 = vld [vmem:[#allocation5 + $0x6e8] sm:$0xf]
    %v2094 = vld [vmem:[#allocation5 + $0x6f8] sm:$0xf]
    %v2095 = vld [vmem:[#allocation5 + $0x708] sm:$0xf]
    %v2096 = vld [vmem:[#allocation5 + $0x718] sm:$0xf]
    %v2097 = vld [vmem:[#allocation5 + $0x728] sm:$0xf]
    %v2098 = vld [vmem:[#allocation5 + $0x738] sm:$0xf]
    %v2099 = vld [vmem:[#allocation5 + $0x748] sm:$0xf]
    %v2100 = vld [vmem:[#allocation5 + $0x758] sm:$0xf]
    %v2101 = vld [vmem:[#allocation5 + $0x768] sm:$0xf]
    %v2102 = vld [vmem:[#allocation5 + $0x778] sm:$0xf]
    %v2103 = vld [vmem:[#allocation5 + $0x788] sm:$0xf]
    %v2104 = vld [vmem:[#allocation5 + $0x798] sm:$0xf]
    %v2105 = vld [vmem:[#allocation5 + $0x7a8] sm:$0xf]
    %v2106 = vld [vmem:[#allocation5 + $0x7b8] sm:$0xf]
    %v2107 = vld [vmem:[#allocation5 + $0x7c8] sm:$0xf]
    %v2108 = vld [vmem:[#allocation5 + $0x7d8] sm:$0xf]
    %v2109 = vld [vmem:[#allocation5 + $0x7e8] sm:$0xf]
    %v2110 = vld [vmem:[#allocation5 + $0x7f8] sm:$0xf]
    %v2111 = vld [vmem:[#allocation5 + $0x808] sm:$0xf]
    %v2112 = vld [vmem:[#allocation5 + $0x818] sm:$0xf]
    %v2113 = vld [vmem:[#allocation5 + $0x828] sm:$0xf]
    %v2114 = vld [vmem:[#allocation5 + $0x838] sm:$0xf]
    %v2115 = vld [vmem:[#allocation7 + $0x4] ss:$0 sm:$0xff]
    %v2148 = vunpack.c.l.b16 %v2083
    %v2149 = vunpack.c.l.b16 %v2084
    %v2150 = vunpack.c.l.b16 %v2085
    %v2151 = vunpack.c.l.b16 %v2086
    %v2152 = vunpack.c.l.b16 %v2087
    %v2153 = vunpack.c.l.b16 %v2088
    %v2154 = vunpack.c.l.b16 %v2089
    %v2155 = vunpack.c.l.b16 %v2090
    %v2156 = vunpack.c.l.b16 %v2091
    %v2157 = vunpack.c.l.b16 %v2092
    %v2158 = vunpack.c.l.b16 %v2093
    %v2159 = vunpack.c.l.b16 %v2094
    %v2160 = vunpack.c.l.b16 %v2095
    %v2161 = vunpack.c.l.b16 %v2096
    %v2162 = vunpack.c.l.b16 %v2097
    %v2163 = vunpack.c.l.b16 %v2098
    %v2164 = vunpack.c.l.b16 %v2099
    %v2165 = vunpack.c.l.b16 %v2100
    %v2166 = vunpack.c.l.b16 %v2101
    %v2167 = vunpack.c.l.b16 %v2102
    %v2168 = vunpack.c.l.b16 %v2103
    %v2169 = vunpack.c.l.b16 %v2104
    %v2170 = vunpack.c.l.b16 %v2105
    %v2171 = vunpack.c.l.b16 %v2106
    %v2172 = vunpack.c.l.b16 %v2107
    %v2173 = vunpack.c.l.b16 %v2108
    %v2174 = vunpack.c.l.b16 %v2109
    %v2175 = vunpack.c.l.b16 %v2110
    %v2176 = vunpack.c.l.b16 %v2111
    %v2177 = vunpack.c.l.b16 %v2112
    %v2178 = vunpack.c.l.b16 %v2113
    %v2179 = vunpack.c.l.b16 %v2114
    %v2180 = vpack.c.b16 %v2149, %v2148
    %v2181 = vpack.c.b16 %v2151, %v2150
    %v2182 = vpack.c.b16 %v2153, %v2152
    %v2183 = vpack.c.b16 %v2155, %v2154
    %v2184 = vpack.c.b16 %v2157, %v2156
    %v2185 = vpack.c.b16 %v2159, %v2158
    %v2186 = vpack.c.b16 %v2161, %v2160
    %v2187 = vpack.c.b16 %v2163, %v2162
    %v2188 = vpack.c.b16 %v2165, %v2164
    %v2189 = vpack.c.b16 %v2167, %v2166
    %v2190 = vpack.c.b16 %v2169, %v2168
    %v2191 = vpack.c.b16 %v2171, %v2170
    %v2192 = vpack.c.b16 %v2173, %v2172
    %v2193 = vpack.c.b16 %v2175, %v2174
    %v2194 = vpack.c.b16 %v2177, %v2176
    %v2195 = vpack.c.b16 %v2179, %v2178
    %2212 = vmatprep.subr.bf16.mxu0 0
    %2213 = vmatpush1.bf16.msra.mxu0 %v2180
    %2214 = vmatprep.subr.bf16.mxu0 0
    %2215 = vmatpush1.bf16.msra.mxu0 %v2181
    %2216 = vmatprep.subr.bf16.mxu0 0
    %2217 = vmatpush1.bf16.msra.mxu0 %v2182
    %2218 = vmatprep.subr.bf16.mxu0 0
    %2219 = vmatpush1.bf16.msra.mxu0 %v2183
    %2220 = vmatprep.subr.bf16.mxu0 0
    %2221 = vmatpush1.bf16.msra.mxu0 %v2184
    %2222 = vmatprep.subr.bf16.mxu0 0
    %2223 = vmatpush1.bf16.msra.mxu0 %v2185
    %2224 = vmatprep.subr.bf16.mxu0 0
    %2225 = vmatpush1.bf16.msra.mxu0 %v2186
    %2226 = vmatprep.subr.bf16.mxu0 0
    %2227 = vmatpush1.bf16.msra.mxu0 %v2187
    %2228 = vmatprep.subr.bf16.mxu0 0
    %2229 = vmatpush1.bf16.msra.mxu0 %v2188
    %2230 = vmatprep.subr.bf16.mxu0 0
    %2231 = vmatpush1.bf16.msra.mxu0 %v2189
    %2232 = vmatprep.subr.bf16.mxu0 0
    %2233 = vmatpush1.bf16.msra.mxu0 %v2190
    %2234 = vmatprep.subr.bf16.mxu0 0
    %2235 = vmatpush1.bf16.msra.mxu0 %v2191
    %2236 = vmatprep.subr.bf16.mxu0 0
    %2237 = vmatpush1.bf16.msra.mxu0 %v2192
    %2238 = vmatprep.subr.bf16.mxu0 0
    %2239 = vmatpush1.bf16.msra.mxu0 %v2193
    %2240 = vmatprep.subr.bf16.mxu0 0
    %2241 = vmatpush1.bf16.msra.mxu0 %v2194
    %2242 = vmatprep.subr.bf16.mxu0 0
    %2243 = vmatpush1.bf16.msra.mxu0 %v2195
    %2244 = vmatprep.mubr.bf16.mxu0 %v2082
    %2245 = vmatmul.mubr.bf16.gmra.mrb[0].mxu0 %v2081
    %v2246 = vpop.f32.mrb[0].mxu0
    %v2247 = vadd.f32 %v2115, %v2246
    %v2248 = vpop.f32.mrb[0].mxu0
    %v2249 = vpop.f32.mrb[0].mxu0
    %v2250 = vpop.f32.mrb[0].mxu0
    %2251 = vdwg.mxu0
    %2252 = vst [vmem:[#allocation8] sm:$0xff] %v2247
    // Predicated region
    $region26: #{tpu_custom_call.1} parent=1 // pred_check
      _
    $region27: #{tpu_custom_call.1} parent=1 // pred_check_branch
      %2254 = sbr.rel (0) target = $region29
    $region28: #{tpu_custom_call.1} parent=1 // pred_region
      %s2256 = ssub.s32 128, 128
      %2257 = vsyncadd [#allocation4], %s2256
      %s2259 = sshll.u32 [#allocation8], 4
      %s2260 = int_to_ptr.vmem [resolvable:$true] %s2259
      %2262 = dma.vmem_to_hbm [thread:$0]  %s2260, 128, %s3, [#allocation4]
    $region29: #{tpu_custom_call.1} parent=1 // pred_fallthru
      _
    // Predicated region
    $region30: #{tpu_custom_call.1} parent=1 // pred_check
      _
    $region31: #{tpu_custom_call.1} parent=1 // pred_check_branch
      %2264 = sbr.rel (0) target = $region33
    $region32: #{tpu_custom_call.1} parent=1 // pred_region
      %2265 = dma.done [#allocation4], 128
    $region33: #{tpu_custom_call.1} parent=1 // pred_fallthru
      _
    %2266 = vsyncpa [#allocation3], 1
    %2267 = vsyncpa [#allocation6], 1
    %2268 = vsyncpa [#allocation4], 1

</llo_original>
